<compile_context>
chip_gen: v7x
topology: tpu7x:2x2x1
jax: 0.10.0
libtpu: 0.0.40
codegen_flags: <defaults>
</compile_context>

<pallas_src>
import functools

import jax
import jax.numpy as jnp
from jax.experimental import pallas as pl
from jax.experimental.pallas import tpu as pltpu

_EPS = 1e-5
_LANES = 128
_COMPUTE_DTYPE = jnp.bfloat16   # MXU operands, scratch, and stored conv intermediates


def _round_up(x, m):
    return (x + m - 1) // m * m


def _vmem_limit_bytes():
    """Generation-aware scoped-VMEM limit (<= ~0.7x capacity, capped at 64 MiB)."""
    cap = 64 * 1024 * 1024          # conservative default (v7x per-core VMEM)
    try:
        cap = int(pltpu.get_tpu_info().vmem_capacity_bytes)
    except Exception:               # interpret mode / older jax: keep the default
        pass
    return int(min(0.7 * cap, 64 * 1024 * 1024))


# -----------------------------------------------------------------------------
# Pass 1: 3x3 conv (stride 1, pad 1, no bias) on one (image, H-tile) block
#         [+ optionally the PREVIOUS layer's BatchNorm+ReLU fused into the input]
#         + per-tile BN partial statistics.
# -----------------------------------------------------------------------------
def _conv_pass1_kernel(x_top_ref, x_body_ref, x_bot_ref, w_ref, sc_ref, sh_ref,
                       y_ref, st_ref, xp_ref, pat_ref, *, fuse_input_bnrelu):
    # x_top_ref : (1, 1, W, Cin_p)     image row just above the tile (clamped index)
    # x_body_ref: (1, TH, W, Cin_p)    the tile's own rows
    # x_bot_ref : (1, 1, W, Cin_p)     image row just below the tile (clamped index)
    # w_ref     : (9*Cin_p, Cout_p)    3x3 taps flattened (HWIO order) for im2col
    # sc_ref/sh_ref: (1, Cin_p)        fused BN scale/shift of the previous layer
    # y_ref     : (1, TH, W, Cout_p)   conv output tile (compute dtype)
    # st_ref    : (1, 1, 2, Cout_p)    per-tile [sum, sum_of_squares] per channel
    # xp_ref    : VMEM (TH+2, W+2, Cin_p)  zero-halo padded input tile
    # pat_ref   : VMEM (TH*W, 9*Cin_p)     im2col patches
    h = pl.program_id(1)
    nh = pl.num_programs(1)
    _, TH, W, Cin = x_body_ref.shape
    cdt = xp_ref.dtype

    def prep(v):
        # Previous layer's BatchNorm+ReLU fused into the load.  It is elementwise per
        # channel, so applying it to halo rows equals materializing the activation.
        if fuse_input_bnrelu:
            v = jnp.maximum(v.astype(jnp.float32) * sc_ref[0] + sh_ref[0], 0.0)
        return v.astype(cdt)

    # Zero ONLY the 1-px halo (not the whole scratch).  Padding must be applied AFTER
    # the fused activation, so image-boundary rows/cols are exact zeros.
    zcol = jnp.zeros((TH + 2, 1, Cin), cdt)
    xp_ref[:, 0:1, :] = zcol
    xp_ref[:, W + 1:W + 2, :] = zcol

    top = prep(x_top_ref[0, 0])
    xp_ref[0:1, 1:W + 1, :] = jnp.where(h == 0, jnp.zeros_like(top), top)[None]
    bot = prep(x_bot_ref[0, 0])
    xp_ref[TH + 1:TH + 2, 1:W + 1, :] = jnp.where(h == nh - 1,
                                                  jnp.zeros_like(bot), bot)[None]
    # TODO(synk): a manual DMA straight into xp_ref.at[1:TH+1, 1:W+1, :] (P4 pattern)
    # would remove this offset-(1,1) VMEM->VMEM interior copy; only worth it if the
    # copy shows up on the critical store slot.
    xp_ref[1:TH + 1, 1:W + 1, :] = prep(x_body_ref[0])

    # im2col: gather the 9 shifted taps into one (TH*W, 9*Cin_p) block so the whole
    # conv is a single MXU matmul with contraction K = 9*Cin_p (lane-aligned columns,
    # Cin_p is a multiple of 128).
    xp = xp_ref[...]
    for ky in range(3):
        for kx in range(3):
            t = ky * 3 + kx
            pat_ref[:, t * Cin:(t + 1) * Cin] = (
                xp[ky:ky + TH, kx:kx + W, :].reshape(TH * W, Cin))

    # Single bf16 matmul, f32 accumulation.
    acc = jnp.dot(pat_ref[...], w_ref[...], preferred_element_type=jnp.float32)

    # Per-tile BN partials (reduced globally outside the kernel).
    st_ref[0, 0, 0:1, :] = jnp.sum(acc, axis=0, keepdims=True)
    st_ref[0, 0, 1:2, :] = jnp.sum(acc * acc, axis=0, keepdims=True)

    y_ref[...] = acc.reshape(1, TH, W, acc.shape[-1]).astype(y_ref.dtype)


def _pick_h_tile(N, H, W, Cin_p, Cout_p, budget_bytes, min_steps=8):
    """Largest divisor of H whose pass-1 working set fits `budget_bytes`, preferring
    tiles small enough that the (N, H/TH) grid has >= min_steps steps to pipeline."""
    # TODO(synk): for tiny channel counts, additionally block several images per grid
    # step to amortize the ~0.35us per-step overhead.
    def vmem_use(th):
        return (th * W * 9 * Cin_p * 2              # im2col scratch (bf16)
                + (th + 2) * (W + 2) * Cin_p * 2    # padded-input scratch (bf16)
                + 2 * (th + 2) * W * Cin_p * 2      # double-buffered body + halo rows
                + 2 * th * W * Cout_p * 2           # double-buffered y output
                + 2 * 9 * Cin_p * Cout_p * 2        # double-buffered weights
                + th * W * Cout_p * 4)              # f32 matmul accumulator
    fits = [th for th in range(1, H + 1)
            if H % th == 0 and vmem_use(th) <= budget_bytes]
    if not fits:
        return 1
    deep = [th for th in fits if N * (H // th) >= min_steps]
    return max(deep) if deep else max(fits)


def _conv_pass1(x_nhwc, w2d, scale_in, shift_in, *, fuse, vmem_limit):
    N, H, W, Cin_p = x_nhwc.shape
    Cout_p = w2d.shape[1]
    th = _pick_h_tile(N, H, W, Cin_p, Cout_p, budget_bytes=int(vmem_limit * 0.6))
    nh = H // th

    kernel = functools.partial(_conv_pass1_kernel, fuse_input_bnrelu=fuse)
    y, stats = pl.pallas_call(
        kernel,
        grid=(N, nh),
        in_specs=[
            # 1-row top/bottom halos delivered as extra (index-clamped) views of x.
            pl.BlockSpec((1, 1, W, Cin_p),
                         lambda n, h: (n, jnp.maximum(h * th - 1, 0), 0, 0)),
            pl.BlockSpec((1, th, W, Cin_p), lambda n, h: (n, h, 0, 0)),
            pl.BlockSpec((1, 1, W, Cin_p),
                         lambda n, h: (n, jnp.minimum(h * th + th, H - 1), 0, 0)),
            pl.BlockSpec((9 * Cin_p, Cout_p), lambda n, h: (0, 0)),
            pl.BlockSpec((1, Cin_p), lambda n, h: (0, 0)),
            pl.BlockSpec((1, Cin_p), lambda n, h: (0, 0)),
        ],
        out_specs=[
            pl.BlockSpec((1, th, W, Cout_p), lambda n, h: (n, h, 0, 0)),
            pl.BlockSpec((1, 1, 2, Cout_p), lambda n, h: (n, h, 0, 0)),
        ],
        out_shape=[
            jax.ShapeDtypeStruct((N, H, W, Cout_p), _COMPUTE_DTYPE),
            jax.ShapeDtypeStruct((N, nh, 2, Cout_p), jnp.float32),
        ],
        scratch_shapes=[
            pltpu.VMEM((th + 2, W + 2, Cin_p), _COMPUTE_DTYPE),
            pltpu.VMEM((th * W, 9 * Cin_p), _COMPUTE_DTYPE),
        ],
        compiler_params=pltpu.CompilerParams(
            dimension_semantics=("parallel", "parallel"),
            vmem_limit_bytes=vmem_limit,
        ),
    )(x_nhwc, x_nhwc, x_nhwc, w2d, scale_in, shift_in)
    return y, stats


def _bn_affine(stats, gamma_p, beta_p, count):
    """Reduce per-tile partials to global BN scale/shift (tiny per-channel op)."""
    s = jnp.sum(stats[:, :, 0, :], axis=(0, 1))
    ss = jnp.sum(stats[:, :, 1, :], axis=(0, 1))
    mean = s / count
    # NOTE: E[x^2] - mean^2 in f32 is cancellation-prone when |mean| >> std; conv
    # outputs here are near zero-mean and var is clamped at 0 (a shifted/two-pass
    # reduction would be the fully robust fix).
    var = jnp.maximum(ss / count - mean * mean, 0.0)
    scale = gamma_p.astype(jnp.float32) * jax.lax.rsqrt(var + _EPS)
    shift = beta_p.astype(jnp.float32) - mean * scale
    return scale.reshape(1, -1), shift.reshape(1, -1)


# -----------------------------------------------------------------------------
# Pass 2 (final layer only): BatchNorm affine + ReLU, lane-dense layout.
# -----------------------------------------------------------------------------
def _bn_relu_kernel(y_ref, sc_ref, sh_ref, o_ref):
    y = y_ref[...].astype(jnp.float32)
    o_ref[...] = jnp.maximum(y * sc_ref[...] + sh_ref[...], 0.0).astype(o_ref.dtype)


def _pick_row_tile(rows, per_row_bytes, budget_bytes, min_steps=4):
    """Largest multiple-of-8 divisor of `rows` whose 4 live row-buffers
    (double-buffered input AND output) fit the budget; prefers >= min_steps steps.
    Never falls back to a tile that exceeds the budget."""
    cap = max(8, budget_bytes // per_row_bytes)
    cap = min(cap, rows)
    if rows >= 8 * min_steps:
        cap = min(cap, max(8, rows // min_steps))
    tr = (cap // 8) * 8
    while tr >= 8:
        if rows % tr == 0:
            return tr
        tr -= 8
    return 8   # caller asserts rows % 8 == 0


def _bn_relu_pass2(y2d, scale, shift, out_dtype, vmem_limit):
    R, Cp = y2d.shape
    assert R % 8 == 0, R
    per_row = 2 * Cp * y2d.dtype.itemsize + 2 * Cp * jnp.dtype(out_dtype).itemsize
    tr = _pick_row_tile(R, per_row, int(vmem_limit * 0.6))
    return pl.pallas_call(
        _bn_relu_kernel,
        grid=(R // tr,),
        in_specs=[
            pl.BlockSpec((tr, Cp), lambda i: (i, 0)),
            pl.BlockSpec((1, Cp), lambda i: (0, 0)),
            pl.BlockSpec((1, Cp), lambda i: (0, 0)),
        ],
        out_specs=pl.BlockSpec((tr, Cp), lambda i: (i, 0)),
        out_shape=jax.ShapeDtypeStruct((R, Cp), out_dtype),
        compiler_params=pltpu.CompilerParams(
            dimension_semantics=("parallel",),
            vmem_limit_bytes=vmem_limit,
        ),
    )(y2d, scale, shift)


@jax.jit
def double_conv(x_nchw, params):
    """DoubleConv forward. x_nchw: (N, Cin, H, W) -> (N, Cout, H, W)."""
    N, Cin, H, W = x_nchw.shape
    Cout = params["g1"].shape[0]
    Cin_p = _round_up(Cin, _LANES)
    Cout_p = _round_up(Cout, _LANES)
    vmem_limit = _vmem_limit_bytes()
    cnt = jnp.float32(N * H * W)

    # TODO(synk): keep activations NHWC end-to-end in the surrounding model (fuse these
    # transposes into adjacent ops) to drop two full HBM re-layout passes per block.
    x = jnp.transpose(x_nchw, (0, 2, 3, 1))                             # NCHW -> NHWC
    x = jnp.pad(x, ((0, 0), (0, 0), (0, 0), (0, Cin_p - Cin))).astype(_COMPUTE_DTYPE)

    # Zero-pad weights / affine params to the lane-padded channel counts (padded
    # channels stay exactly zero through conv, BN (gamma pad = 0) and ReLU).
    w1 = jnp.pad(params["w1"], ((0, 0), (0, 0), (0, Cin_p - Cin), (0, Cout_p - Cout)))
    w2 = jnp.pad(params["w2"], ((0, 0), (0, 0), (0, Cout_p - Cout), (0, Cout_p - Cout)))
    w1_2d = w1.reshape(9 * Cin_p, Cout_p).astype(_COMPUTE_DTYPE)
    w2_2d = w2.reshape(9 * Cout_p, Cout_p).astype(_COMPUTE_DTYPE)
    g1 = jnp.pad(params["g1"], (0, Cout_p - Cout))
    b1 = jnp.pad(params["b1"], (0, Cout_p - Cout))
    g2 = jnp.pad(params["g2"], (0, Cout_p - Cout))
    b2 = jnp.pad(params["b2"], (0, Cout_p - Cout))

    # Layer 1: conv + BN partials (no fused input activation).
    dummy = jnp.zeros((1, Cin_p), jnp.float32)
    y1, st1 = _conv_pass1(x, w1_2d, dummy, dummy, fuse=False, vmem_limit=vmem_limit)
    sc1, sh1 = _bn_affine(st1, g1, b1, cnt)

    # Layer 2: BN1+ReLU1 fused into conv2's input load (no HBM round trip of the
    # activated intermediate), conv + BN partials.
    y2, st2 = _conv_pass1(y1, w2_2d, sc1, sh1, fuse=True, vmem_limit=vmem_limit)
    sc2, sh2 = _bn_affine(st2, g2, b2, cnt)

    # Final BN2 + ReLU2 on a lane-dense (rows, Cout_p) view.
    out2d = _bn_relu_pass2(y2.reshape(N * H * W, Cout_p), sc2, sh2,
                           x_nchw.dtype, vmem_limit)
    out = out2d.reshape(N, H, W, Cout_p)[:, :, :, :Cout]
    return jnp.transpose(out, (0, 3, 1, 2))                             # back to NCHW


def _reference(x_nchw, params):
    """Pure-JAX f32 reference of the same semantics (verification only)."""
    def conv(x, w_hwio):
        return jax.lax.conv_general_dilated(
            x, w_hwio, window_strides=(1, 1), padding=((1, 1), (1, 1)),
            dimension_numbers=("NCHW", "HWIO", "NCHW"))

    def bn_relu(x, g, b):
        mean = jnp.mean(x, axis=(0, 2, 3), keepdims=True)
        var = jnp.mean((x - mean) ** 2, axis=(0, 2, 3), keepdims=True)
        y = (x - mean) / jnp.sqrt(var + _EPS)
        y = y * g.reshape(1, -1, 1, 1) + b.reshape(1, -1, 1, 1)
        return jnp.maximum(y, 0.0)

    y = bn_relu(conv(x_nchw, params["w1"]), params["g1"], params["b1"])
    y = bn_relu(conv(y, params["w2"]), params["g2"], params["b2"])
    return y


def init_params(key, in_channels, out_channels):
    k1, k2 = jax.random.split(key)
    # Conv weights stored HWIO = (3, 3, Cin, Cout); no bias (matches the module).
    w1 = 0.1 * jax.random.normal(k1, (3, 3, in_channels, out_channels), jnp.float32)
    w2 = 0.1 * jax.random.normal(k2, (3, 3, out_channels, out_channels), jnp.float32)
    # BatchNorm affine params at PyTorch default init (gamma=1, beta=0).
    g1 = jnp.ones((out_channels,), jnp.float32)
    b1 = jnp.zeros((out_channels,), jnp.float32)
    g2 = jnp.ones((out_channels,), jnp.float32)
    b2 = jnp.zeros((out_channels,), jnp.float32)
    return {"w1": w1, "g1": g1, "b1": b1, "w2": w2, "g2": g2, "b2": b2}


if __name__ == "__main__":
    key = jax.random.PRNGKey(0)
    kx, kp = jax.random.split(key)

    N, Cin, Cout, H, W = 2, 4, 8, 16, 16
    x = jax.random.normal(kx, (N, Cin, H, W), jnp.float32)   # NCHW like PyTorch
    params = init_params(kp, Cin, Cout)

    out = jax.block_until_ready(double_conv(x, params))
    ref = jax.block_until_ready(_reference(x, params))

    assert out.shape == (N, Cout, H, W), out.shape
    # bf16 MXU operands + bf16-stored intermediates => looser tolerance than f32.
    err = float(jnp.max(jnp.abs(out - ref)))
    assert jnp.allclose(out, ref, atol=1e-1, rtol=1e-1), err
    print("KERNEL_OK")
</pallas_src>

<mosaic_0001>
module attributes {stable_mosaic.version = 11 : i64} {
  func.func @_conv_pass1_kernel(%arg0: i32, %arg1: i32, %arg2: memref<1x1x16x128xbf16, #tpu.memory_space<vmem>>, %arg3: memref<1x4x16x128xbf16, #tpu.memory_space<vmem>>, %arg4: memref<1x1x16x128xbf16, #tpu.memory_space<vmem>>, %arg5: memref<1152x128xbf16, #tpu.memory_space<vmem>>, %arg6: memref<1x128xf32, #tpu.memory_space<vmem>>, %arg7: memref<1x128xf32, #tpu.memory_space<vmem>>, %arg8: memref<1x4x16x128xbf16, #tpu.memory_space<vmem>>, %arg9: memref<1x1x2x128xf32, #tpu.memory_space<vmem>>, %arg10: memref<6x18x128xbf16, #tpu.memory_space<vmem>>, %arg11: memref<64x1152xbf16, #tpu.memory_space<vmem>>) attributes {dimension_semantics = [#tpu.dimension_semantics<parallel>, #tpu.dimension_semantics<parallel>], iteration_bounds = array<i64: 2, 4>, scalar_prefetch = 0 : i64, scratch_operands = 2 : i64, tpu.core_type = #tpu.core_type<tc>, window_params = [{transform_indices = @transform_0, window_bounds = array<i64: 1, 1, 16, 128>}, {transform_indices = @transform_1, window_bounds = array<i64: 1, 4, 16, 128>}, {transform_indices = @transform_2, window_bounds = array<i64: 1, 1, 16, 128>}, {pipeline_mode = #tpu.pipeline_mode<synchronous>, transform_indices = @transform_3, window_bounds = array<i64: 1152, 128>}, {pipeline_mode = #tpu.pipeline_mode<synchronous>, transform_indices = @transform_4, window_bounds = array<i64: 1, 128>}, {pipeline_mode = #tpu.pipeline_mode<synchronous>, transform_indices = @transform_5, window_bounds = array<i64: 1, 128>}, {transform_indices = @transform_6, window_bounds = array<i64: 1, 4, 16, 128>}, {transform_indices = @transform_7, window_bounds = array<i64: 1, 1, 2, 128>}]} {
    %cst = arith.constant 0.000000e+00 : bf16
    %0 = vector.broadcast %cst : bf16 to vector<6x1x128xbf16>
    %c0 = arith.constant 0 : index
    %c0_0 = arith.constant 0 : index
    %c0_1 = arith.constant 0 : index
    %1 = vector.load %arg10[%c0, %c0_0, %c0_1] : memref<6x18x128xbf16, #tpu.memory_space<vmem>>, vector<6x1x128xbf16>
    tpu.vector_store %arg10[%c0, %c0_0, %c0_1], %0 {strides = array<i32>} : memref<6x18x128xbf16, #tpu.memory_space<vmem>>, vector<6x1x128xbf16>,
    %c0_2 = arith.constant 0 : index
    %c17 = arith.constant 17 : index
    %c0_3 = arith.constant 0 : index
    %2 = vector.load %arg10[%c0_2, %c17, %c0_3] : memref<6x18x128xbf16, #tpu.memory_space<vmem>>, vector<6x1x128xbf16>
    tpu.vector_store %arg10[%c0_2, %c17, %c0_3], %0 {strides = array<i32>} : memref<6x18x128xbf16, #tpu.memory_space<vmem>>, vector<6x1x128xbf16>,
    %c0_4 = arith.constant 0 : index
    %c0_5 = arith.constant 0 : index
    %c0_6 = arith.constant 0 : index
    %c0_7 = arith.constant 0 : index
    %3 = vector.load %arg2[%c0_4, %c0_5, %c0_6, %c0_7] : memref<1x1x16x128xbf16, #tpu.memory_space<vmem>>, vector<1x1x16x128xbf16>
    %4 = vector.shape_cast %3 : vector<1x1x16x128xbf16> to vector<16x128xbf16>
    %c0_i32 = arith.constant 0 : i32
    %5 = arith.cmpi eq, %arg1, %c0_i32 : i32
    %cst_8 = arith.constant 0.000000e+00 : bf16
    %6 = vector.broadcast %cst_8 : bf16 to vector<16x128xbf16>
    %7 = arith.select %5, %6, %4 : vector<16x128xbf16>
    %8 = vector.shape_cast %7 : vector<16x128xbf16> to vector<1x16x128xbf16>
    %c0_9 = arith.constant 0 : index
    %c1 = arith.constant 1 : index
    %c0_10 = arith.constant 0 : index
    %9 = vector.load %arg10[%c0_9, %c1, %c0_10] : memref<6x18x128xbf16, #tpu.memory_space<vmem>>, vector<1x16x128xbf16>
    tpu.vector_store %arg10[%c0_9, %c1, %c0_10], %8 {strides = array<i32>} : memref<6x18x128xbf16, #tpu.memory_space<vmem>>, vector<1x16x128xbf16>,
    %c0_11 = arith.constant 0 : index
    %c0_12 = arith.constant 0 : index
    %c0_13 = arith.constant 0 : index
    %c0_14 = arith.constant 0 : index
    %10 = vector.load %arg4[%c0_11, %c0_12, %c0_13, %c0_14] : memref<1x1x16x128xbf16, #tpu.memory_space<vmem>>, vector<1x1x16x128xbf16>
    %11 = vector.shape_cast %10 : vector<1x1x16x128xbf16> to vector<16x128xbf16>
    %c3_i32 = arith.constant 3 : i32
    %12 = arith.cmpi eq, %arg1, %c3_i32 : i32
    %cst_15 = arith.constant 0.000000e+00 : bf16
    %13 = vector.broadcast %cst_15 : bf16 to vector<16x128xbf16>
    %14 = arith.select %12, %13, %11 : vector<16x128xbf16>
    %15 = vector.shape_cast %14 : vector<16x128xbf16> to vector<1x16x128xbf16>
    %c5 = arith.constant 5 : index
    %c1_16 = arith.constant 1 : index
    %c0_17 = arith.constant 0 : index
    %16 = vector.load %arg10[%c5, %c1_16, %c0_17] : memref<6x18x128xbf16, #tpu.memory_space<vmem>>, vector<1x16x128xbf16>
    tpu.vector_store %arg10[%c5, %c1_16, %c0_17], %15 {strides = array<i32>} : memref<6x18x128xbf16, #tpu.memory_space<vmem>>, vector<1x16x128xbf16>,
    %c0_18 = arith.constant 0 : index
    %c0_19 = arith.constant 0 : index
    %c0_20 = arith.constant 0 : index
    %c0_21 = arith.constant 0 : index
    %17 = vector.load %arg3[%c0_18, %c0_19, %c0_20, %c0_21] : memref<1x4x16x128xbf16, #tpu.memory_space<vmem>>, vector<1x4x16x128xbf16>
    %18 = vector.shape_cast %17 : vector<1x4x16x128xbf16> to vector<4x16x128xbf16>
    %c1_22 = arith.constant 1 : index
    %c1_23 = arith.constant 1 : index
    %c0_24 = arith.constant 0 : index
    %19 = vector.load %arg10[%c1_22, %c1_23, %c0_24] : memref<6x18x128xbf16, #tpu.memory_space<vmem>>, vector<4x16x128xbf16>
    tpu.vector_store %arg10[%c1_22, %c1_23, %c0_24], %18 {strides = array<i32>} : memref<6x18x128xbf16, #tpu.memory_space<vmem>>, vector<4x16x128xbf16>,
    %c0_25 = arith.constant 0 : index
    %c0_26 = arith.constant 0 : index
    %c0_27 = arith.constant 0 : index
    %20 = vector.load %arg10[%c0_25, %c0_26, %c0_27] : memref<6x18x128xbf16, #tpu.memory_space<vmem>>, vector<6x18x128xbf16>
    %21 = vector.extract_strided_slice %20 {offsets = [0, 0, 0], sizes = [4, 16, 128], strides = [1, 1, 1]} : vector<6x18x128xbf16> to vector<4x16x128xbf16>
    %22 = vector.shape_cast %21 : vector<4x16x128xbf16> to vector<64x128xbf16>
    %c0_28 = arith.constant 0 : index
    %c0_29 = arith.constant 0 : index
    %23 = vector.load %arg11[%c0_28, %c0_29] : memref<64x1152xbf16, #tpu.memory_space<vmem>>, vector<64x128xbf16>
    tpu.vector_store %arg11[%c0_28, %c0_29], %22 {strides = array<i32>} : memref<64x1152xbf16, #tpu.memory_space<vmem>>, vector<64x128xbf16>,
    %24 = vector.extract_strided_slice %20 {offsets = [0, 1, 0], sizes = [4, 16, 128], strides = [1, 1, 1]} : vector<6x18x128xbf16> to vector<4x16x128xbf16>
    %25 = vector.shape_cast %24 : vector<4x16x128xbf16> to vector<64x128xbf16>
    %c0_30 = arith.constant 0 : index
    %c128 = arith.constant 128 : index
    %26 = vector.load %arg11[%c0_30, %c128] : memref<64x1152xbf16, #tpu.memory_space<vmem>>, vector<64x128xbf16>
    tpu.vector_store %arg11[%c0_30, %c128], %25 {strides = array<i32>} : memref<64x1152xbf16, #tpu.memory_space<vmem>>, vector<64x128xbf16>,
    %27 = vector.extract_strided_slice %20 {offsets = [0, 2, 0], sizes = [4, 16, 128], strides = [1, 1, 1]} : vector<6x18x128xbf16> to vector<4x16x128xbf16>
    %28 = vector.shape_cast %27 : vector<4x16x128xbf16> to vector<64x128xbf16>
    %c0_31 = arith.constant 0 : index
    %c256 = arith.constant 256 : index
    %29 = vector.load %arg11[%c0_31, %c256] : memref<64x1152xbf16, #tpu.memory_space<vmem>>, vector<64x128xbf16>
    tpu.vector_store %arg11[%c0_31, %c256], %28 {strides = array<i32>} : memref<64x1152xbf16, #tpu.memory_space<vmem>>, vector<64x128xbf16>,
    %30 = vector.extract_strided_slice %20 {offsets = [1, 0, 0], sizes = [4, 16, 128], strides = [1, 1, 1]} : vector<6x18x128xbf16> to vector<4x16x128xbf16>
    %31 = vector.shape_cast %30 : vector<4x16x128xbf16> to vector<64x128xbf16>
    %c0_32 = arith.constant 0 : index
    %c384 = arith.constant 384 : index
    %32 = vector.load %arg11[%c0_32, %c384] : memref<64x1152xbf16, #tpu.memory_space<vmem>>, vector<64x128xbf16>
    tpu.vector_store %arg11[%c0_32, %c384], %31 {strides = array<i32>} : memref<64x1152xbf16, #tpu.memory_space<vmem>>, vector<64x128xbf16>,
    %33 = vector.extract_strided_slice %20 {offsets = [1, 1, 0], sizes = [4, 16, 128], strides = [1, 1, 1]} : vector<6x18x128xbf16> to vector<4x16x128xbf16>
    %34 = vector.shape_cast %33 : vector<4x16x128xbf16> to vector<64x128xbf16>
    %c0_33 = arith.constant 0 : index
    %c512 = arith.constant 512 : index
    %35 = vector.load %arg11[%c0_33, %c512] : memref<64x1152xbf16, #tpu.memory_space<vmem>>, vector<64x128xbf16>
    tpu.vector_store %arg11[%c0_33, %c512], %34 {strides = array<i32>} : memref<64x1152xbf16, #tpu.memory_space<vmem>>, vector<64x128xbf16>,
    %36 = vector.extract_strided_slice %20 {offsets = [1, 2, 0], sizes = [4, 16, 128], strides = [1, 1, 1]} : vector<6x18x128xbf16> to vector<4x16x128xbf16>
    %37 = vector.shape_cast %36 : vector<4x16x128xbf16> to vector<64x128xbf16>
    %c0_34 = arith.constant 0 : index
    %c640 = arith.constant 640 : index
    %38 = vector.load %arg11[%c0_34, %c640] : memref<64x1152xbf16, #tpu.memory_space<vmem>>, vector<64x128xbf16>
    tpu.vector_store %arg11[%c0_34, %c640], %37 {strides = array<i32>} : memref<64x1152xbf16, #tpu.memory_space<vmem>>, vector<64x128xbf16>,
    %39 = vector.extract_strided_slice %20 {offsets = [2, 0, 0], sizes = [4, 16, 128], strides = [1, 1, 1]} : vector<6x18x128xbf16> to vector<4x16x128xbf16>
    %40 = vector.shape_cast %39 : vector<4x16x128xbf16> to vector<64x128xbf16>
    %c0_35 = arith.constant 0 : index
    %c768 = arith.constant 768 : index
    %41 = vector.load %arg11[%c0_35, %c768] : memref<64x1152xbf16, #tpu.memory_space<vmem>>, vector<64x128xbf16>
    tpu.vector_store %arg11[%c0_35, %c768], %40 {strides = array<i32>} : memref<64x1152xbf16, #tpu.memory_space<vmem>>, vector<64x128xbf16>,
    %42 = vector.extract_strided_slice %20 {offsets = [2, 1, 0], sizes = [4, 16, 128], strides = [1, 1, 1]} : vector<6x18x128xbf16> to vector<4x16x128xbf16>
    %43 = vector.shape_cast %42 : vector<4x16x128xbf16> to vector<64x128xbf16>
    %c0_36 = arith.constant 0 : index
    %c896 = arith.constant 896 : index
    %44 = vector.load %arg11[%c0_36, %c896] : memref<64x1152xbf16, #tpu.memory_space<vmem>>, vector<64x128xbf16>
    tpu.vector_store %arg11[%c0_36, %c896], %43 {strides = array<i32>} : memref<64x1152xbf16, #tpu.memory_space<vmem>>, vector<64x128xbf16>,
    %45 = vector.extract_strided_slice %20 {offsets = [2, 2, 0], sizes = [4, 16, 128], strides = [1, 1, 1]} : vector<6x18x128xbf16> to vector<4x16x128xbf16>
    %46 = vector.shape_cast %45 : vector<4x16x128xbf16> to vector<64x128xbf16>
    %c0_37 = arith.constant 0 : index
    %c1024 = arith.constant 1024 : index
    %47 = vector.load %arg11[%c0_37, %c1024] : memref<64x1152xbf16, #tpu.memory_space<vmem>>, vector<64x128xbf16>
    tpu.vector_store %arg11[%c0_37, %c1024], %46 {strides = array<i32>} : memref<64x1152xbf16, #tpu.memory_space<vmem>>, vector<64x128xbf16>,
    %c0_38 = arith.constant 0 : index
    %c0_39 = arith.constant 0 : index
    %48 = vector.load %arg11[%c0_38, %c0_39] : memref<64x1152xbf16, #tpu.memory_space<vmem>>, vector<64x1152xbf16>
    %c0_40 = arith.constant 0 : index
    %c0_41 = arith.constant 0 : index
    %49 = vector.load %arg5[%c0_40, %c0_41] : memref<1152x128xbf16, #tpu.memory_space<vmem>>, vector<1152x128xbf16>
    %cst_42 = arith.constant dense<0.000000e+00> : vector<64x128xf32>
    %50 = tpu.matmul %48, %49, %cst_42 {dimension_numbers = #tpu.dot_dimension_numbers<[1], [0], [0], [1], [0, 0, 1, 1], [], []>} : vector<64x1152xbf16>, vector<1152x128xbf16>, vector<64x128xf32> -> vector<64x128xf32>
    %cst_43 = arith.constant dense<0.000000e+00> : vector<128xf32>
    %51 = vector.multi_reduction <add>, %50, %cst_43 [0] : vector<64x128xf32> to vector<128xf32>
    %52 = vector.shape_cast %51 : vector<128xf32> to vector<1x128xf32>
    %c0_44 = arith.constant 0 : index
    %c0_45 = arith.constant 0 : index
    %c0_46 = arith.constant 0 : index
    %c0_47 = arith.constant 0 : index
    %53 = vector.load %arg9[%c0_44, %c0_45, %c0_46, %c0_47] : memref<1x1x2x128xf32, #tpu.memory_space<vmem>>, vector<1x1x1x128xf32>
    %54 = vector.shape_cast %53 : vector<1x1x1x128xf32> to vector<1x128xf32>
    %55 = vector.shape_cast %52 : vector<1x128xf32> to vector<1x1x1x128xf32>
    tpu.vector_store %arg9[%c0_44, %c0_45, %c0_46, %c0_47], %55 {strides = array<i32>} : memref<1x1x2x128xf32, #tpu.memory_space<vmem>>, vector<1x1x1x128xf32>,
    %56 = arith.mulf %50, %50 : vector<64x128xf32>
    %cst_48 = arith.constant dense<0.000000e+00> : vector<128xf32>
    %57 = vector.multi_reduction <add>, %56, %cst_48 [0] : vector<64x128xf32> to vector<128xf32>
    %58 = vector.shape_cast %57 : vector<128xf32> to vector<1x128xf32>
    %c0_49 = arith.constant 0 : index
    %c0_50 = arith.constant 0 : index
    %c1_51 = arith.constant 1 : index
    %c0_52 = arith.constant 0 : index
    %59 = vector.load %arg9[%c0_49, %c0_50, %c1_51, %c0_52] : memref<1x1x2x128xf32, #tpu.memory_space<vmem>>, vector<1x1x1x128xf32>
    %60 = vector.shape_cast %59 : vector<1x1x1x128xf32> to vector<1x128xf32>
    %61 = vector.shape_cast %58 : vector<1x128xf32> to vector<1x1x1x128xf32>
    tpu.vector_store %arg9[%c0_49, %c0_50, %c1_51, %c0_52], %61 {strides = array<i32>} : memref<1x1x2x128xf32, #tpu.memory_space<vmem>>, vector<1x1x1x128xf32>,
    %62 = vector.shape_cast %50 : vector<64x128xf32> to vector<1x4x16x128xf32>
    %63 = arith.truncf %62 : vector<1x4x16x128xf32> to vector<1x4x16x128xbf16>
    %c0_53 = arith.constant 0 : index
    %c0_54 = arith.constant 0 : index
    %c0_55 = arith.constant 0 : index
    %c0_56 = arith.constant 0 : index
    %64 = vector.load %arg8[%c0_53, %c0_54, %c0_55, %c0_56] : memref<1x4x16x128xbf16, #tpu.memory_space<vmem>>, vector<1x4x16x128xbf16>
    tpu.vector_store %arg8[%c0_53, %c0_54, %c0_55, %c0_56], %63 {strides = array<i32>} : memref<1x4x16x128xbf16, #tpu.memory_space<vmem>>, vector<1x4x16x128xbf16>,
    return
  }
  func.func @transform_0(%arg0: i32, %arg1: i32) -> (i32, i32, i32, i32) {
    %c4_i32 = arith.constant 4 : i32
    %0 = arith.muli %arg1, %c4_i32 : i32
    %c1_i32 = arith.constant 1 : i32
    %1 = arith.subi %0, %c1_i32 : i32
    %c0_i32 = arith.constant 0 : i32
    %2 = arith.maxsi %1, %c0_i32 : i32
    %c0_i32_0 = arith.constant 0 : i32
    %c0_i32_1 = arith.constant 0 : i32
    %c0_i32_2 = arith.constant 0 : i32
    return %arg0, %2, %c0_i32_0, %c0_i32_1 : i32, i32, i32, i32
  }
  func.func @transform_1(%arg0: i32, %arg1: i32) -> (i32, i32, i32, i32) {
    %c0_i32 = arith.constant 0 : i32
    %c0_i32_0 = arith.constant 0 : i32
    %c0_i32_1 = arith.constant 0 : i32
    return %arg0, %arg1, %c0_i32, %c0_i32_0 : i32, i32, i32, i32
  }
  func.func @transform_2(%arg0: i32, %arg1: i32) -> (i32, i32, i32, i32) {
    %c4_i32 = arith.constant 4 : i32
    %0 = arith.muli %arg1, %c4_i32 : i32
    %c4_i32_0 = arith.constant 4 : i32
    %1 = arith.addi %0, %c4_i32_0 : i32
    %c15_i32 = arith.constant 15 : i32
    %2 = arith.minsi %1, %c15_i32 : i32
    %c0_i32 = arith.constant 0 : i32
    %c0_i32_1 = arith.constant 0 : i32
    %c0_i32_2 = arith.constant 0 : i32
    return %arg0, %2, %c0_i32, %c0_i32_1 : i32, i32, i32, i32
  }
  func.func @transform_3(%arg0: i32, %arg1: i32) -> (i32, i32) {
    %c0_i32 = arith.constant 0 : i32
    %c0_i32_0 = arith.constant 0 : i32
    %c0_i32_1 = arith.constant 0 : i32
    return %c0_i32, %c0_i32_0 : i32, i32
  }
  func.func @transform_4(%arg0: i32, %arg1: i32) -> (i32, i32) {
    %c0_i32 = arith.constant 0 : i32
    %c0_i32_0 = arith.constant 0 : i32
    %c0_i32_1 = arith.constant 0 : i32
    return %c0_i32, %c0_i32_0 : i32, i32
  }
  func.func @transform_5(%arg0: i32, %arg1: i32) -> (i32, i32) {
    %c0_i32 = arith.constant 0 : i32
    %c0_i32_0 = arith.constant 0 : i32
    %c0_i32_1 = arith.constant 0 : i32
    return %c0_i32, %c0_i32_0 : i32, i32
  }
  func.func @transform_6(%arg0: i32, %arg1: i32) -> (i32, i32, i32, i32) {
    %c0_i32 = arith.constant 0 : i32
    %c0_i32_0 = arith.constant 0 : i32
    %c0_i32_1 = arith.constant 0 : i32
    return %arg0, %arg1, %c0_i32, %c0_i32_0 : i32, i32, i32, i32
  }
  func.func @transform_7(%arg0: i32, %arg1: i32) -> (i32, i32, i32, i32) {
    %c0_i32 = arith.constant 0 : i32
    %c0_i32_0 = arith.constant 0 : i32
    %c0_i32_1 = arith.constant 0 : i32
    return %arg0, %arg1, %c0_i32, %c0_i32_0 : i32, i32, i32, i32
  }
}

module attributes {stable_mosaic.version = 11 : i64} {
  func.func @_conv_pass1_kernel(%arg0: i32, %arg1: i32, %arg2: memref<1x1x16x128xbf16, #tpu.memory_space<vmem>>, %arg3: memref<1x4x16x128xbf16, #tpu.memory_space<vmem>>, %arg4: memref<1x1x16x128xbf16, #tpu.memory_space<vmem>>, %arg5: memref<1152x128xbf16, #tpu.memory_space<vmem>>, %arg6: memref<1x128xf32, #tpu.memory_space<vmem>>, %arg7: memref<1x128xf32, #tpu.memory_space<vmem>>, %arg8: memref<1x4x16x128xbf16, #tpu.memory_space<vmem>>, %arg9: memref<1x1x2x128xf32, #tpu.memory_space<vmem>>, %arg10: memref<6x18x128xbf16, #tpu.memory_space<vmem>>, %arg11: memref<64x1152xbf16, #tpu.memory_space<vmem>>) attributes {dimension_semantics = [#tpu.dimension_semantics<parallel>, #tpu.dimension_semantics<parallel>], iteration_bounds = array<i64: 2, 4>, scalar_prefetch = 0 : i64, scratch_operands = 2 : i64, tpu.core_type = #tpu.core_type<tc>, window_params = [{transform_indices = @transform_0, window_bounds = array<i64: 1, 1, 16, 128>}, {transform_indices = @transform_1, window_bounds = array<i64: 1, 4, 16, 128>}, {transform_indices = @transform_2, window_bounds = array<i64: 1, 1, 16, 128>}, {pipeline_mode = #tpu.pipeline_mode<synchronous>, transform_indices = @transform_3, window_bounds = array<i64: 1152, 128>}, {pipeline_mode = #tpu.pipeline_mode<synchronous>, transform_indices = @transform_4, window_bounds = array<i64: 1, 128>}, {pipeline_mode = #tpu.pipeline_mode<synchronous>, transform_indices = @transform_5, window_bounds = array<i64: 1, 128>}, {transform_indices = @transform_6, window_bounds = array<i64: 1, 4, 16, 128>}, {transform_indices = @transform_7, window_bounds = array<i64: 1, 1, 2, 128>}]} {
    %cst = arith.constant 0.000000e+00 : bf16
    %0 = vector.broadcast %cst : bf16 to vector<6x1x128xbf16>
    %c0 = arith.constant 0 : index
    %c0_0 = arith.constant 0 : index
    %c0_1 = arith.constant 0 : index
    %1 = vector.load %arg10[%c0, %c0_0, %c0_1] : memref<6x18x128xbf16, #tpu.memory_space<vmem>>, vector<6x1x128xbf16>
    tpu.vector_store %arg10[%c0, %c0_0, %c0_1], %0 {strides = array<i32>} : memref<6x18x128xbf16, #tpu.memory_space<vmem>>, vector<6x1x128xbf16>,
    %c0_2 = arith.constant 0 : index
    %c17 = arith.constant 17 : index
    %c0_3 = arith.constant 0 : index
    %2 = vector.load %arg10[%c0_2, %c17, %c0_3] : memref<6x18x128xbf16, #tpu.memory_space<vmem>>, vector<6x1x128xbf16>
    tpu.vector_store %arg10[%c0_2, %c17, %c0_3], %0 {strides = array<i32>} : memref<6x18x128xbf16, #tpu.memory_space<vmem>>, vector<6x1x128xbf16>,
    %c0_4 = arith.constant 0 : index
    %c0_5 = arith.constant 0 : index
    %c0_6 = arith.constant 0 : index
    %c0_7 = arith.constant 0 : index
    %3 = vector.load %arg2[%c0_4, %c0_5, %c0_6, %c0_7] : memref<1x1x16x128xbf16, #tpu.memory_space<vmem>>, vector<1x1x16x128xbf16>
    %4 = vector.shape_cast %3 : vector<1x1x16x128xbf16> to vector<16x128xbf16>
    %5 = arith.extf %4 : vector<16x128xbf16> to vector<16x128xf32>
    %c0_8 = arith.constant 0 : index
    %c0_9 = arith.constant 0 : index
    %6 = vector.load %arg6[%c0_8, %c0_9] : memref<1x128xf32, #tpu.memory_space<vmem>>, vector<1x128xf32>
    %7 = vector.shape_cast %6 : vector<1x128xf32> to vector<128xf32>
    %8 = vector.shape_cast %7 : vector<128xf32> to vector<1x128xf32>
    %9 = vector.broadcast %8 : vector<1x128xf32> to vector<16x128xf32>
    %10 = arith.mulf %5, %9 : vector<16x128xf32>
    %c0_10 = arith.constant 0 : index
    %c0_11 = arith.constant 0 : index
    %11 = vector.load %arg7[%c0_10, %c0_11] : memref<1x128xf32, #tpu.memory_space<vmem>>, vector<1x128xf32>
    %12 = vector.shape_cast %11 : vector<1x128xf32> to vector<128xf32>
    %13 = vector.shape_cast %12 : vector<128xf32> to vector<1x128xf32>
    %14 = vector.broadcast %13 : vector<1x128xf32> to vector<16x128xf32>
    %15 = arith.addf %10, %14 : vector<16x128xf32>
    %cst_12 = arith.constant 0.000000e+00 : f32
    %16 = vector.broadcast %cst_12 : f32 to vector<16x128xf32>
    %17 = arith.maximumf %15, %16 : vector<16x128xf32>
    %18 = arith.truncf %17 : vector<16x128xf32> to vector<16x128xbf16>
    %c0_i32 = arith.constant 0 : i32
    %19 = arith.cmpi eq, %arg1, %c0_i32 : i32
    %cst_13 = arith.constant 0.000000e+00 : bf16
    %20 = vector.broadcast %cst_13 : bf16 to vector<16x128xbf16>
    %21 = arith.select %19, %20, %18 : vector<16x128xbf16>
    %22 = vector.shape_cast %21 : vector<16x128xbf16> to vector<1x16x128xbf16>
    %c0_14 = arith.constant 0 : index
    %c1 = arith.constant 1 : index
    %c0_15 = arith.constant 0 : index
    %23 = vector.load %arg10[%c0_14, %c1, %c0_15] : memref<6x18x128xbf16, #tpu.memory_space<vmem>>, vector<1x16x128xbf16>
    tpu.vector_store %arg10[%c0_14, %c1, %c0_15], %22 {strides = array<i32>} : memref<6x18x128xbf16, #tpu.memory_space<vmem>>, vector<1x16x128xbf16>,
    %c0_16 = arith.constant 0 : index
    %c0_17 = arith.constant 0 : index
    %c0_18 = arith.constant 0 : index
    %c0_19 = arith.constant 0 : index
    %24 = vector.load %arg4[%c0_16, %c0_17, %c0_18, %c0_19] : memref<1x1x16x128xbf16, #tpu.memory_space<vmem>>, vector<1x1x16x128xbf16>
    %25 = vector.shape_cast %24 : vector<1x1x16x128xbf16> to vector<16x128xbf16>
    %26 = arith.extf %25 : vector<16x128xbf16> to vector<16x128xf32>
    %c0_20 = arith.constant 0 : index
    %c0_21 = arith.constant 0 : index
    %27 = vector.load %arg6[%c0_20, %c0_21] : memref<1x128xf32, #tpu.memory_space<vmem>>, vector<1x128xf32>
    %28 = vector.shape_cast %27 : vector<1x128xf32> to vector<128xf32>
    %29 = vector.shape_cast %28 : vector<128xf32> to vector<1x128xf32>
    %30 = vector.broadcast %29 : vector<1x128xf32> to vector<16x128xf32>
    %31 = arith.mulf %26, %30 : vector<16x128xf32>
    %c0_22 = arith.constant 0 : index
    %c0_23 = arith.constant 0 : index
    %32 = vector.load %arg7[%c0_22, %c0_23] : memref<1x128xf32, #tpu.memory_space<vmem>>, vector<1x128xf32>
    %33 = vector.shape_cast %32 : vector<1x128xf32> to vector<128xf32>
    %34 = vector.shape_cast %33 : vector<128xf32> to vector<1x128xf32>
    %35 = vector.broadcast %34 : vector<1x128xf32> to vector<16x128xf32>
    %36 = arith.addf %31, %35 : vector<16x128xf32>
    %cst_24 = arith.constant 0.000000e+00 : f32
    %37 = vector.broadcast %cst_24 : f32 to vector<16x128xf32>
    %38 = arith.maximumf %36, %37 : vector<16x128xf32>
    %39 = arith.truncf %38 : vector<16x128xf32> to vector<16x128xbf16>
    %c3_i32 = arith.constant 3 : i32
    %40 = arith.cmpi eq, %arg1, %c3_i32 : i32
    %cst_25 = arith.constant 0.000000e+00 : bf16
    %41 = vector.broadcast %cst_25 : bf16 to vector<16x128xbf16>
    %42 = arith.select %40, %41, %39 : vector<16x128xbf16>
    %43 = vector.shape_cast %42 : vector<16x128xbf16> to vector<1x16x128xbf16>
    %c5 = arith.constant 5 : index
    %c1_26 = arith.constant 1 : index
    %c0_27 = arith.constant 0 : index
    %44 = vector.load %arg10[%c5, %c1_26, %c0_27] : memref<6x18x128xbf16, #tpu.memory_space<vmem>>, vector<1x16x128xbf16>
    tpu.vector_store %arg10[%c5, %c1_26, %c0_27], %43 {strides = array<i32>} : memref<6x18x128xbf16, #tpu.memory_space<vmem>>, vector<1x16x128xbf16>,
    %c0_28 = arith.constant 0 : index
    %c0_29 = arith.constant 0 : index
    %c0_30 = arith.constant 0 : index
    %c0_31 = arith.constant 0 : index
    %45 = vector.load %arg3[%c0_28, %c0_29, %c0_30, %c0_31] : memref<1x4x16x128xbf16, #tpu.memory_space<vmem>>, vector<1x4x16x128xbf16>
    %46 = vector.shape_cast %45 : vector<1x4x16x128xbf16> to vector<4x16x128xbf16>
    %47 = arith.extf %46 : vector<4x16x128xbf16> to vector<4x16x128xf32>
    %c0_32 = arith.constant 0 : index
    %c0_33 = arith.constant 0 : index
    %48 = vector.load %arg6[%c0_32, %c0_33] : memref<1x128xf32, #tpu.memory_space<vmem>>, vector<1x128xf32>
    %49 = vector.shape_cast %48 : vector<1x128xf32> to vector<128xf32>
    %50 = vector.shape_cast %49 : vector<128xf32> to vector<1x1x128xf32>
    %51 = vector.broadcast %50 : vector<1x1x128xf32> to vector<4x16x128xf32>
    %52 = arith.mulf %47, %51 : vector<4x16x128xf32>
    %c0_34 = arith.constant 0 : index
    %c0_35 = arith.constant 0 : index
    %53 = vector.load %arg7[%c0_34, %c0_35] : memref<1x128xf32, #tpu.memory_space<vmem>>, vector<1x128xf32>
    %54 = vector.shape_cast %53 : vector<1x128xf32> to vector<128xf32>
    %55 = vector.shape_cast %54 : vector<128xf32> to vector<1x1x128xf32>
    %56 = vector.broadcast %55 : vector<1x1x128xf32> to vector<4x16x128xf32>
    %57 = arith.addf %52, %56 : vector<4x16x128xf32>
    %cst_36 = arith.constant 0.000000e+00 : f32
    %58 = vector.broadcast %cst_36 : f32 to vector<4x16x128xf32>
    %59 = arith.maximumf %57, %58 : vector<4x16x128xf32>
    %60 = arith.truncf %59 : vector<4x16x128xf32> to vector<4x16x128xbf16>
    %c1_37 = arith.constant 1 : index
    %c1_38 = arith.constant 1 : index
    %c0_39 = arith.constant 0 : index
    %61 = vector.load %arg10[%c1_37, %c1_38, %c0_39] : memref<6x18x128xbf16, #tpu.memory_space<vmem>>, vector<4x16x128xbf16>
    tpu.vector_store %arg10[%c1_37, %c1_38, %c0_39], %60 {strides = array<i32>} : memref<6x18x128xbf16, #tpu.memory_space<vmem>>, vector<4x16x128xbf16>,
    %c0_40 = arith.constant 0 : index
    %c0_41 = arith.constant 0 : index
    %c0_42 = arith.constant 0 : index
    %62 = vector.load %arg10[%c0_40, %c0_41, %c0_42] : memref<6x18x128xbf16, #tpu.memory_space<vmem>>, vector<6x18x128xbf16>
    %63 = vector.extract_strided_slice %62 {offsets = [0, 0, 0], sizes = [4, 16, 128], strides = [1, 1, 1]} : vector<6x18x128xbf16> to vector<4x16x128xbf16>
    %64 = vector.shape_cast %63 : vector<4x16x128xbf16> to vector<64x128xbf16>
    %c0_43 = arith.constant 0 : index
    %c0_44 = arith.constant 0 : index
    %65 = vector.load %arg11[%c0_43, %c0_44] : memref<64x1152xbf16, #tpu.memory_space<vmem>>, vector<64x128xbf16>
    tpu.vector_store %arg11[%c0_43, %c0_44], %64 {strides = array<i32>} : memref<64x1152xbf16, #tpu.memory_space<vmem>>, vector<64x128xbf16>,
    %66 = vector.extract_strided_slice %62 {offsets = [0, 1, 0], sizes = [4, 16, 128], strides = [1, 1, 1]} : vector<6x18x128xbf16> to vector<4x16x128xbf16>
    %67 = vector.shape_cast %66 : vector<4x16x128xbf16> to vector<64x128xbf16>
    %c0_45 = arith.constant 0 : index
    %c128 = arith.constant 128 : index
    %68 = vector.load %arg11[%c0_45, %c128] : memref<64x1152xbf16, #tpu.memory_space<vmem>>, vector<64x128xbf16>
    tpu.vector_store %arg11[%c0_45, %c128], %67 {strides = array<i32>} : memref<64x1152xbf16, #tpu.memory_space<vmem>>, vector<64x128xbf16>,
    %69 = vector.extract_strided_slice %62 {offsets = [0, 2, 0], sizes = [4, 16, 128], strides = [1, 1, 1]} : vector<6x18x128xbf16> to vector<4x16x128xbf16>
    %70 = vector.shape_cast %69 : vector<4x16x128xbf16> to vector<64x128xbf16>
    %c0_46 = arith.constant 0 : index
    %c256 = arith.constant 256 : index
    %71 = vector.load %arg11[%c0_46, %c256] : memref<64x1152xbf16, #tpu.memory_space<vmem>>, vector<64x128xbf16>
    tpu.vector_store %arg11[%c0_46, %c256], %70 {strides = array<i32>} : memref<64x1152xbf16, #tpu.memory_space<vmem>>, vector<64x128xbf16>,
    %72 = vector.extract_strided_slice %62 {offsets = [1, 0, 0], sizes = [4, 16, 128], strides = [1, 1, 1]} : vector<6x18x128xbf16> to vector<4x16x128xbf16>
    %73 = vector.shape_cast %72 : vector<4x16x128xbf16> to vector<64x128xbf16>
    %c0_47 = arith.constant 0 : index
    %c384 = arith.constant 384 : index
    %74 = vector.load %arg11[%c0_47, %c384] : memref<64x1152xbf16, #tpu.memory_space<vmem>>, vector<64x128xbf16>
    tpu.vector_store %arg11[%c0_47, %c384], %73 {strides = array<i32>} : memref<64x1152xbf16, #tpu.memory_space<vmem>>, vector<64x128xbf16>,
    %75 = vector.extract_strided_slice %62 {offsets = [1, 1, 0], sizes = [4, 16, 128], strides = [1, 1, 1]} : vector<6x18x128xbf16> to vector<4x16x128xbf16>
    %76 = vector.shape_cast %75 : vector<4x16x128xbf16> to vector<64x128xbf16>
    %c0_48 = arith.constant 0 : index
    %c512 = arith.constant 512 : index
    %77 = vector.load %arg11[%c0_48, %c512] : memref<64x1152xbf16, #tpu.memory_space<vmem>>, vector<64x128xbf16>
    tpu.vector_store %arg11[%c0_48, %c512], %76 {strides = array<i32>} : memref<64x1152xbf16, #tpu.memory_space<vmem>>, vector<64x128xbf16>,
    %78 = vector.extract_strided_slice %62 {offsets = [1, 2, 0], sizes = [4, 16, 128], strides = [1, 1, 1]} : vector<6x18x128xbf16> to vector<4x16x128xbf16>
    %79 = vector.shape_cast %78 : vector<4x16x128xbf16> to vector<64x128xbf16>
    %c0_49 = arith.constant 0 : index
    %c640 = arith.constant 640 : index
    %80 = vector.load %arg11[%c0_49, %c640] : memref<64x1152xbf16, #tpu.memory_space<vmem>>, vector<64x128xbf16>
    tpu.vector_store %arg11[%c0_49, %c640], %79 {strides = array<i32>} : memref<64x1152xbf16, #tpu.memory_space<vmem>>, vector<64x128xbf16>,
    %81 = vector.extract_strided_slice %62 {offsets = [2, 0, 0], sizes = [4, 16, 128], strides = [1, 1, 1]} : vector<6x18x128xbf16> to vector<4x16x128xbf16>
    %82 = vector.shape_cast %81 : vector<4x16x128xbf16> to vector<64x128xbf16>
    %c0_50 = arith.constant 0 : index
    %c768 = arith.constant 768 : index
    %83 = vector.load %arg11[%c0_50, %c768] : memref<64x1152xbf16, #tpu.memory_space<vmem>>, vector<64x128xbf16>
    tpu.vector_store %arg11[%c0_50, %c768], %82 {strides = array<i32>} : memref<64x1152xbf16, #tpu.memory_space<vmem>>, vector<64x128xbf16>,
    %84 = vector.extract_strided_slice %62 {offsets = [2, 1, 0], sizes = [4, 16, 128], strides = [1, 1, 1]} : vector<6x18x128xbf16> to vector<4x16x128xbf16>
    %85 = vector.shape_cast %84 : vector<4x16x128xbf16> to vector<64x128xbf16>
    %c0_51 = arith.constant 0 : index
    %c896 = arith.constant 896 : index
    %86 = vector.load %arg11[%c0_51, %c896] : memref<64x1152xbf16, #tpu.memory_space<vmem>>, vector<64x128xbf16>
    tpu.vector_store %arg11[%c0_51, %c896], %85 {strides = array<i32>} : memref<64x1152xbf16, #tpu.memory_space<vmem>>, vector<64x128xbf16>,
    %87 = vector.extract_strided_slice %62 {offsets = [2, 2, 0], sizes = [4, 16, 128], strides = [1, 1, 1]} : vector<6x18x128xbf16> to vector<4x16x128xbf16>
    %88 = vector.shape_cast %87 : vector<4x16x128xbf16> to vector<64x128xbf16>
    %c0_52 = arith.constant 0 : index
    %c1024 = arith.constant 1024 : index
    %89 = vector.load %arg11[%c0_52, %c1024] : memref<64x1152xbf16, #tpu.memory_space<vmem>>, vector<64x128xbf16>
    tpu.vector_store %arg11[%c0_52, %c1024], %88 {strides = array<i32>} : memref<64x1152xbf16, #tpu.memory_space<vmem>>, vector<64x128xbf16>,
    %c0_53 = arith.constant 0 : index
    %c0_54 = arith.constant 0 : index
    %90 = vector.load %arg11[%c0_53, %c0_54] : memref<64x1152xbf16, #tpu.memory_space<vmem>>, vector<64x1152xbf16>
    %c0_55 = arith.constant 0 : index
    %c0_56 = arith.constant 0 : index
    %91 = vector.load %arg5[%c0_55, %c0_56] : memref<1152x128xbf16, #tpu.memory_space<vmem>>, vector<1152x128xbf16>
    %cst_57 = arith.constant dense<0.000000e+00> : vector<64x128xf32>
    %92 = tpu.matmul %90, %91, %cst_57 {dimension_numbers = #tpu.dot_dimension_numbers<[1], [0], [0], [1], [0, 0, 1, 1], [], []>} : vector<64x1152xbf16>, vector<1152x128xbf16>, vector<64x128xf32> -> vector<64x128xf32>
    %cst_58 = arith.constant dense<0.000000e+00> : vector<128xf32>
    %93 = vector.multi_reduction <add>, %92, %cst_58 [0] : vector<64x128xf32> to vector<128xf32>
    %94 = vector.shape_cast %93 : vector<128xf32> to vector<1x128xf32>
    %c0_59 = arith.constant 0 : index
    %c0_60 = arith.constant 0 : index
    %c0_61 = arith.constant 0 : index
    %c0_62 = arith.constant 0 : index
    %95 = vector.load %arg9[%c0_59, %c0_60, %c0_61, %c0_62] : memref<1x1x2x128xf32, #tpu.memory_space<vmem>>, vector<1x1x1x128xf32>
    %96 = vector.shape_cast %95 : vector<1x1x1x128xf32> to vector<1x128xf32>
    %97 = vector.shape_cast %94 : vector<1x128xf32> to vector<1x1x1x128xf32>
    tpu.vector_store %arg9[%c0_59, %c0_60, %c0_61, %c0_62], %97 {strides = array<i32>} : memref<1x1x2x128xf32, #tpu.memory_space<vmem>>, vector<1x1x1x128xf32>,
    %98 = arith.mulf %92, %92 : vector<64x128xf32>
    %cst_63 = arith.constant dense<0.000000e+00> : vector<128xf32>
    %99 = vector.multi_reduction <add>, %98, %cst_63 [0] : vector<64x128xf32> to vector<128xf32>
    %100 = vector.shape_cast %99 : vector<128xf32> to vector<1x128xf32>
    %c0_64 = arith.constant 0 : index
    %c0_65 = arith.constant 0 : index
    %c1_66 = arith.constant 1 : index
    %c0_67 = arith.constant 0 : index
    %101 = vector.load %arg9[%c0_64, %c0_65, %c1_66, %c0_67] : memref<1x1x2x128xf32, #tpu.memory_space<vmem>>, vector<1x1x1x128xf32>
    %102 = vector.shape_cast %101 : vector<1x1x1x128xf32> to vector<1x128xf32>
    %103 = vector.shape_cast %100 : vector<1x128xf32> to vector<1x1x1x128xf32>
    tpu.vector_store %arg9[%c0_64, %c0_65, %c1_66, %c0_67], %103 {strides = array<i32>} : memref<1x1x2x128xf32, #tpu.memory_space<vmem>>, vector<1x1x1x128xf32>,
    %104 = vector.shape_cast %92 : vector<64x128xf32> to vector<1x4x16x128xf32>
    %105 = arith.truncf %104 : vector<1x4x16x128xf32> to vector<1x4x16x128xbf16>
    %c0_68 = arith.constant 0 : index
    %c0_69 = arith.constant 0 : index
    %c0_70 = arith.constant 0 : index
    %c0_71 = arith.constant 0 : index
    %106 = vector.load %arg8[%c0_68, %c0_69, %c0_70, %c0_71] : memref<1x4x16x128xbf16, #tpu.memory_space<vmem>>, vector<1x4x16x128xbf16>
    tpu.vector_store %arg8[%c0_68, %c0_69, %c0_70, %c0_71], %105 {strides = array<i32>} : memref<1x4x16x128xbf16, #tpu.memory_space<vmem>>, vector<1x4x16x128xbf16>,
    return
  }
  func.func @transform_0(%arg0: i32, %arg1: i32) -> (i32, i32, i32, i32) {
    %c4_i32 = arith.constant 4 : i32
    %0 = arith.muli %arg1, %c4_i32 : i32
    %c1_i32 = arith.constant 1 : i32
    %1 = arith.subi %0, %c1_i32 : i32
    %c0_i32 = arith.constant 0 : i32
    %2 = arith.maxsi %1, %c0_i32 : i32
    %c0_i32_0 = arith.constant 0 : i32
    %c0_i32_1 = arith.constant 0 : i32
    %c0_i32_2 = arith.constant 0 : i32
    return %arg0, %2, %c0_i32_0, %c0_i32_1 : i32, i32, i32, i32
  }
  func.func @transform_1(%arg0: i32, %arg1: i32) -> (i32, i32, i32, i32) {
    %c0_i32 = arith.constant 0 : i32
    %c0_i32_0 = arith.constant 0 : i32
    %c0_i32_1 = arith.constant 0 : i32
    return %arg0, %arg1, %c0_i32, %c0_i32_0 : i32, i32, i32, i32
  }
  func.func @transform_2(%arg0: i32, %arg1: i32) -> (i32, i32, i32, i32) {
    %c4_i32 = arith.constant 4 : i32
    %0 = arith.muli %arg1, %c4_i32 : i32
    %c4_i32_0 = arith.constant 4 : i32
    %1 = arith.addi %0, %c4_i32_0 : i32
    %c15_i32 = arith.constant 15 : i32
    %2 = arith.minsi %1, %c15_i32 : i32
    %c0_i32 = arith.constant 0 : i32
    %c0_i32_1 = arith.constant 0 : i32
    %c0_i32_2 = arith.constant 0 : i32
    return %arg0, %2, %c0_i32, %c0_i32_1 : i32, i32, i32, i32
  }
  func.func @transform_3(%arg0: i32, %arg1: i32) -> (i32, i32) {
    %c0_i32 = arith.constant 0 : i32
    %c0_i32_0 = arith.constant 0 : i32
    %c0_i32_1 = arith.constant 0 : i32
    return %c0_i32, %c0_i32_0 : i32, i32
  }
  func.func @transform_4(%arg0: i32, %arg1: i32) -> (i32, i32) {
    %c0_i32 = arith.constant 0 : i32
    %c0_i32_0 = arith.constant 0 : i32
    %c0_i32_1 = arith.constant 0 : i32
    return %c0_i32, %c0_i32_0 : i32, i32
  }
  func.func @transform_5(%arg0: i32, %arg1: i32) -> (i32, i32) {
    %c0_i32 = arith.constant 0 : i32
    %c0_i32_0 = arith.constant 0 : i32
    %c0_i32_1 = arith.constant 0 : i32
    return %c0_i32, %c0_i32_0 : i32, i32
  }
  func.func @transform_6(%arg0: i32, %arg1: i32) -> (i32, i32, i32, i32) {
    %c0_i32 = arith.constant 0 : i32
    %c0_i32_0 = arith.constant 0 : i32
    %c0_i32_1 = arith.constant 0 : i32
    return %arg0, %arg1, %c0_i32, %c0_i32_0 : i32, i32, i32, i32
  }
  func.func @transform_7(%arg0: i32, %arg1: i32) -> (i32, i32, i32, i32) {
    %c0_i32 = arith.constant 0 : i32
    %c0_i32_0 = arith.constant 0 : i32
    %c0_i32_1 = arith.constant 0 : i32
    return %arg0, %arg1, %c0_i32, %c0_i32_0 : i32, i32, i32, i32
  }
}

module attributes {stable_mosaic.version = 11 : i64} {
  func.func @_bn_relu_kernel(%arg0: i32, %arg1: memref<128x128xbf16, #tpu.memory_space<vmem>>, %arg2: memref<1x128xf32, #tpu.memory_space<vmem>>, %arg3: memref<1x128xf32, #tpu.memory_space<vmem>>, %arg4: memref<128x128xf32, #tpu.memory_space<vmem>>) attributes {dimension_semantics = [#tpu.dimension_semantics<parallel>], iteration_bounds = array<i64: 4>, scalar_prefetch = 0 : i64, scratch_operands = 0 : i64, tpu.core_type = #tpu.core_type<tc>, window_params = [{transform_indices = @transform_0, window_bounds = array<i64: 128, 128>}, {pipeline_mode = #tpu.pipeline_mode<synchronous>, transform_indices = @transform_1, window_bounds = array<i64: 1, 128>}, {pipeline_mode = #tpu.pipeline_mode<synchronous>, transform_indices = @transform_2, window_bounds = array<i64: 1, 128>}, {transform_indices = @transform_3, window_bounds = array<i64: 128, 128>}]} {
    %c0 = arith.constant 0 : index
    %c0_0 = arith.constant 0 : index
    %0 = vector.load %arg1[%c0, %c0_0] : memref<128x128xbf16, #tpu.memory_space<vmem>>, vector<128x128xbf16>
    %1 = arith.extf %0 : vector<128x128xbf16> to vector<128x128xf32>
    %c0_1 = arith.constant 0 : index
    %c0_2 = arith.constant 0 : index
    %2 = vector.load %arg2[%c0_1, %c0_2] : memref<1x128xf32, #tpu.memory_space<vmem>>, vector<1x128xf32>
    %3 = vector.broadcast %2 : vector<1x128xf32> to vector<128x128xf32>
    %4 = arith.mulf %1, %3 : vector<128x128xf32>
    %c0_3 = arith.constant 0 : index
    %c0_4 = arith.constant 0 : index
    %5 = vector.load %arg3[%c0_3, %c0_4] : memref<1x128xf32, #tpu.memory_space<vmem>>, vector<1x128xf32>
    %6 = vector.broadcast %5 : vector<1x128xf32> to vector<128x128xf32>
    %7 = arith.addf %4, %6 : vector<128x128xf32>
    %cst = arith.constant 0.000000e+00 : f32
    %8 = vector.broadcast %cst : f32 to vector<128x128xf32>
    %9 = arith.maximumf %7, %8 : vector<128x128xf32>
    %c0_5 = arith.constant 0 : index
    %c0_6 = arith.constant 0 : index
    %10 = vector.load %arg4[%c0_5, %c0_6] : memref<128x128xf32, #tpu.memory_space<vmem>>, vector<128x128xf32>
    tpu.vector_store %arg4[%c0_5, %c0_6], %9 {strides = array<i32>} : memref<128x128xf32, #tpu.memory_space<vmem>>, vector<128x128xf32>,
    return
  }
  func.func @transform_0(%arg0: i32) -> (i32, i32) {
    %c0_i32 = arith.constant 0 : i32
    %c0_i32_0 = arith.constant 0 : i32
    return %arg0, %c0_i32 : i32, i32
  }
  func.func @transform_1(%arg0: i32) -> (i32, i32) {
    %c0_i32 = arith.constant 0 : i32
    %c0_i32_0 = arith.constant 0 : i32
    %c0_i32_1 = arith.constant 0 : i32
    return %c0_i32, %c0_i32_0 : i32, i32
  }
  func.func @transform_2(%arg0: i32) -> (i32, i32) {
    %c0_i32 = arith.constant 0 : i32
    %c0_i32_0 = arith.constant 0 : i32
    %c0_i32_1 = arith.constant 0 : i32
    return %c0_i32, %c0_i32_0 : i32, i32
  }
  func.func @transform_3(%arg0: i32) -> (i32, i32) {
    %c0_i32 = arith.constant 0 : i32
    %c0_i32_0 = arith.constant 0 : i32
    return %arg0, %c0_i32 : i32, i32
  }
}

</mosaic_0001>

<llo_original>
// kernel: double_conv.5
$region0: #{double_conv.5}
  #allocation0 [shape = 'u32[]', space=smem, size = 0x4, offset = 0x4, fixed_abs, tag = 'smem constant byte address 0x4 - core index']
  #allocation1 [shape = 'u32[144,128]{1,0:T(1,128)}', space=vmem, size = 0x12000, scoped, tag = 'internal scratch']
  %s0 = inlined_call_operand.vmem [shape: bf16[512,128], index: 0, kind: input, shape index: {}]
  %s1 = inlined_call_operand.vmem [shape: f32[1,128], index: 1, kind: input, shape index: {}]
  %s2 = inlined_call_operand.vmem [shape: f32[1,128], index: 2, kind: input, shape index: {}]
  %s3 = inlined_call_operand.vmem [shape: f32[512,128], index: 3, kind: output, shape index: {}]
  %s4 = sld [smem:[#allocation0]]
  $region45: #{double_conv.5} parent=0
    _
  %s6 = ssub.s32 1, %s4
  %s7 = scalar_select 0, %s6, %s4
  loop: start=0, step=1, limit=6
  $region2: #{double_conv.5} parent=0 // loop_pre_header
    _
  $region3: #{double_conv.5} parent=0 // loop_header
    %s9 = sphi 0, %s13
    %p10 = scmp.ge.s32.totalorder %s9, 6
    %s19 = sphi 0, %s21
    %s22 = sphi 0, %s19
    %s23 = sphi 0, %s22
    %s39 = sphi 0, %s23
    %s43 = sphi 0, %s43
    %s45 = sphi 0, %s43
    %s46 = sphi 0, %s45
    %s60 = sphi 0, %s46
    %s64 = sphi 0, %s64
    %s66 = sphi 0, %s64
    %s67 = sphi 0, %s66
    %s81 = sphi 0, %s67
    %s87 = sphi 0, %s89
    %s90 = sphi 0, %s87
    %s91 = sphi 0, %s90
    %s107 = sphi 0, %s91
  $region4: #{double_conv.5} parent=0 // loop_header_branch
    %12 = sbr.rel (%p10) target = $region8
  $region5: #{double_conv.5} parent=0 // loop_body
    %s14 = ssub.s32 %s9, 1
    %s15 = ssub.s32 %s9, 2
    %s16 = sadd.s32 %s9, 1
    %s17 = ssub.s32 %s9, %s16
    %p18 = scmp.eq.s32.totalorder %s17, 0
    %s20 = sadd.s32 %s19, 1
    %s21 = scalar_select %p18, %s19, %s20
    %p24 = pneg %p18
    %p25 = scmp.eq.s32.totalorder %s9, 3
    %p26 = por %p24, %p25
    %p27 = scmp.ne.s32.totalorder %s19, %s22
    %p28 = scmp.eq.s32.totalorder %s9, 0
    %p29 = por %p27, %p28
    %p30 = scmp.ne.s32.totalorder %s19, %s22
    %p31 = scmp.eq.s32.totalorder %s14, 3
    %p32 = por %p30, %p31
    %p33 = scmp.ne.s32.totalorder %s22, %s23
    %p34 = scmp.eq.s32.totalorder %s14, 0
    %p35 = por %p33, %p34
    %p36 = scmp.ne.s32.totalorder %s22, %s23
    %p37 = scmp.eq.s32.totalorder %s15, 3
    %p38 = por %p36, %p37
    %p40 = scmp.ne.s32.totalorder %s23, %s39
    %p41 = scmp.eq.s32.totalorder %s15, 0
    %p42 = por %p40, %p41
    %s44 = sadd.s32 %s43, 1
    %p47 = scmp.eq.s32.totalorder %s9, 3
    %p48 = scmp.ne.s32.totalorder %s43, %s45
    %p49 = scmp.eq.s32.totalorder %s9, 0
    %p50 = por %p48, %p49
    %p51 = scmp.ne.s32.totalorder %s43, %s45
    %p52 = scmp.eq.s32.totalorder %s14, 3
    %p53 = por %p51, %p52
    %p54 = scmp.ne.s32.totalorder %s45, %s46
    %p55 = scmp.eq.s32.totalorder %s14, 0
    %p56 = por %p54, %p55
    %p57 = scmp.ne.s32.totalorder %s45, %s46
    %p58 = scmp.eq.s32.totalorder %s15, 3
    %p59 = por %p57, %p58
    %p61 = scmp.ne.s32.totalorder %s46, %s60
    %p62 = scmp.eq.s32.totalorder %s15, 0
    %p63 = por %p61, %p62
    %s65 = sadd.s32 %s64, 1
    %p68 = scmp.eq.s32.totalorder %s9, 3
    %p69 = scmp.ne.s32.totalorder %s64, %s66
    %p70 = scmp.eq.s32.totalorder %s9, 0
    %p71 = por %p69, %p70
    %p72 = scmp.ne.s32.totalorder %s64, %s66
    %p73 = scmp.eq.s32.totalorder %s14, 3
    %p74 = por %p72, %p73
    %p75 = scmp.ne.s32.totalorder %s66, %s67
    %p76 = scmp.eq.s32.totalorder %s14, 0
    %p77 = por %p75, %p76
    %p78 = scmp.ne.s32.totalorder %s66, %s67
    %p79 = scmp.eq.s32.totalorder %s15, 3
    %p80 = por %p78, %p79
    %p82 = scmp.ne.s32.totalorder %s67, %s81
    %p83 = scmp.eq.s32.totalorder %s15, 0
    %p84 = por %p82, %p83
    %s85 = ssub.s32 %s9, %s16
    %p86 = scmp.eq.s32.totalorder %s85, 0
    %s88 = sadd.s32 %s87, 1
    %s89 = scalar_select %p86, %s87, %s88
    %p92 = pneg %p86
    %p93 = scmp.eq.s32.totalorder %s9, 3
    %p94 = por %p92, %p93
    %p95 = scmp.ne.s32.totalorder %s87, %s90
    %p96 = scmp.eq.s32.totalorder %s9, 0
    %p97 = por %p95, %p96
    %p98 = scmp.ne.s32.totalorder %s87, %s90
    %p99 = scmp.eq.s32.totalorder %s14, 3
    %p100 = por %p98, %p99
    %p101 = scmp.ne.s32.totalorder %s90, %s91
    %p102 = scmp.eq.s32.totalorder %s14, 0
    %p103 = por %p101, %p102
    %p104 = scmp.ne.s32.totalorder %s90, %s91
    %p105 = scmp.eq.s32.totalorder %s15, 3
    %p106 = por %p104, %p105
    %p108 = scmp.ne.s32.totalorder %s91, %s107
    %p109 = scmp.eq.s32.totalorder %s15, 0
    %p110 = por %p108, %p109
    %p111 = scmp.le.s32.totalorder 1, %s9
    %p112 = scmp.lt.s32.totalorder %s9, 5
    %p113 = pnand %p111, %p112
    %p114 = pneg %p113
    // Predicated region
    $region9: #{double_conv.5} parent=5 // pred_check
      _
    $region10: #{double_conv.5} parent=5 // pred_check_branch
      %116 = sbr.rel (%p113) target = $region12
    $region11: #{double_conv.5} parent=5 // pred_region
      %s117 = ssub.s32 %s9, 1
      // Predicated region
      $region13: #{double_conv.5} parent=11 // pred_check
        %p118 = pneg %p56
      $region14: #{double_conv.5} parent=11 // pred_check_branch
        %120 = sbr.rel (%p118) target = $region16
      $region15: #{double_conv.5} parent=11 // pred_region
        _
      $region16: #{double_conv.5} parent=11 // pred_fallthru
        _
      // Predicated region
      $region17: #{double_conv.5} parent=11 // pred_check
        %p121 = pneg %p77
      $region18: #{double_conv.5} parent=11 // pred_check_branch
        %123 = sbr.rel (%p121) target = $region20
      $region19: #{double_conv.5} parent=11 // pred_region
        _
      $region20: #{double_conv.5} parent=11 // pred_fallthru
        _
    $region12: #{double_conv.5} parent=5 // pred_fallthru
      _
    %p124 = scmp.lt.s32.totalorder %s9, 4
    // Predicated region
    $region21: #{double_conv.5} parent=5 // pred_check
      %p125 = pneg %p124
    $region22: #{double_conv.5} parent=5 // pred_check_branch
      %127 = sbr.rel (%p125) target = $region24
    $region23: #{double_conv.5} parent=5 // pred_region
      // Predicated region
      $region25: #{double_conv.5} parent=23 // pred_check
        %p128 = pneg %p29
      $region26: #{double_conv.5} parent=23 // pred_check_branch
        %130 = sbr.rel (%p128) target = $region28
      $region27: #{double_conv.5} parent=23 // pred_region
        %s131 = smul.u32 16, %s9
        %p132 = scmp.lt.s32.totalorder %s131, 63
        %s133 = scalar_select %p132, %s131, 63
        %s134 = smul.addr %s133, 4
        %s135 = scalar_lea.vmem %s0, %s134
        %s136 = smul.u32 16, %s9
      $region28: #{double_conv.5} parent=23 // pred_fallthru
        _
    $region24: #{double_conv.5} parent=5 // pred_fallthru
      _
    %p137 = scmp.le.s32.totalorder 1, %s9
    %p138 = scmp.lt.s32.totalorder %s9, 5
    %p139 = pnand %p137, %p138
    %p140 = pneg %p139
    // Predicated region
    $region29: #{double_conv.5} parent=5 // pred_check
      _
    $region30: #{double_conv.5} parent=5 // pred_check_branch
      %142 = sbr.rel (%p139) target = $region32
    $region31: #{double_conv.5} parent=5 // pred_region
      %s143 = ssub.s32 %s9, 1
      %s144 = smul.u32 16, %s14
      %p145 = scmp.lt.s32.totalorder %s144, 63
      %s146 = scalar_select %p145, %s144, 63
      %s147 = smul.addr %s146, 4
      %s148 = scalar_lea.vmem %s0, %s147
      %p149 = pneg %p35
      %p150 = pneg %p32
      %p151 = pneg %p56
      %p152 = pneg %p53
      %p153 = pneg %p77
      %p154 = pneg %p74
      %p155 = pneg %p103
      %p156 = pneg %p100
      %s157 = smul.u32 16, %s14
      %p158 = scmp.lt.s32.totalorder %s157, 63
      %s159 = scalar_select %p158, %s157, 63
      %s160 = smul.addr %s159, 8
      %s161 = scalar_lea.vmem %s3, %s160
      %s162 = smul.u32 16, %s14
      %p163 = scmp.lt.s32.totalorder %s162, 63
      %s164 = scalar_select %p163, %s162, 63
      %s165 = smul.addr %s164, 4
      %s166 = scalar_lea.vmem %s0, %s165
      %s167 = smul.u32 16, %s14
      %s168 = smul.u32 16, %s14
      %p169 = scmp.lt.s32.totalorder %s168, 63
      %s170 = scalar_select %p169, %s168, 63
      %s171 = smul.addr %s170, 8
      %s172 = scalar_lea.vmem %s3, %s171
      %s173 = smul.u32 16, %s14
      %v174 = vld [vmem:[%s166] sm:$0xf]
      %v175 = vld [vmem:[%s166 + $0x4] sm:$0xf]
      %v176 = vld [vmem:[%s166 + $0x8] sm:$0xf]
      %v177 = vld [vmem:[%s166 + $0xc] sm:$0xf]
      %v178 = vld [vmem:[%s166 + $0x10] sm:$0xf]
      %v179 = vld [vmem:[%s166 + $0x14] sm:$0xf]
      %v180 = vld [vmem:[%s166 + $0x18] sm:$0xf]
      %v181 = vld [vmem:[%s166 + $0x1c] sm:$0xf]
      %v182 = vld [vmem:[%s166 + $0x20] sm:$0xf]
      %v183 = vld [vmem:[%s166 + $0x24] sm:$0xf]
      %v184 = vld [vmem:[%s166 + $0x28] sm:$0xf]
      %v185 = vld [vmem:[%s166 + $0x2c] sm:$0xf]
      %v186 = vld [vmem:[%s166 + $0x30] sm:$0xf]
      %v187 = vld [vmem:[%s166 + $0x34] sm:$0xf]
      %v188 = vld [vmem:[%s166 + $0x38] sm:$0xf]
      %v189 = vld [vmem:[%s166 + $0x3c] sm:$0xf]
      %v190 = vunpack.c.l.bf16 %v174
      %v191 = vunpack.c.l.bf16 %v175
      %v192 = vunpack.c.l.bf16 %v176
      %v193 = vunpack.c.l.bf16 %v177
      %v194 = vunpack.c.l.bf16 %v178
      %v195 = vunpack.c.l.bf16 %v179
      %v196 = vunpack.c.l.bf16 %v180
      %v197 = vunpack.c.l.bf16 %v181
      %v198 = vunpack.c.l.bf16 %v182
      %v199 = vunpack.c.l.bf16 %v183
      %v200 = vunpack.c.l.bf16 %v184
      %v201 = vunpack.c.l.bf16 %v185
      %v202 = vunpack.c.l.bf16 %v186
      %v203 = vunpack.c.l.bf16 %v187
      %v204 = vunpack.c.l.bf16 %v188
      %v205 = vunpack.c.l.bf16 %v189
      %v206 = vld [vmem:[%s1] sm:$0x1]
      %v208 = vlaneseq
      %v209 = vshrl.u32 %v208, 7
      %v210 = vsub.s32 0, %v209
      %v211 = vrot.slane %v206, %v210
      %v213 = vmul.f32 %v190, %v211
      %v214 = vmul.f32 %v191, %v211
      %v215 = vmul.f32 %v192, %v211
      %v216 = vmul.f32 %v193, %v211
      %v217 = vmul.f32 %v194, %v211
      %v218 = vmul.f32 %v195, %v211
      %v219 = vmul.f32 %v196, %v211
      %v220 = vmul.f32 %v197, %v211
      %v221 = vmul.f32 %v198, %v211
      %v222 = vmul.f32 %v199, %v211
      %v223 = vmul.f32 %v200, %v211
      %v224 = vmul.f32 %v201, %v211
      %v225 = vmul.f32 %v202, %v211
      %v226 = vmul.f32 %v203, %v211
      %v227 = vmul.f32 %v204, %v211
      %v228 = vmul.f32 %v205, %v211
      %v229 = vld [vmem:[%s2] sm:$0x1]
      %v231 = vlaneseq
      %v232 = vshrl.u32 %v231, 7
      %v233 = vsub.s32 0, %v232
      %v234 = vrot.slane %v229, %v233
      %v236 = vadd.f32 %v213, %v234
      %v237 = vadd.f32 %v214, %v234
      %v238 = vadd.f32 %v215, %v234
      %v239 = vadd.f32 %v216, %v234
      %v240 = vadd.f32 %v217, %v234
      %v241 = vadd.f32 %v218, %v234
      %v242 = vadd.f32 %v219, %v234
      %v243 = vadd.f32 %v220, %v234
      %v244 = vadd.f32 %v221, %v234
      %v245 = vadd.f32 %v222, %v234
      %v246 = vadd.f32 %v223, %v234
      %v247 = vadd.f32 %v224, %v234
      %v248 = vadd.f32 %v225, %v234
      %v249 = vadd.f32 %v226, %v234
      %v250 = vadd.f32 %v227, %v234
      %v251 = vadd.f32 %v228, %v234
      %v252 = vmax.f32 %v236, 0.0
      %v253 = vmax.f32 %v237, 0.0
      %v254 = vmax.f32 %v238, 0.0
      %v255 = vmax.f32 %v239, 0.0
      %v256 = vmax.f32 %v240, 0.0
      %v257 = vmax.f32 %v241, 0.0
      %v258 = vmax.f32 %v242, 0.0
      %v259 = vmax.f32 %v243, 0.0
      %v260 = vmax.f32 %v244, 0.0
      %v261 = vmax.f32 %v245, 0.0
      %v262 = vmax.f32 %v246, 0.0
      %v263 = vmax.f32 %v247, 0.0
      %v264 = vmax.f32 %v248, 0.0
      %v265 = vmax.f32 %v249, 0.0
      %v266 = vmax.f32 %v250, 0.0
      %v267 = vmax.f32 %v251, 0.0
      %268 = vst [vmem:[%s172] sm:$0xff] %v252
      %269 = vst [vmem:[%s172 + $0x8] sm:$0xff] %v253
      %270 = vst [vmem:[%s172 + $0x10] sm:$0xff] %v254
      %271 = vst [vmem:[%s172 + $0x18] sm:$0xff] %v255
      %272 = vst [vmem:[%s172 + $0x20] sm:$0xff] %v256
      %273 = vst [vmem:[%s172 + $0x28] sm:$0xff] %v257
      %274 = vst [vmem:[%s172 + $0x30] sm:$0xff] %v258
      %275 = vst [vmem:[%s172 + $0x38] sm:$0xff] %v259
      %276 = vst [vmem:[%s172 + $0x40] sm:$0xff] %v260
      %277 = vst [vmem:[%s172 + $0x48] sm:$0xff] %v261
      %278 = vst [vmem:[%s172 + $0x50] sm:$0xff] %v262
      %279 = vst [vmem:[%s172 + $0x58] sm:$0xff] %v263
      %280 = vst [vmem:[%s172 + $0x60] sm:$0xff] %v264
      %281 = vst [vmem:[%s172 + $0x68] sm:$0xff] %v265
      %282 = vst [vmem:[%s172 + $0x70] sm:$0xff] %v266
      %283 = vst [vmem:[%s172 + $0x78] sm:$0xff] %v267
      %s284 = smul.u32 16, %s14
      %p285 = scmp.lt.s32.totalorder %s284, 63
      %s286 = scalar_select %p285, %s284, 63
      %s287 = smul.addr %s286, 8
      %s288 = scalar_lea.vmem %s3, %s287
      // Predicated region
      $region33: #{double_conv.5} parent=31 // pred_check
        %p289 = pneg %p100
      $region34: #{double_conv.5} parent=31 // pred_check_branch
        %291 = sbr.rel (%p289) target = $region36
      $region35: #{double_conv.5} parent=31 // pred_region
        %s292 = smul.u32 16, %s14
      $region36: #{double_conv.5} parent=31 // pred_fallthru
        _
    $region32: #{double_conv.5} parent=5 // pred_fallthru
      _
    %p293 = scmp.le.s32.totalorder 2, %s9
    // Predicated region
    $region37: #{double_conv.5} parent=5 // pred_check
      %p294 = pneg %p293
    $region38: #{double_conv.5} parent=5 // pred_check_branch
      %296 = sbr.rel (%p294) target = $region40
    $region39: #{double_conv.5} parent=5 // pred_region
      %s297 = ssub.s32 %s9, 2
      // Predicated region
      $region41: #{double_conv.5} parent=39 // pred_check
        %p298 = pneg %p106
      $region42: #{double_conv.5} parent=39 // pred_check_branch
        %300 = sbr.rel (%p298) target = $region44
      $region43: #{double_conv.5} parent=39 // pred_region
        %s301 = smul.u32 16, %s15
        %p302 = scmp.lt.s32.totalorder %s301, 63
        %s303 = scalar_select %p302, %s301, 63
        %s304 = smul.addr %s303, 8
        %s305 = scalar_lea.vmem %s3, %s304
      $region44: #{double_conv.5} parent=39 // pred_fallthru
        _
    $region40: #{double_conv.5} parent=5 // pred_fallthru
      _
  $region6: #{double_conv.5} parent=0 // loop_footer
    %s13 = sadd.s32 1, %s9
  $region7: #{double_conv.5} parent=0 // loop_footer_branch
    %8 = sbr.rel target = $region3
  $region8: #{double_conv.5} parent=0 // loop_exit
    _

// kernel: double_conv.3
$region0: #{double_conv.3}
  #allocation0 [shape = 'u32[]', space=smem, size = 0x4, offset = 0x4, fixed_abs, tag = 'smem constant byte address 0x4 - core index']
  #allocation1 [shape = 'u32[144,128]{1,0:T(1,128)}', space=vmem, size = 0x12000, scoped, tag = 'internal scratch']
  #allocation2 [shape = 'bf16[6,18,128]{2,1,0:T(8,128)(2,1)}', space=vmem, size = 0x9000, scoped, tag = 'scratch operand']
  #allocation3 [shape = 'bf16[64,1152]{1,0:T(16,128)(2,1)}', space=vmem, size = 0x24000, scoped, tag = 'scratch operand']
  %s0 = inlined_call_operand.vmem [shape: bf16[2,16,16,128], index: 0, kind: input, shape index: {}, may-alias: {0,1,2}]
  %s1 = inlined_call_operand.vmem [shape: bf16[2,16,16,128], index: 1, kind: input, shape index: {}, may-alias: {0,1,2}]
  %s2 = inlined_call_operand.vmem [shape: bf16[2,16,16,128], index: 2, kind: input, shape index: {}, may-alias: {0,1,2}]
  %s3 = inlined_call_operand.vmem [shape: bf16[1152,128], index: 3, kind: input, shape index: {}]
  %s4 = inlined_call_operand.vmem [shape: f32[1,128], index: 4, kind: input, shape index: {}, may-alias: {4,5}]
  %s5 = inlined_call_operand.vmem [shape: f32[1,128], index: 5, kind: input, shape index: {}, may-alias: {4,5}]
  %s6 = inlined_call_operand.vmem [shape: bf16[2,16,16,128], index: 6, kind: output, shape index: {0}]
  %s7 = inlined_call_operand.vmem [shape: f32[2,4,2,128], index: 7, kind: output, shape index: {1}]
  %8 = xla_tuple %s6, %s7
  %s9 = sld [smem:[#allocation0]]
  $region65: #{double_conv.3} parent=0
    _
  %s11 = ssub.s32 1, %s9
  %s12 = scalar_select 0, %s11, %s9
  loop: start=0, step=1, limit=10
  $region2: #{double_conv.3} parent=0 // loop_pre_header
    _
  $region3: #{double_conv.3} parent=0 // loop_header
    %s14 = sphi 0, %s18
    %p15 = scmp.ge.s32.totalorder %s14, 10
    %s21 = sphi 0, %s33
    %s22 = sphi 0, %s29
    %s23 = sphi 0, %s21
    %s24 = sphi 0, %s22
    %s25 = sphi 0, %s23
    %s26 = sphi 0, %s24
    %s46 = sphi 0, %s48
    %s49 = sphi 0, %s46
    %s50 = sphi 0, %s49
    %s66 = sphi 0, %s50
    %s74 = sphi 0, %s76
    %s77 = sphi 0, %s74
    %s78 = sphi 0, %s77
    %s94 = sphi 0, %s78
    %s110 = sphi 0, %s112
    %s113 = sphi 0, %s110
    %s114 = sphi 0, %s113
    %s130 = sphi 0, %s114
    %s134 = sphi 0, %s134
    %s136 = sphi 0, %s134
    %s137 = sphi 0, %s136
    %s151 = sphi 0, %s137
    %s155 = sphi 0, %s155
    %s157 = sphi 0, %s155
    %s158 = sphi 0, %s157
    %s172 = sphi 0, %s158
    %s176 = sphi 0, %s176
    %s178 = sphi 0, %s176
    %s179 = sphi 0, %s178
    %s193 = sphi 0, %s179
    %s201 = sphi 0, %s203
    %s204 = sphi 0, %s201
    %s205 = sphi 0, %s204
    %s221 = sphi 0, %s205
    %s229 = sphi 0, %s231
    %s232 = sphi 0, %s229
    %s233 = sphi 0, %s232
    %s249 = sphi 0, %s233
  $region4: #{double_conv.3} parent=0 // loop_header_branch
    %17 = sbr.rel (%p15) target = $region8
  $region5: #{double_conv.3} parent=0 // loop_body
    %s19 = ssub.s32 %s14, 1
    %s20 = ssub.s32 %s14, 2
    %s27 = sadd.s32 1, %s22
    %p28 = scmp.ge.s32.totalorder %s27, 4
    %s29 = scalar_select %p28, 0, %s27
    %s30 = sadd.s32 1, %s21
    %s31 = scalar_select %p28, %s30, %s21
    %p32 = scmp.ge.s32.totalorder %s31, 2
    %s33 = scalar_select %p32, 0, %s31
    %s34 = smul.u32 %s22, 4
    %s35 = ssub.s32 %s34, 1
    %p36 = scmp.gt.s32.totalorder %s35, 0
    %s37 = scalar_select %p36, %s35, 0
    %s38 = smul.u32 %s29, 4
    %s39 = ssub.s32 %s38, 1
    %p40 = scmp.gt.s32.totalorder %s39, 0
    %s41 = scalar_select %p40, %s39, 0
    %s42 = ssub.s32 %s21, %s33
    %s43 = ssub.s32 %s37, %s41
    %s44 = sor.u32 %s42, %s43
    %p45 = scmp.eq.s32.totalorder %s44, 0
    %s47 = sadd.s32 %s46, 1
    %s48 = scalar_select %p45, %s46, %s47
    %p51 = pneg %p45
    %p52 = scmp.eq.s32.totalorder %s14, 7
    %p53 = por %p51, %p52
    %p54 = scmp.ne.s32.totalorder %s46, %s49
    %p55 = scmp.eq.s32.totalorder %s14, 0
    %p56 = por %p54, %p55
    %p57 = scmp.ne.s32.totalorder %s46, %s49
    %p58 = scmp.eq.s32.totalorder %s19, 7
    %p59 = por %p57, %p58
    %p60 = scmp.ne.s32.totalorder %s49, %s50
    %p61 = scmp.eq.s32.totalorder %s19, 0
    %p62 = por %p60, %p61
    %p63 = scmp.ne.s32.totalorder %s49, %s50
    %p64 = scmp.eq.s32.totalorder %s20, 7
    %p65 = por %p63, %p64
    %p67 = scmp.ne.s32.totalorder %s50, %s66
    %p68 = scmp.eq.s32.totalorder %s20, 0
    %p69 = por %p67, %p68
    %s70 = ssub.s32 %s21, %s33
    %s71 = ssub.s32 %s22, %s29
    %s72 = sor.u32 %s70, %s71
    %p73 = scmp.eq.s32.totalorder %s72, 0
    %s75 = sadd.s32 %s74, 1
    %s76 = scalar_select %p73, %s74, %s75
    %p79 = pneg %p73
    %p80 = scmp.eq.s32.totalorder %s14, 7
    %p81 = por %p79, %p80
    %p82 = scmp.ne.s32.totalorder %s74, %s77
    %p83 = scmp.eq.s32.totalorder %s14, 0
    %p84 = por %p82, %p83
    %p85 = scmp.ne.s32.totalorder %s74, %s77
    %p86 = scmp.eq.s32.totalorder %s19, 7
    %p87 = por %p85, %p86
    %p88 = scmp.ne.s32.totalorder %s77, %s78
    %p89 = scmp.eq.s32.totalorder %s19, 0
    %p90 = por %p88, %p89
    %p91 = scmp.ne.s32.totalorder %s77, %s78
    %p92 = scmp.eq.s32.totalorder %s20, 7
    %p93 = por %p91, %p92
    %p95 = scmp.ne.s32.totalorder %s78, %s94
    %p96 = scmp.eq.s32.totalorder %s20, 0
    %p97 = por %p95, %p96
    %s98 = smul.u32 %s22, 4
    %s99 = sadd.s32 %s98, 4
    %p100 = scmp.lt.s32.totalorder %s99, 15
    %s101 = scalar_select %p100, %s99, 15
    %s102 = smul.u32 %s29, 4
    %s103 = sadd.s32 %s102, 4
    %p104 = scmp.lt.s32.totalorder %s103, 15
    %s105 = scalar_select %p104, %s103, 15
    %s106 = ssub.s32 %s21, %s33
    %s107 = ssub.s32 %s101, %s105
    %s108 = sor.u32 %s106, %s107
    %p109 = scmp.eq.s32.totalorder %s108, 0
    %s111 = sadd.s32 %s110, 1
    %s112 = scalar_select %p109, %s110, %s111
    %p115 = pneg %p109
    %p116 = scmp.eq.s32.totalorder %s14, 7
    %p117 = por %p115, %p116
    %p118 = scmp.ne.s32.totalorder %s110, %s113
    %p119 = scmp.eq.s32.totalorder %s14, 0
    %p120 = por %p118, %p119
    %p121 = scmp.ne.s32.totalorder %s110, %s113
    %p122 = scmp.eq.s32.totalorder %s19, 7
    %p123 = por %p121, %p122
    %p124 = scmp.ne.s32.totalorder %s113, %s114
    %p125 = scmp.eq.s32.totalorder %s19, 0
    %p126 = por %p124, %p125
    %p127 = scmp.ne.s32.totalorder %s113, %s114
    %p128 = scmp.eq.s32.totalorder %s20, 7
    %p129 = por %p127, %p128
    %p131 = scmp.ne.s32.totalorder %s114, %s130
    %p132 = scmp.eq.s32.totalorder %s20, 0
    %p133 = por %p131, %p132
    %s135 = sadd.s32 %s134, 1
    %p138 = scmp.eq.s32.totalorder %s14, 7
    %p139 = scmp.ne.s32.totalorder %s134, %s136
    %p140 = scmp.eq.s32.totalorder %s14, 0
    %p141 = por %p139, %p140
    %p142 = scmp.ne.s32.totalorder %s134, %s136
    %p143 = scmp.eq.s32.totalorder %s19, 7
    %p144 = por %p142, %p143
    %p145 = scmp.ne.s32.totalorder %s136, %s137
    %p146 = scmp.eq.s32.totalorder %s19, 0
    %p147 = por %p145, %p146
    %p148 = scmp.ne.s32.totalorder %s136, %s137
    %p149 = scmp.eq.s32.totalorder %s20, 7
    %p150 = por %p148, %p149
    %p152 = scmp.ne.s32.totalorder %s137, %s151
    %p153 = scmp.eq.s32.totalorder %s20, 0
    %p154 = por %p152, %p153
    %s156 = sadd.s32 %s155, 1
    %p159 = scmp.eq.s32.totalorder %s14, 7
    %p160 = scmp.ne.s32.totalorder %s155, %s157
    %p161 = scmp.eq.s32.totalorder %s14, 0
    %p162 = por %p160, %p161
    %p163 = scmp.ne.s32.totalorder %s155, %s157
    %p164 = scmp.eq.s32.totalorder %s19, 7
    %p165 = por %p163, %p164
    %p166 = scmp.ne.s32.totalorder %s157, %s158
    %p167 = scmp.eq.s32.totalorder %s19, 0
    %p168 = por %p166, %p167
    %p169 = scmp.ne.s32.totalorder %s157, %s158
    %p170 = scmp.eq.s32.totalorder %s20, 7
    %p171 = por %p169, %p170
    %p173 = scmp.ne.s32.totalorder %s158, %s172
    %p174 = scmp.eq.s32.totalorder %s20, 0
    %p175 = por %p173, %p174
    %s177 = sadd.s32 %s176, 1
    %p180 = scmp.eq.s32.totalorder %s14, 7
    %p181 = scmp.ne.s32.totalorder %s176, %s178
    %p182 = scmp.eq.s32.totalorder %s14, 0
    %p183 = por %p181, %p182
    %p184 = scmp.ne.s32.totalorder %s176, %s178
    %p185 = scmp.eq.s32.totalorder %s19, 7
    %p186 = por %p184, %p185
    %p187 = scmp.ne.s32.totalorder %s178, %s179
    %p188 = scmp.eq.s32.totalorder %s19, 0
    %p189 = por %p187, %p188
    %p190 = scmp.ne.s32.totalorder %s178, %s179
    %p191 = scmp.eq.s32.totalorder %s20, 7
    %p192 = por %p190, %p191
    %p194 = scmp.ne.s32.totalorder %s179, %s193
    %p195 = scmp.eq.s32.totalorder %s20, 0
    %p196 = por %p194, %p195
    %s197 = ssub.s32 %s21, %s33
    %s198 = ssub.s32 %s22, %s29
    %s199 = sor.u32 %s197, %s198
    %p200 = scmp.eq.s32.totalorder %s199, 0
    %s202 = sadd.s32 %s201, 1
    %s203 = scalar_select %p200, %s201, %s202
    %p206 = pneg %p200
    %p207 = scmp.eq.s32.totalorder %s14, 7
    %p208 = por %p206, %p207
    %p209 = scmp.ne.s32.totalorder %s201, %s204
    %p210 = scmp.eq.s32.totalorder %s14, 0
    %p211 = por %p209, %p210
    %p212 = scmp.ne.s32.totalorder %s201, %s204
    %p213 = scmp.eq.s32.totalorder %s19, 7
    %p214 = por %p212, %p213
    %p215 = scmp.ne.s32.totalorder %s204, %s205
    %p216 = scmp.eq.s32.totalorder %s19, 0
    %p217 = por %p215, %p216
    %p218 = scmp.ne.s32.totalorder %s204, %s205
    %p219 = scmp.eq.s32.totalorder %s20, 7
    %p220 = por %p218, %p219
    %p222 = scmp.ne.s32.totalorder %s205, %s221
    %p223 = scmp.eq.s32.totalorder %s20, 0
    %p224 = por %p222, %p223
    %s225 = ssub.s32 %s21, %s33
    %s226 = ssub.s32 %s22, %s29
    %s227 = sor.u32 %s225, %s226
    %p228 = scmp.eq.s32.totalorder %s227, 0
    %s230 = sadd.s32 %s229, 1
    %s231 = scalar_select %p228, %s229, %s230
    %p234 = pneg %p228
    %p235 = scmp.eq.s32.totalorder %s14, 7
    %p236 = por %p234, %p235
    %p237 = scmp.ne.s32.totalorder %s229, %s232
    %p238 = scmp.eq.s32.totalorder %s14, 0
    %p239 = por %p237, %p238
    %p240 = scmp.ne.s32.totalorder %s229, %s232
    %p241 = scmp.eq.s32.totalorder %s19, 7
    %p242 = por %p240, %p241
    %p243 = scmp.ne.s32.totalorder %s232, %s233
    %p244 = scmp.eq.s32.totalorder %s19, 0
    %p245 = por %p243, %p244
    %p246 = scmp.ne.s32.totalorder %s232, %s233
    %p247 = scmp.eq.s32.totalorder %s20, 7
    %p248 = por %p246, %p247
    %p250 = scmp.ne.s32.totalorder %s233, %s249
    %p251 = scmp.eq.s32.totalorder %s20, 0
    %p252 = por %p250, %p251
    %p253 = scmp.le.s32.totalorder 1, %s14
    %p254 = scmp.lt.s32.totalorder %s14, 9
    %p255 = pnand %p253, %p254
    %p256 = pneg %p255
    // Predicated region
    $region9: #{double_conv.3} parent=5 // pred_check
      _
    $region10: #{double_conv.3} parent=5 // pred_check_branch
      %258 = sbr.rel (%p255) target = $region12
    $region11: #{double_conv.3} parent=5 // pred_region
      %s259 = ssub.s32 %s14, 1
      // Predicated region
      $region13: #{double_conv.3} parent=11 // pred_check
        %p260 = pneg %p147
      $region14: #{double_conv.3} parent=11 // pred_check_branch
        %262 = sbr.rel (%p260) target = $region16
      $region15: #{double_conv.3} parent=11 // pred_region
        _
      $region16: #{double_conv.3} parent=11 // pred_fallthru
        _
      // Predicated region
      $region17: #{double_conv.3} parent=11 // pred_check
        %p263 = pneg %p168
      $region18: #{double_conv.3} parent=11 // pred_check_branch
        %265 = sbr.rel (%p263) target = $region20
      $region19: #{double_conv.3} parent=11 // pred_region
        _
      $region20: #{double_conv.3} parent=11 // pred_fallthru
        _
      // Predicated region
      $region21: #{double_conv.3} parent=11 // pred_check
        %p266 = pneg %p189
      $region22: #{double_conv.3} parent=11 // pred_check_branch
        %268 = sbr.rel (%p266) target = $region24
      $region23: #{double_conv.3} parent=11 // pred_region
        _
      $region24: #{double_conv.3} parent=11 // pred_fallthru
        _
    $region12: #{double_conv.3} parent=5 // pred_fallthru
      _
    %p269 = scmp.lt.s32.totalorder %s14, 8
    // Predicated region
    $region25: #{double_conv.3} parent=5 // pred_check
      %p270 = pneg %p269
    $region26: #{double_conv.3} parent=5 // pred_check_branch
      %272 = sbr.rel (%p270) target = $region28
    $region27: #{double_conv.3} parent=5 // pred_region
      // Predicated region
      $region29: #{double_conv.3} parent=27 // pred_check
        %p273 = pneg %p56
      $region30: #{double_conv.3} parent=27 // pred_check_branch
        %275 = sbr.rel (%p273) target = $region32
      $region31: #{double_conv.3} parent=27 // pred_region
        %s276 = smul.u32 %s22, 4
        %s277 = ssub.s32 %s276, 1
        %p278 = scmp.gt.s32.totalorder %s277, 0
        %s279 = scalar_select %p278, %s277, 0
        %p280 = scmp.lt.s32.totalorder %s21, 1
        %s281 = scalar_select %p280, %s21, 1
        %p282 = scmp.lt.s32.totalorder %s279, 15
        %s283 = scalar_select %p282, %s279, 15
        %s284 = smul.addr %s283, 2
        %s285 = smul.addr %s281, 32
        %s286 = sadd.s32 %s284, %s285
        %s287 = smul.addr %s286, 4
        %s288 = scalar_lea.vmem %s0, %s287
        %s289 = smul.u32 %s22, 4
        %s290 = ssub.s32 %s289, 1
        %p291 = scmp.gt.s32.totalorder %s290, 0
        %s292 = scalar_select %p291, %s290, 0
      $region32: #{double_conv.3} parent=27 // pred_fallthru
        _
      // Predicated region
      $region33: #{double_conv.3} parent=27 // pred_check
        %p293 = pneg %p84
      $region34: #{double_conv.3} parent=27 // pred_check_branch
        %295 = sbr.rel (%p293) target = $region36
      $region35: #{double_conv.3} parent=27 // pred_region
        %s296 = smul.u32 4, %s22
        %p297 = scmp.lt.s32.totalorder %s21, 1
        %s298 = scalar_select %p297, %s21, 1
        %p299 = scmp.lt.s32.totalorder %s296, 15
        %s300 = scalar_select %p299, %s296, 15
        %s301 = smul.addr %s300, 2
        %s302 = smul.addr %s298, 32
        %s303 = sadd.s32 %s301, %s302
        %s304 = smul.addr %s303, 4
        %s305 = scalar_lea.vmem %s1, %s304
        %s306 = smul.u32 4, %s22
      $region36: #{double_conv.3} parent=27 // pred_fallthru
        _
      // Predicated region
      $region37: #{double_conv.3} parent=27 // pred_check
        %p307 = pneg %p120
      $region38: #{double_conv.3} parent=27 // pred_check_branch
        %309 = sbr.rel (%p307) target = $region40
      $region39: #{double_conv.3} parent=27 // pred_region
        %s310 = smul.u32 %s22, 4
        %s311 = sadd.s32 %s310, 4
        %p312 = scmp.lt.s32.totalorder %s311, 15
        %s313 = scalar_select %p312, %s311, 15
        %p314 = scmp.lt.s32.totalorder %s21, 1
        %s315 = scalar_select %p314, %s21, 1
        %p316 = scmp.lt.s32.totalorder %s313, 15
        %s317 = scalar_select %p316, %s313, 15
        %s318 = smul.addr %s317, 2
        %s319 = smul.addr %s315, 32
        %s320 = sadd.s32 %s318, %s319
        %s321 = smul.addr %s320, 4
        %s322 = scalar_lea.vmem %s2, %s321
        %s323 = smul.u32 %s22, 4
        %s324 = sadd.s32 %s323, 4
        %p325 = scmp.lt.s32.totalorder %s324, 15
        %s326 = scalar_select %p325, %s324, 15
      $region40: #{double_conv.3} parent=27 // pred_fallthru
        _
    $region28: #{double_conv.3} parent=5 // pred_fallthru
      _
    %p327 = scmp.le.s32.totalorder 1, %s14
    %p328 = scmp.lt.s32.totalorder %s14, 9
    %p329 = pnand %p327, %p328
    %p330 = pneg %p329
    // Predicated region
    $region41: #{double_conv.3} parent=5 // pred_check
      _
    $region42: #{double_conv.3} parent=5 // pred_check_branch
      %332 = sbr.rel (%p329) target = $region44
    $region43: #{double_conv.3} parent=5 // pred_region
      %s333 = ssub.s32 %s14, 1
      %s334 = smul.u32 %s24, 4
      %s335 = ssub.s32 %s334, 1
      %p336 = scmp.gt.s32.totalorder %s335, 0
      %s337 = scalar_select %p336, %s335, 0
      %p338 = scmp.lt.s32.totalorder %s23, 1
      %s339 = scalar_select %p338, %s23, 1
      %p340 = scmp.lt.s32.totalorder %s337, 15
      %s341 = scalar_select %p340, %s337, 15
      %s342 = smul.addr %s341, 2
      %s343 = smul.addr %s339, 32
      %s344 = sadd.s32 %s342, %s343
      %s345 = smul.addr %s344, 4
      %s346 = scalar_lea.vmem %s0, %s345
      %p347 = pneg %p62
      %p348 = pneg %p59
      %s349 = smul.u32 4, %s24
      %p350 = scmp.lt.s32.totalorder %s23, 1
      %s351 = scalar_select %p350, %s23, 1
      %p352 = scmp.lt.s32.totalorder %s349, 15
      %s353 = scalar_select %p352, %s349, 15
      %s354 = smul.addr %s353, 2
      %s355 = smul.addr %s351, 32
      %s356 = sadd.s32 %s354, %s355
      %s357 = smul.addr %s356, 4
      %s358 = scalar_lea.vmem %s1, %s357
      %p359 = pneg %p90
      %p360 = pneg %p87
      %s361 = smul.u32 %s24, 4
      %s362 = sadd.s32 %s361, 4
      %p363 = scmp.lt.s32.totalorder %s362, 15
      %s364 = scalar_select %p363, %s362, 15
      %p365 = scmp.lt.s32.totalorder %s23, 1
      %s366 = scalar_select %p365, %s23, 1
      %p367 = scmp.lt.s32.totalorder %s364, 15
      %s368 = scalar_select %p367, %s364, 15
      %s369 = smul.addr %s368, 2
      %s370 = smul.addr %s366, 32
      %s371 = sadd.s32 %s369, %s370
      %s372 = smul.addr %s371, 4
      %s373 = scalar_lea.vmem %s2, %s372
      %p374 = pneg %p126
      %p375 = pneg %p123
      %p376 = pneg %p147
      %p377 = pneg %p144
      %p378 = pneg %p168
      %p379 = pneg %p165
      %p380 = pneg %p189
      %p381 = pneg %p186
      %p382 = pneg %p217
      %p383 = pneg %p214
      %s384 = smul.u32 4, %s24
      %p385 = scmp.lt.s32.totalorder %s23, 1
      %s386 = scalar_select %p385, %s23, 1
      %p387 = scmp.lt.s32.totalorder %s384, 15
      %s388 = scalar_select %p387, %s384, 15
      %s389 = smul.addr %s388, 2
      %s390 = smul.addr %s386, 32
      %s391 = sadd.s32 %s389, %s390
      %s392 = smul.addr %s391, 4
      %s393 = scalar_lea.vmem %s6, %s392
      %p394 = pneg %p245
      %p395 = pneg %p242
      %p396 = scmp.lt.s32.totalorder %s23, 1
      %s397 = scalar_select %p396, %s23, 1
      %p398 = scmp.lt.s32.totalorder %s24, 3
      %s399 = scalar_select %p398, %s24, 3
      %s400 = smul.addr %s397, 4
      %s401 = sadd.s32 %s399, %s400
      %s402 = smul.addr %s401, 2
      %s403 = scalar_lea.vmem %s7, %s402
      %s404 = smul.u32 %s24, 4
      %s405 = ssub.s32 %s404, 1
      %p406 = scmp.gt.s32.totalorder %s405, 0
      %s407 = scalar_select %p406, %s405, 0
      %p408 = scmp.lt.s32.totalorder %s23, 1
      %s409 = scalar_select %p408, %s23, 1
      %p410 = scmp.lt.s32.totalorder %s407, 15
      %s411 = scalar_select %p410, %s407, 15
      %s412 = smul.addr %s411, 2
      %s413 = smul.addr %s409, 32
      %s414 = sadd.s32 %s412, %s413
      %s415 = smul.addr %s414, 4
      %s416 = scalar_lea.vmem %s0, %s415
      %s417 = smul.u32 %s24, 4
      %s418 = ssub.s32 %s417, 1
      %p419 = scmp.gt.s32.totalorder %s418, 0
      %s420 = scalar_select %p419, %s418, 0
      %s421 = smul.u32 4, %s24
      %p422 = scmp.lt.s32.totalorder %s23, 1
      %s423 = scalar_select %p422, %s23, 1
      %p424 = scmp.lt.s32.totalorder %s421, 15
      %s425 = scalar_select %p424, %s421, 15
      %s426 = smul.addr %s425, 2
      %s427 = smul.addr %s423, 32
      %s428 = sadd.s32 %s426, %s427
      %s429 = smul.addr %s428, 4
      %s430 = scalar_lea.vmem %s1, %s429
      %s431 = smul.u32 4, %s24
      %s432 = smul.u32 %s24, 4
      %s433 = sadd.s32 %s432, 4
      %p434 = scmp.lt.s32.totalorder %s433, 15
      %s435 = scalar_select %p434, %s433, 15
      %p436 = scmp.lt.s32.totalorder %s23, 1
      %s437 = scalar_select %p436, %s23, 1
      %p438 = scmp.lt.s32.totalorder %s435, 15
      %s439 = scalar_select %p438, %s435, 15
      %s440 = smul.addr %s439, 2
      %s441 = smul.addr %s437, 32
      %s442 = sadd.s32 %s440, %s441
      %s443 = smul.addr %s442, 4
      %s444 = scalar_lea.vmem %s2, %s443
      %s445 = smul.u32 %s24, 4
      %s446 = sadd.s32 %s445, 4
      %p447 = scmp.lt.s32.totalorder %s446, 15
      %s448 = scalar_select %p447, %s446, 15
      %s449 = smul.u32 4, %s24
      %p450 = scmp.lt.s32.totalorder %s23, 1
      %s451 = scalar_select %p450, %s23, 1
      %p452 = scmp.lt.s32.totalorder %s449, 15
      %s453 = scalar_select %p452, %s449, 15
      %s454 = smul.addr %s453, 2
      %s455 = smul.addr %s451, 32
      %s456 = sadd.s32 %s454, %s455
      %s457 = smul.addr %s456, 4
      %s458 = scalar_lea.vmem %s6, %s457
      %s459 = smul.u32 4, %s24
      %p460 = scmp.lt.s32.totalorder %s23, 1
      %s461 = scalar_select %p460, %s23, 1
      %p462 = scmp.lt.s32.totalorder %s24, 3
      %s463 = scalar_select %p462, %s24, 3
      %s464 = smul.addr %s461, 4
      %s465 = sadd.s32 %s463, %s464
      %s466 = smul.addr %s465, 2
      %s467 = scalar_lea.vmem %s7, %s466
      %vm469 = vcmask 1040384
      %vm470 = vsmask.f32 256
      %vm471 = vmand %vm469, %vm470
      %v472 = vld [vmem:[#allocation2] sm:$0x1]
      %v473 = vsel %vm471, 0, %v472
      %474 = vst [vmem:[#allocation2] sm:$0x1] %v473
      %v475 = vld [vmem:[#allocation2 + $0xc] sm:$0x1]
      %v476 = vsel %vm471, 0, %v475
      %477 = vst [vmem:[#allocation2 + $0xc] sm:$0x1] %v476
      %v478 = vld [vmem:[#allocation2 + $0x18] sm:$0x1]
      %v479 = vsel %vm471, 0, %v478
      %480 = vst [vmem:[#allocation2 + $0x18] sm:$0x1] %v479
      %v481 = vld [vmem:[#allocation2 + $0x24] sm:$0x1]
      %v482 = vsel %vm471, 0, %v481
      %483 = vst [vmem:[#allocation2 + $0x24] sm:$0x1] %v482
      %v484 = vld [vmem:[#allocation2 + $0x30] sm:$0x1]
      %v485 = vsel %vm471, 0, %v484
      %486 = vst [vmem:[#allocation2 + $0x30] sm:$0x1] %v485
      %v487 = vld [vmem:[#allocation2 + $0x3c] sm:$0x1]
      %v488 = vsel %vm471, 0, %v487
      %489 = vst [vmem:[#allocation2 + $0x3c] sm:$0x1] %v488
      %vm490 = vsmask.f32 7938
      %vm491 = vmand %vm469, %vm490
      %v492 = vld [vmem:[#allocation2 + $0x8] sm:$0x1]
      %v493 = vsel %vm491, 0, %v492
      %494 = vst [vmem:[#allocation2 + $0x8] sm:$0x1] %v493
      %v495 = vld [vmem:[#allocation2 + $0x14] sm:$0x1]
      %v496 = vsel %vm491, 0, %v495
      %497 = vst [vmem:[#allocation2 + $0x14] sm:$0x1] %v496
      %v498 = vld [vmem:[#allocation2 + $0x20] sm:$0x1]
      %v499 = vsel %vm491, 0, %v498
      %500 = vst [vmem:[#allocation2 + $0x20] sm:$0x1] %v499
      %v501 = vld [vmem:[#allocation2 + $0x2c] sm:$0x1]
      %v502 = vsel %vm491, 0, %v501
      %503 = vst [vmem:[#allocation2 + $0x2c] sm:$0x1] %v502
      %v504 = vld [vmem:[#allocation2 + $0x38] sm:$0x1]
      %v505 = vsel %vm491, 0, %v504
      %506 = vst [vmem:[#allocation2 + $0x38] sm:$0x1] %v505
      %v507 = vld [vmem:[#allocation2 + $0x44] sm:$0x1]
      %v508 = vsel %vm491, 0, %v507
      %509 = vst [vmem:[#allocation2 + $0x44] sm:$0x1] %v508
      %v510 = vld [vmem:[%s416] sm:$0xf]
      %v511 = vld [vmem:[%s416 + $0x4] sm:$0xf]
      %p512 = scmp.eq.s32.totalorder %s24, 0
      %s513 = scalar_select %p512, 1, 0
      %v514 = vstv %s513
      %vm515 = vcmp.eq.s32.totalorder %v514, 1
      %v516 = vsel %vm515, 0, %v510
      %v517 = vsel %vm515, 0, %v511
      %vm518 = vsmask.f32 4368
      %vm519 = vmor %vm470, %vm518
      %v521 = vshrl.u32 %v516, 16
      %v523 = vrot.slane %v521, 7
      %v524 = vshll.u32 %v516, 16
      %v526 = vor.u32 %v523, %v524
      %v527 = vrot.slane %v523, 4
      %v529 = vshrl.u32 %v517, 16
      %v531 = vrot.slane %v529, 7
      %v532 = vshll.u32 %v517, 16
      %v534 = vor.u32 %v531, %v532
      %v535 = vsel %vm519, %v527, %v534
      %v536 = vrot.slane %v531, 4
      %vm540 = vcmask 1043456
      %vm541 = vmand %vm540, %vm490
      %v542 = vld [vmem:[#allocation2] sm:$0xf]
      %v543 = vsel %vm541, %v526, %v542
      %544 = vst [vmem:[#allocation2] sm:$0xf] %v543
      %545 = vst [vmem:[#allocation2 + $0x4] sm:$0xf] %v535
      %v546 = vld [vmem:[#allocation2 + $0x8] sm:$0x1]
      %v547 = vsel %vm471, %v536, %v546
      %548 = vst [vmem:[#allocation2 + $0x8] sm:$0x1] %v547
      %v549 = vld [vmem:[%s444] sm:$0xf]
      %v550 = vld [vmem:[%s444 + $0x4] sm:$0xf]
      %p551 = scmp.eq.s32.totalorder %s24, 3
      %s552 = scalar_select %p551, 1, 0
      %v553 = vstv %s552
      %vm554 = vcmp.eq.s32.totalorder %v553, 1
      %v555 = vsel %vm554, 0, %v549
      %v556 = vsel %vm554, 0, %v550
      %v558 = vshrl.u32 %v555, 16
      %v560 = vrot.slane %v558, 7
      %v561 = vshll.u32 %v555, 16
      %v563 = vor.u32 %v560, %v561
      %v564 = vrot.slane %v560, 4
      %v566 = vshrl.u32 %v556, 16
      %v568 = vrot.slane %v566, 7
      %v569 = vshll.u32 %v556, 16
      %v571 = vor.u32 %v568, %v569
      %v572 = vsel %vm519, %v564, %v571
      %v573 = vrot.slane %v568, 4
      %s577 = scalar_lea.vmem [#allocation2], 60
      %v578 = vld [vmem:[%s577] sm:$0xf]
      %v579 = vsel %vm541, %v563, %v578
      %580 = vst [vmem:[%s577] sm:$0xf] %v579
      %581 = vst [vmem:[%s577 + $0x4] sm:$0xf] %v572
      %v582 = vld [vmem:[%s577 + $0x8] sm:$0x1]
      %v583 = vsel %vm471, %v573, %v582
      %584 = vst [vmem:[%s577 + $0x8] sm:$0x1] %v583
      %v585 = vld [vmem:[%s430] sm:$0xf]
      %v586 = vld [vmem:[%s430 + $0x4] sm:$0xf]
      %v587 = vld [vmem:[%s430 + $0x8] sm:$0xf]
      %v588 = vld [vmem:[%s430 + $0xc] sm:$0xf]
      %v589 = vld [vmem:[%s430 + $0x10] sm:$0xf]
      %v590 = vld [vmem:[%s430 + $0x14] sm:$0xf]
      %v591 = vld [vmem:[%s430 + $0x18] sm:$0xf]
      %v592 = vld [vmem:[%s430 + $0x1c] sm:$0xf]
      %v594 = vshrl.u32 %v585, 16
      %v596 = vrot.slane %v594, 7
      %v597 = vshll.u32 %v585, 16
      %v599 = vor.u32 %v596, %v597
      %v600 = vrot.slane %v596, 4
      %v602 = vshrl.u32 %v586, 16
      %v604 = vrot.slane %v602, 7
      %v605 = vshll.u32 %v586, 16
      %v607 = vor.u32 %v604, %v605
      %v608 = vsel %vm519, %v600, %v607
      %v609 = vrot.slane %v604, 4
      %v611 = vshrl.u32 %v587, 16
      %v613 = vrot.slane %v611, 7
      %v614 = vshll.u32 %v587, 16
      %v616 = vor.u32 %v613, %v614
      %v617 = vrot.slane %v613, 4
      %v619 = vshrl.u32 %v588, 16
      %v621 = vrot.slane %v619, 7
      %v622 = vshll.u32 %v588, 16
      %v624 = vor.u32 %v621, %v622
      %v625 = vsel %vm519, %v617, %v624
      %v626 = vrot.slane %v621, 4
      %v628 = vshrl.u32 %v589, 16
      %v630 = vrot.slane %v628, 7
      %v631 = vshll.u32 %v589, 16
      %v633 = vor.u32 %v630, %v631
      %v634 = vrot.slane %v630, 4
      %v636 = vshrl.u32 %v590, 16
      %v638 = vrot.slane %v636, 7
      %v639 = vshll.u32 %v590, 16
      %v641 = vor.u32 %v638, %v639
      %v642 = vsel %vm519, %v634, %v641
      %v643 = vrot.slane %v638, 4
      %v645 = vshrl.u32 %v591, 16
      %v647 = vrot.slane %v645, 7
      %v648 = vshll.u32 %v591, 16
      %v650 = vor.u32 %v647, %v648
      %v651 = vrot.slane %v647, 4
      %v653 = vshrl.u32 %v592, 16
      %v655 = vrot.slane %v653, 7
      %v656 = vshll.u32 %v592, 16
      %v658 = vor.u32 %v655, %v656
      %v659 = vsel %vm519, %v651, %v658
      %v660 = vrot.slane %v655, 4
      %s673 = scalar_lea.vmem [#allocation2], 12
      %v674 = vld [vmem:[%s673] sm:$0xf]
      %v675 = vsel %vm541, %v599, %v674
      %676 = vst [vmem:[%s673] sm:$0xf] %v675
      %677 = vst [vmem:[%s673 + $0x4] sm:$0xf] %v608
      %v678 = vld [vmem:[%s673 + $0x8] sm:$0x1]
      %v679 = vsel %vm471, %v609, %v678
      %680 = vst [vmem:[%s673 + $0x8] sm:$0x1] %v679
      %v681 = vld [vmem:[%s673 + $0xc] sm:$0xf]
      %v682 = vsel %vm541, %v616, %v681
      %683 = vst [vmem:[%s673 + $0xc] sm:$0xf] %v682
      %684 = vst [vmem:[%s673 + $0x10] sm:$0xf] %v625
      %v685 = vld [vmem:[%s673 + $0x14] sm:$0x1]
      %v686 = vsel %vm471, %v626, %v685
      %687 = vst [vmem:[%s673 + $0x14] sm:$0x1] %v686
      %v688 = vld [vmem:[%s673 + $0x18] sm:$0xf]
      %v689 = vsel %vm541, %v633, %v688
      %690 = vst [vmem:[%s673 + $0x18] sm:$0xf] %v689
      %691 = vst [vmem:[%s673 + $0x1c] sm:$0xf] %v642
      %v692 = vld [vmem:[%s673 + $0x20] sm:$0x1]
      %v693 = vsel %vm471, %v643, %v692
      %694 = vst [vmem:[%s673 + $0x20] sm:$0x1] %v693
      %v695 = vld [vmem:[%s673 + $0x24] sm:$0xf]
      %v696 = vsel %vm541, %v650, %v695
      %697 = vst [vmem:[%s673 + $0x24] sm:$0xf] %v696
      %698 = vst [vmem:[%s673 + $0x28] sm:$0xf] %v659
      %v699 = vld [vmem:[%s673 + $0x2c] sm:$0x1]
      %v700 = vsel %vm471, %v660, %v699
      %701 = vst [vmem:[%s673 + $0x2c] sm:$0x1] %v700
      %v702 = vld [vmem:[#allocation2] sm:$0xf]
      %v703 = vld [vmem:[#allocation2 + $0x4] sm:$0xf]
      %v704 = vld [vmem:[#allocation2 + $0x8] sm:$0x1]
      %v705 = vld [vmem:[#allocation2 + $0xc] sm:$0xf]
      %v706 = vld [vmem:[#allocation2 + $0x10] sm:$0xf]
      %v707 = vld [vmem:[#allocation2 + $0x14] sm:$0x1]
      %v708 = vld [vmem:[#allocation2 + $0x18] sm:$0xf]
      %v709 = vld [vmem:[#allocation2 + $0x1c] sm:$0xf]
      %v710 = vld [vmem:[#allocation2 + $0x20] sm:$0x1]
      %v711 = vld [vmem:[#allocation2 + $0x24] sm:$0xf]
      %v712 = vld [vmem:[#allocation2 + $0x28] sm:$0xf]
      %v713 = vld [vmem:[#allocation2 + $0x2c] sm:$0x1]
      %v714 = vld [vmem:[#allocation2 + $0x30] sm:$0xf]
      %v715 = vld [vmem:[#allocation2 + $0x34] sm:$0xf]
      %v716 = vld [vmem:[#allocation2 + $0x38] sm:$0x1]
      %v717 = vld [vmem:[#allocation2 + $0x3c] sm:$0xf]
      %v718 = vld [vmem:[#allocation2 + $0x40] sm:$0xf]
      %v719 = vld [vmem:[#allocation2 + $0x44] sm:$0x1]
      %v728 = vunpack.c.l.b16 %v702
      %v729 = vunpack.c.l.b16 %v703
      %v730 = vunpack.c.l.b16 %v705
      %v731 = vunpack.c.l.b16 %v706
      %v732 = vunpack.c.l.b16 %v708
      %v733 = vunpack.c.l.b16 %v709
      %v734 = vunpack.c.l.b16 %v711
      %v735 = vunpack.c.l.b16 %v712
      %v736 = vpack.c.b16 %v729, %v728
      %v737 = vpack.c.b16 %v731, %v730
      %v738 = vpack.c.b16 %v733, %v732
      %v739 = vpack.c.b16 %v735, %v734
      %744 = vst [vmem:[#allocation3] sm:$0xff] %v736
      %745 = vst [vmem:[#allocation3 + $0x48] sm:$0xff] %v737
      %746 = vst [vmem:[#allocation3 + $0x90] sm:$0xff] %v738
      %747 = vst [vmem:[#allocation3 + $0xd8] sm:$0xff] %v739
      %vm748 = vsmask.f32 3328
      %vm749 = vsmask.f32 7440
      %vm750 = vmor %vm748, %vm749
      %v752 = vshrl.u32 %v702, 16
      %v754 = vrot.slane %v752, 4
      %v755 = vshll.u32 %v702, 16
      %v757 = vrot.slane %v755, 5
      %v758 = vor.u32 %v754, %v757
      %v759 = vrot.slane %v758, 4
      %v761 = vshll.u32 %v703, 16
      %v763 = vrot.slane %v761, 5
      %v764 = vsel %vm750, %v759, %v763
      %v765 = vshrl.u32 %v703, 16
      %v767 = vrot.slane %v765, 4
      %v768 = vor.u32 %v767, %v763
      %v769 = vrot.slane %v768, 4
      %v771 = vshll.u32 %v704, 16
      %v773 = vrot.slane %v771, 5
      %v774 = vsel %vm750, %v769, %v773
      %v776 = vshrl.u32 %v705, 16
      %v778 = vrot.slane %v776, 4
      %v779 = vshll.u32 %v705, 16
      %v781 = vrot.slane %v779, 5
      %v782 = vor.u32 %v778, %v781
      %v783 = vrot.slane %v782, 4
      %v785 = vshll.u32 %v706, 16
      %v787 = vrot.slane %v785, 5
      %v788 = vsel %vm750, %v783, %v787
      %v789 = vshrl.u32 %v706, 16
      %v791 = vrot.slane %v789, 4
      %v792 = vor.u32 %v791, %v787
      %v793 = vrot.slane %v792, 4
      %v795 = vshll.u32 %v707, 16
      %v797 = vrot.slane %v795, 5
      %v798 = vsel %vm750, %v793, %v797
      %v800 = vshrl.u32 %v708, 16
      %v802 = vrot.slane %v800, 4
      %v803 = vshll.u32 %v708, 16
      %v805 = vrot.slane %v803, 5
      %v806 = vor.u32 %v802, %v805
      %v807 = vrot.slane %v806, 4
      %v809 = vshll.u32 %v709, 16
      %v811 = vrot.slane %v809, 5
      %v812 = vsel %vm750, %v807, %v811
      %v813 = vshrl.u32 %v709, 16
      %v815 = vrot.slane %v813, 4
      %v816 = vor.u32 %v815, %v811
      %v817 = vrot.slane %v816, 4
      %v819 = vshll.u32 %v710, 16
      %v821 = vrot.slane %v819, 5
      %v822 = vsel %vm750, %v817, %v821
      %v824 = vshrl.u32 %v711, 16
      %v826 = vrot.slane %v824, 4
      %v827 = vshll.u32 %v711, 16
      %v829 = vrot.slane %v827, 5
      %v830 = vor.u32 %v826, %v829
      %v831 = vrot.slane %v830, 4
      %v833 = vshll.u32 %v712, 16
      %v835 = vrot.slane %v833, 5
      %v836 = vsel %vm750, %v831, %v835
      %v837 = vshrl.u32 %v712, 16
      %v839 = vrot.slane %v837, 4
      %v840 = vor.u32 %v839, %v835
      %v841 = vrot.slane %v840, 4
      %v843 = vshll.u32 %v713, 16
      %v845 = vrot.slane %v843, 5
      %v846 = vsel %vm750, %v841, %v845
      %v847 = vunpack.c.l.b16 %v764
      %v848 = vunpack.c.l.b16 %v774
      %v849 = vunpack.c.l.b16 %v788
      %v850 = vunpack.c.l.b16 %v798
      %v851 = vunpack.c.l.b16 %v812
      %v852 = vunpack.c.l.b16 %v822
      %v853 = vunpack.c.l.b16 %v836
      %v854 = vunpack.c.l.b16 %v846
      %v855 = vpack.c.b16 %v848, %v847
      %v856 = vpack.c.b16 %v850, %v849
      %v857 = vpack.c.b16 %v852, %v851
      %v858 = vpack.c.b16 %v854, %v853
      %863 = vst [vmem:[#allocation3 + $0x8] sm:$0xff] %v855
      %864 = vst [vmem:[#allocation3 + $0x50] sm:$0xff] %v856
      %865 = vst [vmem:[#allocation3 + $0x98] sm:$0xff] %v857
      %866 = vst [vmem:[#allocation3 + $0xe0] sm:$0xff] %v858
      %vm871 = vcmask 1042432
      %vm872 = vcmask 1046532
      %vm873 = vmor %vm871, %vm872
      %v874 = vrot.slane %v702, 5
      %v875 = vrot.slane %v874, 4
      %v876 = vrot.slane %v703, 5
      %v877 = vsel %vm873, %v875, %v876
      %v878 = vrot.slane %v876, 4
      %v879 = vrot.slane %v704, 5
      %v880 = vsel %vm873, %v878, %v879
      %v881 = vrot.slane %v705, 5
      %v882 = vrot.slane %v881, 4
      %v883 = vrot.slane %v706, 5
      %v884 = vsel %vm873, %v882, %v883
      %v885 = vrot.slane %v883, 4
      %v886 = vrot.slane %v707, 5
      %v887 = vsel %vm873, %v885, %v886
      %v888 = vrot.slane %v708, 5
      %v889 = vrot.slane %v888, 4
      %v890 = vrot.slane %v709, 5
      %v891 = vsel %vm873, %v889, %v890
      %v892 = vrot.slane %v890, 4
      %v893 = vrot.slane %v710, 5
      %v894 = vsel %vm873, %v892, %v893
      %v895 = vrot.slane %v711, 5
      %v896 = vrot.slane %v895, 4
      %v897 = vrot.slane %v712, 5
      %v898 = vsel %vm873, %v896, %v897
      %v899 = vrot.slane %v897, 4
      %v900 = vrot.slane %v713, 5
      %v901 = vsel %vm873, %v899, %v900
      %v902 = vunpack.c.l.b16 %v877
      %v903 = vunpack.c.l.b16 %v880
      %v904 = vunpack.c.l.b16 %v884
      %v905 = vunpack.c.l.b16 %v887
      %v906 = vunpack.c.l.b16 %v891
      %v907 = vunpack.c.l.b16 %v894
      %v908 = vunpack.c.l.b16 %v898
      %v909 = vunpack.c.l.b16 %v901
      %v910 = vpack.c.b16 %v903, %v902
      %v911 = vpack.c.b16 %v905, %v904
      %v912 = vpack.c.b16 %v907, %v906
      %v913 = vpack.c.b16 %v909, %v908
      %918 = vst [vmem:[#allocation3 + $0x10] sm:$0xff] %v910
      %919 = vst [vmem:[#allocation3 + $0x58] sm:$0xff] %v911
      %920 = vst [vmem:[#allocation3 + $0xa0] sm:$0xff] %v912
      %921 = vst [vmem:[#allocation3 + $0xe8] sm:$0xff] %v913
      %v924 = vunpack.c.l.b16 %v714
      %v925 = vunpack.c.l.b16 %v715
      %v926 = vpack.c.b16 %v925, %v924
      %928 = vst [vmem:[#allocation3 + $0x18] sm:$0xff] %v737
      %929 = vst [vmem:[#allocation3 + $0x60] sm:$0xff] %v738
      %930 = vst [vmem:[#allocation3 + $0xa8] sm:$0xff] %v739
      %931 = vst [vmem:[#allocation3 + $0xf0] sm:$0xff] %v926
      %v933 = vshrl.u32 %v714, 16
      %v935 = vrot.slane %v933, 4
      %v936 = vshll.u32 %v714, 16
      %v938 = vrot.slane %v936, 5
      %v939 = vor.u32 %v935, %v938
      %v940 = vrot.slane %v939, 4
      %v942 = vshll.u32 %v715, 16
      %v944 = vrot.slane %v942, 5
      %v945 = vsel %vm750, %v940, %v944
      %v946 = vshrl.u32 %v715, 16
      %v948 = vrot.slane %v946, 4
      %v949 = vor.u32 %v948, %v944
      %v950 = vrot.slane %v949, 4
      %v952 = vshll.u32 %v716, 16
      %v954 = vrot.slane %v952, 5
      %v955 = vsel %vm750, %v950, %v954
      %v956 = vunpack.c.l.b16 %v945
      %v957 = vunpack.c.l.b16 %v955
      %v958 = vpack.c.b16 %v957, %v956
      %960 = vst [vmem:[#allocation3 + $0x20] sm:$0xff] %v856
      %961 = vst [vmem:[#allocation3 + $0x68] sm:$0xff] %v857
      %962 = vst [vmem:[#allocation3 + $0xb0] sm:$0xff] %v858
      %963 = vst [vmem:[#allocation3 + $0xf8] sm:$0xff] %v958
      %v965 = vrot.slane %v714, 5
      %v966 = vrot.slane %v965, 4
      %v967 = vrot.slane %v715, 5
      %v968 = vsel %vm873, %v966, %v967
      %v969 = vrot.slane %v967, 4
      %v970 = vrot.slane %v716, 5
      %v971 = vsel %vm873, %v969, %v970
      %v972 = vunpack.c.l.b16 %v968
      %v973 = vunpack.c.l.b16 %v971
      %v974 = vpack.c.b16 %v973, %v972
      %976 = vst [vmem:[#allocation3 + $0x28] sm:$0xff] %v911
      %977 = vst [vmem:[#allocation3 + $0x70] sm:$0xff] %v912
      %978 = vst [vmem:[#allocation3 + $0xb8] sm:$0xff] %v913
      %979 = vst [vmem:[#allocation3 + $0x100] sm:$0xff] %v974
      %v982 = vunpack.c.l.b16 %v717
      %v983 = vunpack.c.l.b16 %v718
      %v984 = vpack.c.b16 %v983, %v982
      %986 = vst [vmem:[#allocation3 + $0x30] sm:$0xff] %v738
      %987 = vst [vmem:[#allocation3 + $0x78] sm:$0xff] %v739
      %988 = vst [vmem:[#allocation3 + $0xc0] sm:$0xff] %v926
      %989 = vst [vmem:[#allocation3 + $0x108] sm:$0xff] %v984
      %v991 = vshrl.u32 %v717, 16
      %v993 = vrot.slane %v991, 4
      %v994 = vshll.u32 %v717, 16
      %v996 = vrot.slane %v994, 5
      %v997 = vor.u32 %v993, %v996
      %v998 = vrot.slane %v997, 4
      %v1000 = vshll.u32 %v718, 16
      %v1002 = vrot.slane %v1000, 5
      %v1003 = vsel %vm750, %v998, %v1002
      %v1004 = vshrl.u32 %v718, 16
      %v1006 = vrot.slane %v1004, 4
      %v1007 = vor.u32 %v1006, %v1002
      %v1008 = vrot.slane %v1007, 4
      %v1010 = vshll.u32 %v719, 16
      %v1012 = vrot.slane %v1010, 5
      %v1013 = vsel %vm750, %v1008, %v1012
      %v1014 = vunpack.c.l.b16 %v1003
      %v1015 = vunpack.c.l.b16 %v1013
      %v1016 = vpack.c.b16 %v1015, %v1014
      %1018 = vst [vmem:[#allocation3 + $0x38] sm:$0xff] %v857
      %1019 = vst [vmem:[#allocation3 + $0x80] sm:$0xff] %v858
      %1020 = vst [vmem:[#allocation3 + $0xc8] sm:$0xff] %v958
      %1021 = vst [vmem:[#allocation3 + $0x110] sm:$0xff] %v1016
      %v1023 = vrot.slane %v717, 5
      %v1024 = vrot.slane %v1023, 4
      %v1025 = vrot.slane %v718, 5
      %v1026 = vsel %vm873, %v1024, %v1025
      %v1027 = vrot.slane %v1025, 4
      %v1028 = vrot.slane %v719, 5
      %v1029 = vsel %vm873, %v1027, %v1028
      %v1030 = vunpack.c.l.b16 %v1026
      %v1031 = vunpack.c.l.b16 %v1029
      %v1032 = vpack.c.b16 %v1031, %v1030
      %1034 = vst [vmem:[#allocation3 + $0x40] sm:$0xff] %v912
      %1035 = vst [vmem:[#allocation3 + $0x88] sm:$0xff] %v913
      %1036 = vst [vmem:[#allocation3 + $0xd0] sm:$0xff] %v974
      %1037 = vst [vmem:[#allocation3 + $0x118] sm:$0xff] %v1032
      %v1038 = vld [vmem:[#allocation3] sm:$0xff]
      %v1039 = vld [vmem:[#allocation3 + $0x8] sm:$0xff]
      %v1040 = vld [vmem:[#allocation3 + $0x10] sm:$0xff]
      %v1041 = vld [vmem:[#allocation3 + $0x18] sm:$0xff]
      %v1042 = vld [vmem:[#allocation3 + $0x20] sm:$0xff]
      %v1043 = vld [vmem:[#allocation3 + $0x28] sm:$0xff]
      %v1044 = vld [vmem:[#allocation3 + $0x30] sm:$0xff]
      %v1045 = vld [vmem:[#allocation3 + $0x38] sm:$0xff]
      %v1046 = vld [vmem:[#allocation3 + $0x40] sm:$0xff]
      %v1047 = vld [vmem:[#allocation3 + $0x48] sm:$0xff]
      %v1048 = vld [vmem:[#allocation3 + $0x50] sm:$0xff]
      %v1049 = vld [vmem:[#allocation3 + $0x58] sm:$0xff]
      %v1050 = vld [vmem:[#allocation3 + $0x60] sm:$0xff]
      %v1051 = vld [vmem:[#allocation3 + $0x68] sm:$0xff]
      %v1052 = vld [vmem:[#allocation3 + $0x70] sm:$0xff]
      %v1053 = vld [vmem:[#allocation3 + $0x78] sm:$0xff]
      %v1054 = vld [vmem:[#allocation3 + $0x80] sm:$0xff]
      %v1055 = vld [vmem:[#allocation3 + $0x88] sm:$0xff]
      %v1056 = vld [vmem:[#allocation3 + $0x90] sm:$0xff]
      %v1057 = vld [vmem:[#allocation3 + $0x98] sm:$0xff]
      %v1058 = vld [vmem:[#allocation3 + $0xa0] sm:$0xff]
      %v1059 = vld [vmem:[#allocation3 + $0xa8] sm:$0xff]
      %v1060 = vld [vmem:[#allocation3 + $0xb0] sm:$0xff]
      %v1061 = vld [vmem:[#allocation3 + $0xb8] sm:$0xff]
      %v1062 = vld [vmem:[#allocation3 + $0xc0] sm:$0xff]
      %v1063 = vld [vmem:[#allocation3 + $0xc8] sm:$0xff]
      %v1064 = vld [vmem:[#allocation3 + $0xd0] sm:$0xff]
      %v1065 = vld [vmem:[#allocation3 + $0xd8] sm:$0xff]
      %v1066 = vld [vmem:[#allocation3 + $0xe0] sm:$0xff]
      %v1067 = vld [vmem:[#allocation3 + $0xe8] sm:$0xff]
      %v1068 = vld [vmem:[#allocation3 + $0xf0] sm:$0xff]
      %v1069 = vld [vmem:[#allocation3 + $0xf8] sm:$0xff]
      %v1070 = vld [vmem:[#allocation3 + $0x100] sm:$0xff]
      %v1071 = vld [vmem:[#allocation3 + $0x108] sm:$0xff]
      %v1072 = vld [vmem:[#allocation3 + $0x110] sm:$0xff]
      %v1073 = vld [vmem:[#allocation3 + $0x118] sm:$0xff]
      %v1074 = vld [vmem:[%s3] sm:$0xf]
      %v1075 = vld [vmem:[%s3 + $0x4] sm:$0xf]
      %v1076 = vld [vmem:[%s3 + $0x8] sm:$0xf]
      %v1077 = vld [vmem:[%s3 + $0xc] sm:$0xf]
      %v1078 = vld [vmem:[%s3 + $0x10] sm:$0xf]
      %v1079 = vld [vmem:[%s3 + $0x14] sm:$0xf]
      %v1080 = vld [vmem:[%s3 + $0x18] sm:$0xf]
      %v1081 = vld [vmem:[%s3 + $0x1c] sm:$0xf]
      %v1082 = vld [vmem:[%s3 + $0x20] sm:$0xf]
      %v1083 = vld [vmem:[%s3 + $0x24] sm:$0xf]
      %v1084 = vld [vmem:[%s3 + $0x28] sm:$0xf]
      %v1085 = vld [vmem:[%s3 + $0x2c] sm:$0xf]
      %v1086 = vld [vmem:[%s3 + $0x30] sm:$0xf]
      %v1087 = vld [vmem:[%s3 + $0x34] sm:$0xf]
      %v1088 = vld [vmem:[%s3 + $0x38] sm:$0xf]
      %v1089 = vld [vmem:[%s3 + $0x3c] sm:$0xf]
      %v1090 = vld [vmem:[%s3 + $0x40] sm:$0xf]
      %v1091 = vld [vmem:[%s3 + $0x44] sm:$0xf]
      %v1092 = vld [vmem:[%s3 + $0x48] sm:$0xf]
      %v1093 = vld [vmem:[%s3 + $0x4c] sm:$0xf]
      %v1094 = vld [vmem:[%s3 + $0x50] sm:$0xf]
      %v1095 = vld [vmem:[%s3 + $0x54] sm:$0xf]
      %v1096 = vld [vmem:[%s3 + $0x58] sm:$0xf]
      %v1097 = vld [vmem:[%s3 + $0x5c] sm:$0xf]
      %v1098 = vld [vmem:[%s3 + $0x60] sm:$0xf]
      %v1099 = vld [vmem:[%s3 + $0x64] sm:$0xf]
      %v1100 = vld [vmem:[%s3 + $0x68] sm:$0xf]
      %v1101 = vld [vmem:[%s3 + $0x6c] sm:$0xf]
      %v1102 = vld [vmem:[%s3 + $0x70] sm:$0xf]
      %v1103 = vld [vmem:[%s3 + $0x74] sm:$0xf]
      %v1104 = vld [vmem:[%s3 + $0x78] sm:$0xf]
      %v1105 = vld [vmem:[%s3 + $0x7c] sm:$0xf]
      %v1106 = vld [vmem:[%s3 + $0x80] sm:$0xf]
      %v1107 = vld [vmem:[%s3 + $0x84] sm:$0xf]
      %v1108 = vld [vmem:[%s3 + $0x88] sm:$0xf]
      %v1109 = vld [vmem:[%s3 + $0x8c] sm:$0xf]
      %v1110 = vld [vmem:[%s3 + $0x90] sm:$0xf]
      %v1111 = vld [vmem:[%s3 + $0x94] sm:$0xf]
      %v1112 = vld [vmem:[%s3 + $0x98] sm:$0xf]
      %v1113 = vld [vmem:[%s3 + $0x9c] sm:$0xf]
      %v1114 = vld [vmem:[%s3 + $0xa0] sm:$0xf]
      %v1115 = vld [vmem:[%s3 + $0xa4] sm:$0xf]
      %v1116 = vld [vmem:[%s3 + $0xa8] sm:$0xf]
      %v1117 = vld [vmem:[%s3 + $0xac] sm:$0xf]
      %v1118 = vld [vmem:[%s3 + $0xb0] sm:$0xf]
      %v1119 = vld [vmem:[%s3 + $0xb4] sm:$0xf]
      %v1120 = vld [vmem:[%s3 + $0xb8] sm:$0xf]
      %v1121 = vld [vmem:[%s3 + $0xbc] sm:$0xf]
      %v1122 = vld [vmem:[%s3 + $0xc0] sm:$0xf]
      %v1123 = vld [vmem:[%s3 + $0xc4] sm:$0xf]
      %v1124 = vld [vmem:[%s3 + $0xc8] sm:$0xf]
      %v1125 = vld [vmem:[%s3 + $0xcc] sm:$0xf]
      %v1126 = vld [vmem:[%s3 + $0xd0] sm:$0xf]
      %v1127 = vld [vmem:[%s3 + $0xd4] sm:$0xf]
      %v1128 = vld [vmem:[%s3 + $0xd8] sm:$0xf]
      %v1129 = vld [vmem:[%s3 + $0xdc] sm:$0xf]
      %v1130 = vld [vmem:[%s3 + $0xe0] sm:$0xf]
      %v1131 = vld [vmem:[%s3 + $0xe4] sm:$0xf]
      %v1132 = vld [vmem:[%s3 + $0xe8] sm:$0xf]
      %v1133 = vld [vmem:[%s3 + $0xec] sm:$0xf]
      %v1134 = vld [vmem:[%s3 + $0xf0] sm:$0xf]
      %v1135 = vld [vmem:[%s3 + $0xf4] sm:$0xf]
      %v1136 = vld [vmem:[%s3 + $0xf8] sm:$0xf]
      %v1137 = vld [vmem:[%s3 + $0xfc] sm:$0xf]
      %v1138 = vld [vmem:[%s3 + $0x100] sm:$0xf]
      %v1139 = vld [vmem:[%s3 + $0x104] sm:$0xf]
      %v1140 = vld [vmem:[%s3 + $0x108] sm:$0xf]
      %v1141 = vld [vmem:[%s3 + $0x10c] sm:$0xf]
      %v1142 = vld [vmem:[%s3 + $0x110] sm:$0xf]
      %v1143 = vld [vmem:[%s3 + $0x114] sm:$0xf]
      %v1144 = vld [vmem:[%s3 + $0x118] sm:$0xf]
      %v1145 = vld [vmem:[%s3 + $0x11c] sm:$0xf]
      %v1146 = vld [vmem:[%s3 + $0x120] sm:$0xf]
      %v1147 = vld [vmem:[%s3 + $0x124] sm:$0xf]
      %v1148 = vld [vmem:[%s3 + $0x128] sm:$0xf]
      %v1149 = vld [vmem:[%s3 + $0x12c] sm:$0xf]
      %v1150 = vld [vmem:[%s3 + $0x130] sm:$0xf]
      %v1151 = vld [vmem:[%s3 + $0x134] sm:$0xf]
      %v1152 = vld [vmem:[%s3 + $0x138] sm:$0xf]
      %v1153 = vld [vmem:[%s3 + $0x13c] sm:$0xf]
      %v1154 = vld [vmem:[%s3 + $0x140] sm:$0xf]
      %v1155 = vld [vmem:[%s3 + $0x144] sm:$0xf]
      %v1156 = vld [vmem:[%s3 + $0x148] sm:$0xf]
      %v1157 = vld [vmem:[%s3 + $0x14c] sm:$0xf]
      %v1158 = vld [vmem:[%s3 + $0x150] sm:$0xf]
      %v1159 = vld [vmem:[%s3 + $0x154] sm:$0xf]
      %v1160 = vld [vmem:[%s3 + $0x158] sm:$0xf]
      %v1161 = vld [vmem:[%s3 + $0x15c] sm:$0xf]
      %v1162 = vld [vmem:[%s3 + $0x160] sm:$0xf]
      %v1163 = vld [vmem:[%s3 + $0x164] sm:$0xf]
      %v1164 = vld [vmem:[%s3 + $0x168] sm:$0xf]
      %v1165 = vld [vmem:[%s3 + $0x16c] sm:$0xf]
      %v1166 = vld [vmem:[%s3 + $0x170] sm:$0xf]
      %v1167 = vld [vmem:[%s3 + $0x174] sm:$0xf]
      %v1168 = vld [vmem:[%s3 + $0x178] sm:$0xf]
      %v1169 = vld [vmem:[%s3 + $0x17c] sm:$0xf]
      %v1170 = vld [vmem:[%s3 + $0x180] sm:$0xf]
      %v1171 = vld [vmem:[%s3 + $0x184] sm:$0xf]
      %v1172 = vld [vmem:[%s3 + $0x188] sm:$0xf]
      %v1173 = vld [vmem:[%s3 + $0x18c] sm:$0xf]
      %v1174 = vld [vmem:[%s3 + $0x190] sm:$0xf]
      %v1175 = vld [vmem:[%s3 + $0x194] sm:$0xf]
      %v1176 = vld [vmem:[%s3 + $0x198] sm:$0xf]
      %v1177 = vld [vmem:[%s3 + $0x19c] sm:$0xf]
      %v1178 = vld [vmem:[%s3 + $0x1a0] sm:$0xf]
      %v1179 = vld [vmem:[%s3 + $0x1a4] sm:$0xf]
      %v1180 = vld [vmem:[%s3 + $0x1a8] sm:$0xf]
      %v1181 = vld [vmem:[%s3 + $0x1ac] sm:$0xf]
      %v1182 = vld [vmem:[%s3 + $0x1b0] sm:$0xf]
      %v1183 = vld [vmem:[%s3 + $0x1b4] sm:$0xf]
      %v1184 = vld [vmem:[%s3 + $0x1b8] sm:$0xf]
      %v1185 = vld [vmem:[%s3 + $0x1bc] sm:$0xf]
      %v1186 = vld [vmem:[%s3 + $0x1c0] sm:$0xf]
      %v1187 = vld [vmem:[%s3 + $0x1c4] sm:$0xf]
      %v1188 = vld [vmem:[%s3 + $0x1c8] sm:$0xf]
      %v1189 = vld [vmem:[%s3 + $0x1cc] sm:$0xf]
      %v1190 = vld [vmem:[%s3 + $0x1d0] sm:$0xf]
      %v1191 = vld [vmem:[%s3 + $0x1d4] sm:$0xf]
      %v1192 = vld [vmem:[%s3 + $0x1d8] sm:$0xf]
      %v1193 = vld [vmem:[%s3 + $0x1dc] sm:$0xf]
      %v1194 = vld [vmem:[%s3 + $0x1e0] sm:$0xf]
      %v1195 = vld [vmem:[%s3 + $0x1e4] sm:$0xf]
      %v1196 = vld [vmem:[%s3 + $0x1e8] sm:$0xf]
      %v1197 = vld [vmem:[%s3 + $0x1ec] sm:$0xf]
      %v1198 = vld [vmem:[%s3 + $0x1f0] sm:$0xf]
      %v1199 = vld [vmem:[%s3 + $0x1f4] sm:$0xf]
      %v1200 = vld [vmem:[%s3 + $0x1f8] sm:$0xf]
      %v1201 = vld [vmem:[%s3 + $0x1fc] sm:$0xf]
      %v1202 = vld [vmem:[%s3 + $0x200] sm:$0xf]
      %v1203 = vld [vmem:[%s3 + $0x204] sm:$0xf]
      %v1204 = vld [vmem:[%s3 + $0x208] sm:$0xf]
      %v1205 = vld [vmem:[%s3 + $0x20c] sm:$0xf]
      %v1206 = vld [vmem:[%s3 + $0x210] sm:$0xf]
      %v1207 = vld [vmem:[%s3 + $0x214] sm:$0xf]
      %v1208 = vld [vmem:[%s3 + $0x218] sm:$0xf]
      %v1209 = vld [vmem:[%s3 + $0x21c] sm:$0xf]
      %v1210 = vld [vmem:[%s3 + $0x220] sm:$0xf]
      %v1211 = vld [vmem:[%s3 + $0x224] sm:$0xf]
      %v1212 = vld [vmem:[%s3 + $0x228] sm:$0xf]
      %v1213 = vld [vmem:[%s3 + $0x22c] sm:$0xf]
      %v1214 = vld [vmem:[%s3 + $0x230] sm:$0xf]
      %v1215 = vld [vmem:[%s3 + $0x234] sm:$0xf]
      %v1216 = vld [vmem:[%s3 + $0x238] sm:$0xf]
      %v1217 = vld [vmem:[%s3 + $0x23c] sm:$0xf]
      %v1362 = vunpack.c.l.b16 %v1074
      %v1363 = vunpack.c.l.b16 %v1075
      %v1364 = vunpack.c.l.b16 %v1076
      %v1365 = vunpack.c.l.b16 %v1077
      %v1366 = vunpack.c.l.b16 %v1078
      %v1367 = vunpack.c.l.b16 %v1079
      %v1368 = vunpack.c.l.b16 %v1080
      %v1369 = vunpack.c.l.b16 %v1081
      %v1370 = vunpack.c.l.b16 %v1082
      %v1371 = vunpack.c.l.b16 %v1083
      %v1372 = vunpack.c.l.b16 %v1084
      %v1373 = vunpack.c.l.b16 %v1085
      %v1374 = vunpack.c.l.b16 %v1086
      %v1375 = vunpack.c.l.b16 %v1087
      %v1376 = vunpack.c.l.b16 %v1088
      %v1377 = vunpack.c.l.b16 %v1089
      %v1378 = vunpack.c.l.b16 %v1090
      %v1379 = vunpack.c.l.b16 %v1091
      %v1380 = vunpack.c.l.b16 %v1092
      %v1381 = vunpack.c.l.b16 %v1093
      %v1382 = vunpack.c.l.b16 %v1094
      %v1383 = vunpack.c.l.b16 %v1095
      %v1384 = vunpack.c.l.b16 %v1096
      %v1385 = vunpack.c.l.b16 %v1097
      %v1386 = vunpack.c.l.b16 %v1098
      %v1387 = vunpack.c.l.b16 %v1099
      %v1388 = vunpack.c.l.b16 %v1100
      %v1389 = vunpack.c.l.b16 %v1101
      %v1390 = vunpack.c.l.b16 %v1102
      %v1391 = vunpack.c.l.b16 %v1103
      %v1392 = vunpack.c.l.b16 %v1104
      %v1393 = vunpack.c.l.b16 %v1105
      %v1394 = vunpack.c.l.b16 %v1106
      %v1395 = vunpack.c.l.b16 %v1107
      %v1396 = vunpack.c.l.b16 %v1108
      %v1397 = vunpack.c.l.b16 %v1109
      %v1398 = vunpack.c.l.b16 %v1110
      %v1399 = vunpack.c.l.b16 %v1111
      %v1400 = vunpack.c.l.b16 %v1112
      %v1401 = vunpack.c.l.b16 %v1113
      %v1402 = vunpack.c.l.b16 %v1114
      %v1403 = vunpack.c.l.b16 %v1115
      %v1404 = vunpack.c.l.b16 %v1116
      %v1405 = vunpack.c.l.b16 %v1117
      %v1406 = vunpack.c.l.b16 %v1118
      %v1407 = vunpack.c.l.b16 %v1119
      %v1408 = vunpack.c.l.b16 %v1120
      %v1409 = vunpack.c.l.b16 %v1121
      %v1410 = vunpack.c.l.b16 %v1122
      %v1411 = vunpack.c.l.b16 %v1123
      %v1412 = vunpack.c.l.b16 %v1124
      %v1413 = vunpack.c.l.b16 %v1125
      %v1414 = vunpack.c.l.b16 %v1126
      %v1415 = vunpack.c.l.b16 %v1127
      %v1416 = vunpack.c.l.b16 %v1128
      %v1417 = vunpack.c.l.b16 %v1129
      %v1418 = vunpack.c.l.b16 %v1130
      %v1419 = vunpack.c.l.b16 %v1131
      %v1420 = vunpack.c.l.b16 %v1132
      %v1421 = vunpack.c.l.b16 %v1133
      %v1422 = vunpack.c.l.b16 %v1134
      %v1423 = vunpack.c.l.b16 %v1135
      %v1424 = vunpack.c.l.b16 %v1136
      %v1425 = vunpack.c.l.b16 %v1137
      %v1426 = vunpack.c.l.b16 %v1138
      %v1427 = vunpack.c.l.b16 %v1139
      %v1428 = vunpack.c.l.b16 %v1140
      %v1429 = vunpack.c.l.b16 %v1141
      %v1430 = vunpack.c.l.b16 %v1142
      %v1431 = vunpack.c.l.b16 %v1143
      %v1432 = vunpack.c.l.b16 %v1144
      %v1433 = vunpack.c.l.b16 %v1145
      %v1434 = vunpack.c.l.b16 %v1146
      %v1435 = vunpack.c.l.b16 %v1147
      %v1436 = vunpack.c.l.b16 %v1148
      %v1437 = vunpack.c.l.b16 %v1149
      %v1438 = vunpack.c.l.b16 %v1150
      %v1439 = vunpack.c.l.b16 %v1151
      %v1440 = vunpack.c.l.b16 %v1152
      %v1441 = vunpack.c.l.b16 %v1153
      %v1442 = vunpack.c.l.b16 %v1154
      %v1443 = vunpack.c.l.b16 %v1155
      %v1444 = vunpack.c.l.b16 %v1156
      %v1445 = vunpack.c.l.b16 %v1157
      %v1446 = vunpack.c.l.b16 %v1158
      %v1447 = vunpack.c.l.b16 %v1159
      %v1448 = vunpack.c.l.b16 %v1160
      %v1449 = vunpack.c.l.b16 %v1161
      %v1450 = vunpack.c.l.b16 %v1162
      %v1451 = vunpack.c.l.b16 %v1163
      %v1452 = vunpack.c.l.b16 %v1164
      %v1453 = vunpack.c.l.b16 %v1165
      %v1454 = vunpack.c.l.b16 %v1166
      %v1455 = vunpack.c.l.b16 %v1167
      %v1456 = vunpack.c.l.b16 %v1168
      %v1457 = vunpack.c.l.b16 %v1169
      %v1458 = vunpack.c.l.b16 %v1170
      %v1459 = vunpack.c.l.b16 %v1171
      %v1460 = vunpack.c.l.b16 %v1172
      %v1461 = vunpack.c.l.b16 %v1173
      %v1462 = vunpack.c.l.b16 %v1174
      %v1463 = vunpack.c.l.b16 %v1175
      %v1464 = vunpack.c.l.b16 %v1176
      %v1465 = vunpack.c.l.b16 %v1177
      %v1466 = vunpack.c.l.b16 %v1178
      %v1467 = vunpack.c.l.b16 %v1179
      %v1468 = vunpack.c.l.b16 %v1180
      %v1469 = vunpack.c.l.b16 %v1181
      %v1470 = vunpack.c.l.b16 %v1182
      %v1471 = vunpack.c.l.b16 %v1183
      %v1472 = vunpack.c.l.b16 %v1184
      %v1473 = vunpack.c.l.b16 %v1185
      %v1474 = vunpack.c.l.b16 %v1186
      %v1475 = vunpack.c.l.b16 %v1187
      %v1476 = vunpack.c.l.b16 %v1188
      %v1477 = vunpack.c.l.b16 %v1189
      %v1478 = vunpack.c.l.b16 %v1190
      %v1479 = vunpack.c.l.b16 %v1191
      %v1480 = vunpack.c.l.b16 %v1192
      %v1481 = vunpack.c.l.b16 %v1193
      %v1482 = vunpack.c.l.b16 %v1194
      %v1483 = vunpack.c.l.b16 %v1195
      %v1484 = vunpack.c.l.b16 %v1196
      %v1485 = vunpack.c.l.b16 %v1197
      %v1486 = vunpack.c.l.b16 %v1198
      %v1487 = vunpack.c.l.b16 %v1199
      %v1488 = vunpack.c.l.b16 %v1200
      %v1489 = vunpack.c.l.b16 %v1201
      %v1490 = vunpack.c.l.b16 %v1202
      %v1491 = vunpack.c.l.b16 %v1203
      %v1492 = vunpack.c.l.b16 %v1204
      %v1493 = vunpack.c.l.b16 %v1205
      %v1494 = vunpack.c.l.b16 %v1206
      %v1495 = vunpack.c.l.b16 %v1207
      %v1496 = vunpack.c.l.b16 %v1208
      %v1497 = vunpack.c.l.b16 %v1209
      %v1498 = vunpack.c.l.b16 %v1210
      %v1499 = vunpack.c.l.b16 %v1211
      %v1500 = vunpack.c.l.b16 %v1212
      %v1501 = vunpack.c.l.b16 %v1213
      %v1502 = vunpack.c.l.b16 %v1214
      %v1503 = vunpack.c.l.b16 %v1215
      %v1504 = vunpack.c.l.b16 %v1216
      %v1505 = vunpack.c.l.b16 %v1217
      %v1506 = vpack.c.b16 %v1363, %v1362
      %v1507 = vpack.c.b16 %v1365, %v1364
      %v1508 = vpack.c.b16 %v1367, %v1366
      %v1509 = vpack.c.b16 %v1369, %v1368
      %v1510 = vpack.c.b16 %v1371, %v1370
      %v1511 = vpack.c.b16 %v1373, %v1372
      %v1512 = vpack.c.b16 %v1375, %v1374
      %v1513 = vpack.c.b16 %v1377, %v1376
      %v1514 = vpack.c.b16 %v1379, %v1378
      %v1515 = vpack.c.b16 %v1381, %v1380
      %v1516 = vpack.c.b16 %v1383, %v1382
      %v1517 = vpack.c.b16 %v1385, %v1384
      %v1518 = vpack.c.b16 %v1387, %v1386
      %v1519 = vpack.c.b16 %v1389, %v1388
      %v1520 = vpack.c.b16 %v1391, %v1390
      %v1521 = vpack.c.b16 %v1393, %v1392
      %v1522 = vpack.c.b16 %v1395, %v1394
      %v1523 = vpack.c.b16 %v1397, %v1396
      %v1524 = vpack.c.b16 %v1399, %v1398
      %v1525 = vpack.c.b16 %v1401, %v1400
      %v1526 = vpack.c.b16 %v1403, %v1402
      %v1527 = vpack.c.b16 %v1405, %v1404
      %v1528 = vpack.c.b16 %v1407, %v1406
      %v1529 = vpack.c.b16 %v1409, %v1408
      %v1530 = vpack.c.b16 %v1411, %v1410
      %v1531 = vpack.c.b16 %v1413, %v1412
      %v1532 = vpack.c.b16 %v1415, %v1414
      %v1533 = vpack.c.b16 %v1417, %v1416
      %v1534 = vpack.c.b16 %v1419, %v1418
      %v1535 = vpack.c.b16 %v1421, %v1420
      %v1536 = vpack.c.b16 %v1423, %v1422
      %v1537 = vpack.c.b16 %v1425, %v1424
      %v1538 = vpack.c.b16 %v1427, %v1426
      %v1539 = vpack.c.b16 %v1429, %v1428
      %v1540 = vpack.c.b16 %v1431, %v1430
      %v1541 = vpack.c.b16 %v1433, %v1432
      %v1542 = vpack.c.b16 %v1435, %v1434
      %v1543 = vpack.c.b16 %v1437, %v1436
      %v1544 = vpack.c.b16 %v1439, %v1438
      %v1545 = vpack.c.b16 %v1441, %v1440
      %v1546 = vpack.c.b16 %v1443, %v1442
      %v1547 = vpack.c.b16 %v1445, %v1444
      %v1548 = vpack.c.b16 %v1447, %v1446
      %v1549 = vpack.c.b16 %v1449, %v1448
      %v1550 = vpack.c.b16 %v1451, %v1450
      %v1551 = vpack.c.b16 %v1453, %v1452
      %v1552 = vpack.c.b16 %v1455, %v1454
      %v1553 = vpack.c.b16 %v1457, %v1456
      %v1554 = vpack.c.b16 %v1459, %v1458
      %v1555 = vpack.c.b16 %v1461, %v1460
      %v1556 = vpack.c.b16 %v1463, %v1462
      %v1557 = vpack.c.b16 %v1465, %v1464
      %v1558 = vpack.c.b16 %v1467, %v1466
      %v1559 = vpack.c.b16 %v1469, %v1468
      %v1560 = vpack.c.b16 %v1471, %v1470
      %v1561 = vpack.c.b16 %v1473, %v1472
      %v1562 = vpack.c.b16 %v1475, %v1474
      %v1563 = vpack.c.b16 %v1477, %v1476
      %v1564 = vpack.c.b16 %v1479, %v1478
      %v1565 = vpack.c.b16 %v1481, %v1480
      %v1566 = vpack.c.b16 %v1483, %v1482
      %v1567 = vpack.c.b16 %v1485, %v1484
      %v1568 = vpack.c.b16 %v1487, %v1486
      %v1569 = vpack.c.b16 %v1489, %v1488
      %v1570 = vpack.c.b16 %v1491, %v1490
      %v1571 = vpack.c.b16 %v1493, %v1492
      %v1572 = vpack.c.b16 %v1495, %v1494
      %v1573 = vpack.c.b16 %v1497, %v1496
      %v1574 = vpack.c.b16 %v1499, %v1498
      %v1575 = vpack.c.b16 %v1501, %v1500
      %v1576 = vpack.c.b16 %v1503, %v1502
      %v1577 = vpack.c.b16 %v1505, %v1504
      %1650 = vmatprep.subr.bf16.mxu0 0
      %1651 = vmatpush1.bf16.msra.mxu0 %v1506
      %1652 = vmatprep.subr.bf16.mxu0 0
      %1653 = vmatpush1.bf16.msra.mxu0 %v1507
      %1654 = vmatprep.subr.bf16.mxu0 0
      %1655 = vmatpush1.bf16.msra.mxu0 %v1508
      %1656 = vmatprep.subr.bf16.mxu0 0
      %1657 = vmatpush1.bf16.msra.mxu0 %v1509
      %1658 = vmatprep.subr.bf16.mxu0 0
      %1659 = vmatpush1.bf16.msra.mxu0 %v1510
      %1660 = vmatprep.subr.bf16.mxu0 0
      %1661 = vmatpush1.bf16.msra.mxu0 %v1511
      %1662 = vmatprep.subr.bf16.mxu0 0
      %1663 = vmatpush1.bf16.msra.mxu0 %v1512
      %1664 = vmatprep.subr.bf16.mxu0 0
      %1665 = vmatpush1.bf16.msra.mxu0 %v1513
      %1666 = vmatprep.subr.bf16.mxu0 0
      %1667 = vmatpush1.bf16.msra.mxu0 %v1514
      %1668 = vmatprep.subr.bf16.mxu0 0
      %1669 = vmatpush1.bf16.msra.mxu0 %v1515
      %1670 = vmatprep.subr.bf16.mxu0 0
      %1671 = vmatpush1.bf16.msra.mxu0 %v1516
      %1672 = vmatprep.subr.bf16.mxu0 0
      %1673 = vmatpush1.bf16.msra.mxu0 %v1517
      %1674 = vmatprep.subr.bf16.mxu0 0
      %1675 = vmatpush1.bf16.msra.mxu0 %v1518
      %1676 = vmatprep.subr.bf16.mxu0 0
      %1677 = vmatpush1.bf16.msra.mxu0 %v1519
      %1678 = vmatprep.subr.bf16.mxu0 0
      %1679 = vmatpush1.bf16.msra.mxu0 %v1520
      %1680 = vmatprep.subr.bf16.mxu0 0
      %1681 = vmatpush1.bf16.msra.mxu0 %v1521
      %1682 = vmatprep.mubr.bf16.mxu0 %v1039
      %1683 = vmatmul.mubr.bf16.gmra.mrb[0].mxu0 %v1038
      %v1684 = vpop.f32.mrb[0].mxu0
      %v1685 = vadd.f32 0.0, %v1684
      %v1686 = vpop.f32.mrb[0].mxu0
      %v1687 = vpop.f32.mrb[0].mxu0
      %v1688 = vadd.f32 0.0, %v1687
      %v1689 = vpop.f32.mrb[0].mxu0
      %1690 = vmatprep.mubr.bf16.mxu0 %v1048
      %1691 = vmatmul.mubr.bf16.gmra.mrb[0].mxu0 %v1047
      %v1692 = vpop.f32.mrb[0].mxu0
      %v1693 = vadd.f32 0.0, %v1692
      %v1694 = vpop.f32.mrb[0].mxu0
      %v1695 = vpop.f32.mrb[0].mxu0
      %v1696 = vadd.f32 0.0, %v1695
      %v1697 = vpop.f32.mrb[0].mxu0
      %1698 = vmatprep.mubr.bf16.mxu0 %v1057
      %1699 = vmatmul.mubr.bf16.gmra.mrb[0].mxu0 %v1056
      %v1700 = vpop.f32.mrb[0].mxu0
      %v1701 = vadd.f32 0.0, %v1700
      %v1702 = vpop.f32.mrb[0].mxu0
      %v1703 = vpop.f32.mrb[0].mxu0
      %v1704 = vadd.f32 0.0, %v1703
      %v1705 = vpop.f32.mrb[0].mxu0
      %1706 = vmatprep.mubr.bf16.mxu0 %v1066
      %1707 = vmatmul.mubr.bf16.gmra.mrb[0].mxu0 %v1065
      %v1708 = vpop.f32.mrb[0].mxu0
      %v1709 = vadd.f32 0.0, %v1708
      %v1710 = vpop.f32.mrb[0].mxu0
      %v1711 = vpop.f32.mrb[0].mxu0
      %v1712 = vadd.f32 0.0, %v1711
      %v1713 = vpop.f32.mrb[0].mxu0
      %1714 = vdwg.mxu0
      %1715 = vmatprep.subr.bf16.mxu0 0
      %1716 = vmatpush1.bf16.msra.mxu0 %v1522
      %1717 = vmatprep.subr.bf16.mxu0 0
      %1718 = vmatpush1.bf16.msra.mxu0 %v1523
      %1719 = vmatprep.subr.bf16.mxu0 0
      %1720 = vmatpush1.bf16.msra.mxu0 %v1524
      %1721 = vmatprep.subr.bf16.mxu0 0
      %1722 = vmatpush1.bf16.msra.mxu0 %v1525
      %1723 = vmatprep.subr.bf16.mxu0 0
      %1724 = vmatpush1.bf16.msra.mxu0 %v1526
      %1725 = vmatprep.subr.bf16.mxu0 0
      %1726 = vmatpush1.bf16.msra.mxu0 %v1527
      %1727 = vmatprep.subr.bf16.mxu0 0
      %1728 = vmatpush1.bf16.msra.mxu0 %v1528
      %1729 = vmatprep.subr.bf16.mxu0 0
      %1730 = vmatpush1.bf16.msra.mxu0 %v1529
      %1731 = vmatprep.subr.bf16.mxu0 0
      %1732 = vmatpush1.bf16.msra.mxu0 %v1530
      %1733 = vmatprep.subr.bf16.mxu0 0
      %1734 = vmatpush1.bf16.msra.mxu0 %v1531
      %1735 = vmatprep.subr.bf16.mxu0 0
      %1736 = vmatpush1.bf16.msra.mxu0 %v1532
      %1737 = vmatprep.subr.bf16.mxu0 0
      %1738 = vmatpush1.bf16.msra.mxu0 %v1533
      %1739 = vmatprep.subr.bf16.mxu0 0
      %1740 = vmatpush1.bf16.msra.mxu0 %v1534
      %1741 = vmatprep.subr.bf16.mxu0 0
      %1742 = vmatpush1.bf16.msra.mxu0 %v1535
      %1743 = vmatprep.subr.bf16.mxu0 0
      %1744 = vmatpush1.bf16.msra.mxu0 %v1536
      %1745 = vmatprep.subr.bf16.mxu0 0
      %1746 = vmatpush1.bf16.msra.mxu0 %v1537
      %1747 = vmatprep.mubr.bf16.mxu0 %v1041
      %1748 = vmatmul.mubr.bf16.gmra.mrb[0].mxu0 %v1040
      %v1749 = vpop.f32.mrb[0].mxu0
      %v1750 = vadd.f32 %v1685, %v1749
      %v1751 = vpop.f32.mrb[0].mxu0
      %v1752 = vpop.f32.mrb[0].mxu0
      %v1753 = vadd.f32 %v1688, %v1752
      %v1754 = vpop.f32.mrb[0].mxu0
      %1755 = vmatprep.mubr.bf16.mxu0 %v1050
      %1756 = vmatmul.mubr.bf16.gmra.mrb[0].mxu0 %v1049
      %v1757 = vpop.f32.mrb[0].mxu0
      %v1758 = vadd.f32 %v1693, %v1757
      %v1759 = vpop.f32.mrb[0].mxu0
      %v1760 = vpop.f32.mrb[0].mxu0
      %v1761 = vadd.f32 %v1696, %v1760
      %v1762 = vpop.f32.mrb[0].mxu0
      %1763 = vmatprep.mubr.bf16.mxu0 %v1059
      %1764 = vmatmul.mubr.bf16.gmra.mrb[0].mxu0 %v1058
      %v1765 = vpop.f32.mrb[0].mxu0
      %v1766 = vadd.f32 %v1701, %v1765
      %v1767 = vpop.f32.mrb[0].mxu0
      %v1768 = vpop.f32.mrb[0].mxu0
      %v1769 = vadd.f32 %v1704, %v1768
      %v1770 = vpop.f32.mrb[0].mxu0
      %1771 = vmatprep.mubr.bf16.mxu0 %v1068
      %1772 = vmatmul.mubr.bf16.gmra.mrb[0].mxu0 %v1067
      %v1773 = vpop.f32.mrb[0].mxu0
      %v1774 = vadd.f32 %v1709, %v1773
      %v1775 = vpop.f32.mrb[0].mxu0
      %v1776 = vpop.f32.mrb[0].mxu0
      %v1777 = vadd.f32 %v1712, %v1776
      %v1778 = vpop.f32.mrb[0].mxu0
      %1779 = vdwg.mxu0
      %1780 = vmatprep.subr.bf16.mxu0 0
      %1781 = vmatpush1.bf16.msra.mxu0 %v1538
      %1782 = vmatprep.subr.bf16.mxu0 0
      %1783 = vmatpush1.bf16.msra.mxu0 %v1539
      %1784 = vmatprep.subr.bf16.mxu0 0
      %1785 = vmatpush1.bf16.msra.mxu0 %v1540
      %1786 = vmatprep.subr.bf16.mxu0 0
      %1787 = vmatpush1.bf16.msra.mxu0 %v1541
      %1788 = vmatprep.subr.bf16.mxu0 0
      %1789 = vmatpush1.bf16.msra.mxu0 %v1542
      %1790 = vmatprep.subr.bf16.mxu0 0
      %1791 = vmatpush1.bf16.msra.mxu0 %v1543
      %1792 = vmatprep.subr.bf16.mxu0 0
      %1793 = vmatpush1.bf16.msra.mxu0 %v1544
      %1794 = vmatprep.subr.bf16.mxu0 0
      %1795 = vmatpush1.bf16.msra.mxu0 %v1545
      %1796 = vmatprep.subr.bf16.mxu0 0
      %1797 = vmatpush1.bf16.msra.mxu0 %v1546
      %1798 = vmatprep.subr.bf16.mxu0 0
      %1799 = vmatpush1.bf16.msra.mxu0 %v1547
      %1800 = vmatprep.subr.bf16.mxu0 0
      %1801 = vmatpush1.bf16.msra.mxu0 %v1548
      %1802 = vmatprep.subr.bf16.mxu0 0
      %1803 = vmatpush1.bf16.msra.mxu0 %v1549
      %1804 = vmatprep.subr.bf16.mxu0 0
      %1805 = vmatpush1.bf16.msra.mxu0 %v1550
      %1806 = vmatprep.subr.bf16.mxu0 0
      %1807 = vmatpush1.bf16.msra.mxu0 %v1551
      %1808 = vmatprep.subr.bf16.mxu0 0
      %1809 = vmatpush1.bf16.msra.mxu0 %v1552
      %1810 = vmatprep.subr.bf16.mxu0 0
      %1811 = vmatpush1.bf16.msra.mxu0 %v1553
      %1812 = vmatprep.mubr.bf16.mxu0 %v1043
      %1813 = vmatmul.mubr.bf16.gmra.mrb[0].mxu0 %v1042
      %v1814 = vpop.f32.mrb[0].mxu0
      %v1815 = vadd.f32 %v1750, %v1814
      %v1816 = vpop.f32.mrb[0].mxu0
      %v1817 = vpop.f32.mrb[0].mxu0
      %v1818 = vadd.f32 %v1753, %v1817
      %v1819 = vpop.f32.mrb[0].mxu0
      %1820 = vmatprep.mubr.bf16.mxu0 %v1052
      %1821 = vmatmul.mubr.bf16.gmra.mrb[0].mxu0 %v1051
      %v1822 = vpop.f32.mrb[0].mxu0
      %v1823 = vadd.f32 %v1758, %v1822
      %v1824 = vpop.f32.mrb[0].mxu0
      %v1825 = vpop.f32.mrb[0].mxu0
      %v1826 = vadd.f32 %v1761, %v1825
      %v1827 = vpop.f32.mrb[0].mxu0
      %1828 = vmatprep.mubr.bf16.mxu0 %v1061
      %1829 = vmatmul.mubr.bf16.gmra.mrb[0].mxu0 %v1060
      %v1830 = vpop.f32.mrb[0].mxu0
      %v1831 = vadd.f32 %v1766, %v1830
      %v1832 = vpop.f32.mrb[0].mxu0
      %v1833 = vpop.f32.mrb[0].mxu0
      %v1834 = vadd.f32 %v1769, %v1833
      %v1835 = vpop.f32.mrb[0].mxu0
      %1836 = vmatprep.mubr.bf16.mxu0 %v1070
      %1837 = vmatmul.mubr.bf16.gmra.mrb[0].mxu0 %v1069
      %v1838 = vpop.f32.mrb[0].mxu0
      %v1839 = vadd.f32 %v1774, %v1838
      %v1840 = vpop.f32.mrb[0].mxu0
      %v1841 = vpop.f32.mrb[0].mxu0
      %v1842 = vadd.f32 %v1777, %v1841
      %v1843 = vpop.f32.mrb[0].mxu0
      %1844 = vdwg.mxu0
      %1845 = vmatprep.subr.bf16.mxu0 0
      %1846 = vmatpush1.bf16.msra.mxu0 %v1554
      %1847 = vmatprep.subr.bf16.mxu0 0
      %1848 = vmatpush1.bf16.msra.mxu0 %v1555
      %1849 = vmatprep.subr.bf16.mxu0 0
      %1850 = vmatpush1.bf16.msra.mxu0 %v1556
      %1851 = vmatprep.subr.bf16.mxu0 0
      %1852 = vmatpush1.bf16.msra.mxu0 %v1557
      %1853 = vmatprep.subr.bf16.mxu0 0
      %1854 = vmatpush1.bf16.msra.mxu0 %v1558
      %1855 = vmatprep.subr.bf16.mxu0 0
      %1856 = vmatpush1.bf16.msra.mxu0 %v1559
      %1857 = vmatprep.subr.bf16.mxu0 0
      %1858 = vmatpush1.bf16.msra.mxu0 %v1560
      %1859 = vmatprep.subr.bf16.mxu0 0
      %1860 = vmatpush1.bf16.msra.mxu0 %v1561
      %1861 = vmatprep.subr.bf16.mxu0 0
      %1862 = vmatpush1.bf16.msra.mxu0 %v1562
      %1863 = vmatprep.subr.bf16.mxu0 0
      %1864 = vmatpush1.bf16.msra.mxu0 %v1563
      %1865 = vmatprep.subr.bf16.mxu0 0
      %1866 = vmatpush1.bf16.msra.mxu0 %v1564
      %1867 = vmatprep.subr.bf16.mxu0 0
      %1868 = vmatpush1.bf16.msra.mxu0 %v1565
      %1869 = vmatprep.subr.bf16.mxu0 0
      %1870 = vmatpush1.bf16.msra.mxu0 %v1566
      %1871 = vmatprep.subr.bf16.mxu0 0
      %1872 = vmatpush1.bf16.msra.mxu0 %v1567
      %1873 = vmatprep.subr.bf16.mxu0 0
      %1874 = vmatpush1.bf16.msra.mxu0 %v1568
      %1875 = vmatprep.subr.bf16.mxu0 0
      %1876 = vmatpush1.bf16.msra.mxu0 %v1569
      %1877 = vmatprep.mubr.bf16.mxu0 %v1045
      %1878 = vmatmul.mubr.bf16.gmra.mrb[0].mxu0 %v1044
      %v1879 = vpop.f32.mrb[0].mxu0
      %v1880 = vadd.f32 %v1815, %v1879
      %v1881 = vpop.f32.mrb[0].mxu0
      %v1882 = vpop.f32.mrb[0].mxu0
      %v1883 = vadd.f32 %v1818, %v1882
      %v1884 = vpop.f32.mrb[0].mxu0
      %1885 = vmatprep.mubr.bf16.mxu0 %v1054
      %1886 = vmatmul.mubr.bf16.gmra.mrb[0].mxu0 %v1053
      %v1887 = vpop.f32.mrb[0].mxu0
      %v1888 = vadd.f32 %v1823, %v1887
      %v1889 = vpop.f32.mrb[0].mxu0
      %v1890 = vpop.f32.mrb[0].mxu0
      %v1891 = vadd.f32 %v1826, %v1890
      %v1892 = vpop.f32.mrb[0].mxu0
      %1893 = vmatprep.mubr.bf16.mxu0 %v1063
      %1894 = vmatmul.mubr.bf16.gmra.mrb[0].mxu0 %v1062
      %v1895 = vpop.f32.mrb[0].mxu0
      %v1896 = vadd.f32 %v1831, %v1895
      %v1897 = vpop.f32.mrb[0].mxu0
      %v1898 = vpop.f32.mrb[0].mxu0
      %v1899 = vadd.f32 %v1834, %v1898
      %v1900 = vpop.f32.mrb[0].mxu0
      %1901 = vmatprep.mubr.bf16.mxu0 %v1072
      %1902 = vmatmul.mubr.bf16.gmra.mrb[0].mxu0 %v1071
      %v1903 = vpop.f32.mrb[0].mxu0
      %v1904 = vadd.f32 %v1839, %v1903
      %v1905 = vpop.f32.mrb[0].mxu0
      %v1906 = vpop.f32.mrb[0].mxu0
      %v1907 = vadd.f32 %v1842, %v1906
      %v1908 = vpop.f32.mrb[0].mxu0
      %1909 = vdwg.mxu0
      %1910 = vmatprep.subr.bf16.mxu0 0
      %1911 = vmatpush1.bf16.msra.mxu0 %v1570
      %1912 = vmatprep.subr.bf16.mxu0 0
      %1913 = vmatpush1.bf16.msra.mxu0 %v1571
      %1914 = vmatprep.subr.bf16.mxu0 0
      %1915 = vmatpush1.bf16.msra.mxu0 %v1572
      %1916 = vmatprep.subr.bf16.mxu0 0
      %1917 = vmatpush1.bf16.msra.mxu0 %v1573
      %1918 = vmatprep.subr.bf16.mxu0 0
      %1919 = vmatpush1.bf16.msra.mxu0 %v1574
      %1920 = vmatprep.subr.bf16.mxu0 0
      %1921 = vmatpush1.bf16.msra.mxu0 %v1575
      %1922 = vmatprep.subr.bf16.mxu0 0
      %1923 = vmatpush1.bf16.msra.mxu0 %v1576
      %1924 = vmatprep.subr.bf16.mxu0 0
      %1925 = vmatpush1.bf16.msra.mxu0 %v1577
      %1926 = vmatprep.subr.bf16.mxu0 0
      %1927 = vmatpush1.bf16.msra.mxu0 0
      %1928 = vmatprep.subr.bf16.mxu0 0
      %1929 = vmatpush1.bf16.msra.mxu0 0
      %1930 = vmatprep.subr.bf16.mxu0 0
      %1931 = vmatpush1.bf16.msra.mxu0 0
      %1932 = vmatprep.subr.bf16.mxu0 0
      %1933 = vmatpush1.bf16.msra.mxu0 0
      %1934 = vmatprep.subr.bf16.mxu0 0
      %1935 = vmatpush1.bf16.msra.mxu0 0
      %1936 = vmatprep.subr.bf16.mxu0 0
      %1937 = vmatpush1.bf16.msra.mxu0 0
      %1938 = vmatprep.subr.bf16.mxu0 0
      %1939 = vmatpush1.bf16.msra.mxu0 0
      %1940 = vmatprep.subr.bf16.mxu0 0
      %1941 = vmatpush1.bf16.msra.mxu0 0
      %1942 = vmatprep.mubr.bf16.mxu0 0
      %1943 = vmatmul.mubr.bf16.gmra.mrb[0].mxu0 %v1046
      %v1944 = vpop.f32.mrb[0].mxu0
      %v1945 = vadd.f32 %v1880, %v1944
      %v1946 = vpop.f32.mrb[0].mxu0
      %v1947 = vpop.f32.mrb[0].mxu0
      %v1948 = vadd.f32 %v1883, %v1947
      %v1949 = vpop.f32.mrb[0].mxu0
      %1950 = vmatprep.mubr.bf16.mxu0 0
      %1951 = vmatmul.mubr.bf16.gmra.mrb[0].mxu0 %v1055
      %v1952 = vpop.f32.mrb[0].mxu0
      %v1953 = vadd.f32 %v1888, %v1952
      %v1954 = vpop.f32.mrb[0].mxu0
      %v1955 = vpop.f32.mrb[0].mxu0
      %v1956 = vadd.f32 %v1891, %v1955
      %v1957 = vpop.f32.mrb[0].mxu0
      %1958 = vmatprep.mubr.bf16.mxu0 0
      %1959 = vmatmul.mubr.bf16.gmra.mrb[0].mxu0 %v1064
      %v1960 = vpop.f32.mrb[0].mxu0
      %v1961 = vadd.f32 %v1896, %v1960
      %v1962 = vpop.f32.mrb[0].mxu0
      %v1963 = vpop.f32.mrb[0].mxu0
      %v1964 = vadd.f32 %v1899, %v1963
      %v1965 = vpop.f32.mrb[0].mxu0
      %1966 = vmatprep.mubr.bf16.mxu0 0
      %1967 = vmatmul.mubr.bf16.gmra.mrb[0].mxu0 %v1073
      %v1968 = vpop.f32.mrb[0].mxu0
      %v1969 = vadd.f32 %v1904, %v1968
      %v1970 = vpop.f32.mrb[0].mxu0
      %v1971 = vpop.f32.mrb[0].mxu0
      %v1972 = vadd.f32 %v1907, %v1971
      %v1973 = vpop.f32.mrb[0].mxu0
      %1974 = vdwg.mxu0
      %v1975 = vadd.f32 %v1945, %v1948
      %v1976 = vadd.f32 %v1975, %v1953
      %v1977 = vadd.f32 %v1976, %v1956
      %v1978 = vadd.f32 %v1977, %v1961
      %v1979 = vadd.f32 %v1978, %v1964
      %v1980 = vadd.f32 %v1979, %v1969
      %v1981 = vadd.f32 %v1980, %v1972
      %v1982 = vrot.slane %v1981, 4
      %v1983 = vadd.f32 %v1981, %v1982
      %v1984 = vrot.slane %v1983, 2
      %v1985 = vadd.f32 %v1983, %v1984
      %v1986 = vrot.slane %v1985, 1
      %v1987 = vadd.f32 %v1985, %v1986
      %1988 = vst [vmem:[%s467] sm:$0x1] %v1987
      %v1989 = vmul.f32 %v1945, %v1945
      %v1990 = vmul.f32 %v1948, %v1948
      %v1991 = vmul.f32 %v1953, %v1953
      %v1992 = vmul.f32 %v1956, %v1956
      %v1993 = vmul.f32 %v1961, %v1961
      %v1994 = vmul.f32 %v1964, %v1964
      %v1995 = vmul.f32 %v1969, %v1969
      %v1996 = vmul.f32 %v1972, %v1972
      %v1997 = vadd.f32 %v1989, %v1990
      %v1998 = vadd.f32 %v1997, %v1991
      %v1999 = vadd.f32 %v1998, %v1992
      %v2000 = vadd.f32 %v1999, %v1993
      %v2001 = vadd.f32 %v2000, %v1994
      %v2002 = vadd.f32 %v2001, %v1995
      %v2003 = vadd.f32 %v2002, %v1996
      %v2004 = vrot.slane %v2003, 4
      %v2005 = vadd.f32 %v2003, %v2004
      %v2006 = vrot.slane %v2005, 2
      %v2007 = vadd.f32 %v2005, %v2006
      %v2008 = vrot.slane %v2007, 1
      %v2009 = vadd.f32 %v2007, %v2008
      %2010 = vst [vmem:[%s467 + $0x1] sm:$0x1] %v2009
      %v2011 = vpack.c.bf16 %v1948, %v1945
      %v2012 = vpack.c.bf16 %v1956, %v1953
      %v2013 = vpack.c.bf16 %v1964, %v1961
      %v2014 = vpack.c.bf16 %v1972, %v1969
      %v2019 = vunpack.c.l.b16 %v2011
      %v2020 = vunpack.c.h.b16 %v2011
      %v2021 = vunpack.c.l.b16 %v2012
      %v2022 = vunpack.c.h.b16 %v2012
      %v2023 = vunpack.c.l.b16 %v2013
      %v2024 = vunpack.c.h.b16 %v2013
      %v2025 = vunpack.c.l.b16 %v2014
      %v2026 = vunpack.c.h.b16 %v2014
      %v2027 = vpack.c.b16 %v2019, %v2019
      %v2028 = vpack.c.b16 %v2020, %v2020
      %v2029 = vpack.c.b16 %v2021, %v2021
      %v2030 = vpack.c.b16 %v2022, %v2022
      %v2031 = vpack.c.b16 %v2023, %v2023
      %v2032 = vpack.c.b16 %v2024, %v2024
      %v2033 = vpack.c.b16 %v2025, %v2025
      %v2034 = vpack.c.b16 %v2026, %v2026
      %2043 = vst [vmem:[%s458] sm:$0xf] %v2027
      %2044 = vst [vmem:[%s458 + $0x4] sm:$0xf] %v2028
      %2045 = vst [vmem:[%s458 + $0x8] sm:$0xf] %v2029
      %2046 = vst [vmem:[%s458 + $0xc] sm:$0xf] %v2030
      %2047 = vst [vmem:[%s458 + $0x10] sm:$0xf] %v2031
      %2048 = vst [vmem:[%s458 + $0x14] sm:$0xf] %v2032
      %2049 = vst [vmem:[%s458 + $0x18] sm:$0xf] %v2033
      %2050 = vst [vmem:[%s458 + $0x1c] sm:$0xf] %v2034
      %s2051 = smul.u32 4, %s24
      %p2052 = scmp.lt.s32.totalorder %s23, 1
      %s2053 = scalar_select %p2052, %s23, 1
      %p2054 = scmp.lt.s32.totalorder %s2051, 15
      %s2055 = scalar_select %p2054, %s2051, 15
      %s2056 = smul.addr %s2055, 2
      %s2057 = smul.addr %s2053, 32
      %s2058 = sadd.s32 %s2056, %s2057
      %s2059 = smul.addr %s2058, 4
      %s2060 = scalar_lea.vmem %s6, %s2059
      %p2061 = scmp.lt.s32.totalorder %s23, 1
      %s2062 = scalar_select %p2061, %s23, 1
      %p2063 = scmp.lt.s32.totalorder %s24, 3
      %s2064 = scalar_select %p2063, %s24, 3
      %s2065 = smul.addr %s2062, 4
      %s2066 = sadd.s32 %s2064, %s2065
      %s2067 = smul.addr %s2066, 2
      %s2068 = scalar_lea.vmem %s7, %s2067
      // Predicated region
      $region45: #{double_conv.3} parent=43 // pred_check
        %p2069 = pneg %p214
      $region46: #{double_conv.3} parent=43 // pred_check_branch
        %2071 = sbr.rel (%p2069) target = $region48
      $region47: #{double_conv.3} parent=43 // pred_region
        %s2072 = smul.u32 4, %s24
      $region48: #{double_conv.3} parent=43 // pred_fallthru
        _
      // Predicated region
      $region49: #{double_conv.3} parent=43 // pred_check
        %p2073 = pneg %p242
      $region50: #{double_conv.3} parent=43 // pred_check_branch
        %2075 = sbr.rel (%p2073) target = $region52
      $region51: #{double_conv.3} parent=43 // pred_region
        _
      $region52: #{double_conv.3} parent=43 // pred_fallthru
        _
    $region44: #{double_conv.3} parent=5 // pred_fallthru
      _
    %p2076 = scmp.le.s32.totalorder 2, %s14
    // Predicated region
    $region53: #{double_conv.3} parent=5 // pred_check
      %p2077 = pneg %p2076
    $region54: #{double_conv.3} parent=5 // pred_check_branch
      %2079 = sbr.rel (%p2077) target = $region56
    $region55: #{double_conv.3} parent=5 // pred_region
      %s2080 = ssub.s32 %s14, 2
      // Predicated region
      $region57: #{double_conv.3} parent=55 // pred_check
        %p2081 = pneg %p220
      $region58: #{double_conv.3} parent=55 // pred_check_branch
        %2083 = sbr.rel (%p2081) target = $region60
      $region59: #{double_conv.3} parent=55 // pred_region
        %s2084 = smul.u32 4, %s26
        %p2085 = scmp.lt.s32.totalorder %s25, 1
        %s2086 = scalar_select %p2085, %s25, 1
        %p2087 = scmp.lt.s32.totalorder %s2084, 15
        %s2088 = scalar_select %p2087, %s2084, 15
        %s2089 = smul.addr %s2088, 2
        %s2090 = smul.addr %s2086, 32
        %s2091 = sadd.s32 %s2089, %s2090
        %s2092 = smul.addr %s2091, 4
        %s2093 = scalar_lea.vmem %s6, %s2092
      $region60: #{double_conv.3} parent=55 // pred_fallthru
        _
      // Predicated region
      $region61: #{double_conv.3} parent=55 // pred_check
        %p2094 = pneg %p248
      $region62: #{double_conv.3} parent=55 // pred_check_branch
        %2096 = sbr.rel (%p2094) target = $region64
      $region63: #{double_conv.3} parent=55 // pred_region
        %p2097 = scmp.lt.s32.totalorder %s25, 1
        %s2098 = scalar_select %p2097, %s25, 1
        %p2099 = scmp.lt.s32.totalorder %s26, 3
        %s2100 = scalar_select %p2099, %s26, 3
        %s2101 = smul.addr %s2098, 4
        %s2102 = sadd.s32 %s2100, %s2101
        %s2103 = smul.addr %s2102, 2
        %s2104 = scalar_lea.vmem %s7, %s2103
      $region64: #{double_conv.3} parent=55 // pred_fallthru
        _
    $region56: #{double_conv.3} parent=5 // pred_fallthru
      _
  $region6: #{double_conv.3} parent=0 // loop_footer
    %s18 = sadd.s32 1, %s14
  $region7: #{double_conv.3} parent=0 // loop_footer_branch
    %13 = sbr.rel target = $region3
  $region8: #{double_conv.3} parent=0 // loop_exit
    _

// kernel: double_conv.4
$region0: #{double_conv.4}
  #allocation0 [shape = 'u32[]', space=smem, size = 0x4, offset = 0x4, fixed_abs, tag = 'smem constant byte address 0x4 - core index']
  #allocation1 [shape = 'u32[144,128]{1,0:T(1,128)}', space=vmem, size = 0x12000, scoped, tag = 'internal scratch']
  #allocation2 [shape = 'bf16[6,18,128]{2,1,0:T(8,128)(2,1)}', space=vmem, size = 0x9000, scoped, tag = 'scratch operand']
  #allocation3 [shape = 'bf16[64,1152]{1,0:T(16,128)(2,1)}', space=vmem, size = 0x24000, scoped, tag = 'scratch operand']
  %s0 = inlined_call_operand.vmem [shape: bf16[2,16,16,128], index: 0, kind: input, shape index: {}, may-alias: {0,1,2}]
  %s1 = inlined_call_operand.vmem [shape: bf16[2,16,16,128], index: 1, kind: input, shape index: {}, may-alias: {0,1,2}]
  %s2 = inlined_call_operand.vmem [shape: bf16[2,16,16,128], index: 2, kind: input, shape index: {}, may-alias: {0,1,2}]
  %s3 = inlined_call_operand.vmem [shape: bf16[1152,128], index: 3, kind: input, shape index: {}]
  %s4 = inlined_call_operand.vmem [shape: f32[1,128], index: 4, kind: input, shape index: {}]
  %s5 = inlined_call_operand.vmem [shape: f32[1,128], index: 5, kind: input, shape index: {}]
  %s6 = inlined_call_operand.vmem [shape: bf16[2,16,16,128], index: 6, kind: output, shape index: {0}]
  %s7 = inlined_call_operand.vmem [shape: f32[2,4,2,128], index: 7, kind: output, shape index: {1}]
  %8 = xla_tuple %s6, %s7
  %s9 = sld [smem:[#allocation0]]
  $region65: #{double_conv.4} parent=0
    _
  %s11 = ssub.s32 1, %s9
  %s12 = scalar_select 0, %s11, %s9
  loop: start=0, step=1, limit=10
  $region2: #{double_conv.4} parent=0 // loop_pre_header
    _
  $region3: #{double_conv.4} parent=0 // loop_header
    %s14 = sphi 0, %s18
    %p15 = scmp.ge.s32.totalorder %s14, 10
    %s21 = sphi 0, %s33
    %s22 = sphi 0, %s29
    %s23 = sphi 0, %s21
    %s24 = sphi 0, %s22
    %s25 = sphi 0, %s23
    %s26 = sphi 0, %s24
    %s46 = sphi 0, %s48
    %s49 = sphi 0, %s46
    %s50 = sphi 0, %s49
    %s66 = sphi 0, %s50
    %s74 = sphi 0, %s76
    %s77 = sphi 0, %s74
    %s78 = sphi 0, %s77
    %s94 = sphi 0, %s78
    %s110 = sphi 0, %s112
    %s113 = sphi 0, %s110
    %s114 = sphi 0, %s113
    %s130 = sphi 0, %s114
    %s134 = sphi 0, %s134
    %s136 = sphi 0, %s134
    %s137 = sphi 0, %s136
    %s151 = sphi 0, %s137
    %s155 = sphi 0, %s155
    %s157 = sphi 0, %s155
    %s158 = sphi 0, %s157
    %s172 = sphi 0, %s158
    %s176 = sphi 0, %s176
    %s178 = sphi 0, %s176
    %s179 = sphi 0, %s178
    %s193 = sphi 0, %s179
    %s201 = sphi 0, %s203
    %s204 = sphi 0, %s201
    %s205 = sphi 0, %s204
    %s221 = sphi 0, %s205
    %s229 = sphi 0, %s231
    %s232 = sphi 0, %s229
    %s233 = sphi 0, %s232
    %s249 = sphi 0, %s233
  $region4: #{double_conv.4} parent=0 // loop_header_branch
    %17 = sbr.rel (%p15) target = $region8
  $region5: #{double_conv.4} parent=0 // loop_body
    %s19 = ssub.s32 %s14, 1
    %s20 = ssub.s32 %s14, 2
    %s27 = sadd.s32 1, %s22
    %p28 = scmp.ge.s32.totalorder %s27, 4
    %s29 = scalar_select %p28, 0, %s27
    %s30 = sadd.s32 1, %s21
    %s31 = scalar_select %p28, %s30, %s21
    %p32 = scmp.ge.s32.totalorder %s31, 2
    %s33 = scalar_select %p32, 0, %s31
    %s34 = smul.u32 %s22, 4
    %s35 = ssub.s32 %s34, 1
    %p36 = scmp.gt.s32.totalorder %s35, 0
    %s37 = scalar_select %p36, %s35, 0
    %s38 = smul.u32 %s29, 4
    %s39 = ssub.s32 %s38, 1
    %p40 = scmp.gt.s32.totalorder %s39, 0
    %s41 = scalar_select %p40, %s39, 0
    %s42 = ssub.s32 %s21, %s33
    %s43 = ssub.s32 %s37, %s41
    %s44 = sor.u32 %s42, %s43
    %p45 = scmp.eq.s32.totalorder %s44, 0
    %s47 = sadd.s32 %s46, 1
    %s48 = scalar_select %p45, %s46, %s47
    %p51 = pneg %p45
    %p52 = scmp.eq.s32.totalorder %s14, 7
    %p53 = por %p51, %p52
    %p54 = scmp.ne.s32.totalorder %s46, %s49
    %p55 = scmp.eq.s32.totalorder %s14, 0
    %p56 = por %p54, %p55
    %p57 = scmp.ne.s32.totalorder %s46, %s49
    %p58 = scmp.eq.s32.totalorder %s19, 7
    %p59 = por %p57, %p58
    %p60 = scmp.ne.s32.totalorder %s49, %s50
    %p61 = scmp.eq.s32.totalorder %s19, 0
    %p62 = por %p60, %p61
    %p63 = scmp.ne.s32.totalorder %s49, %s50
    %p64 = scmp.eq.s32.totalorder %s20, 7
    %p65 = por %p63, %p64
    %p67 = scmp.ne.s32.totalorder %s50, %s66
    %p68 = scmp.eq.s32.totalorder %s20, 0
    %p69 = por %p67, %p68
    %s70 = ssub.s32 %s21, %s33
    %s71 = ssub.s32 %s22, %s29
    %s72 = sor.u32 %s70, %s71
    %p73 = scmp.eq.s32.totalorder %s72, 0
    %s75 = sadd.s32 %s74, 1
    %s76 = scalar_select %p73, %s74, %s75
    %p79 = pneg %p73
    %p80 = scmp.eq.s32.totalorder %s14, 7
    %p81 = por %p79, %p80
    %p82 = scmp.ne.s32.totalorder %s74, %s77
    %p83 = scmp.eq.s32.totalorder %s14, 0
    %p84 = por %p82, %p83
    %p85 = scmp.ne.s32.totalorder %s74, %s77
    %p86 = scmp.eq.s32.totalorder %s19, 7
    %p87 = por %p85, %p86
    %p88 = scmp.ne.s32.totalorder %s77, %s78
    %p89 = scmp.eq.s32.totalorder %s19, 0
    %p90 = por %p88, %p89
    %p91 = scmp.ne.s32.totalorder %s77, %s78
    %p92 = scmp.eq.s32.totalorder %s20, 7
    %p93 = por %p91, %p92
    %p95 = scmp.ne.s32.totalorder %s78, %s94
    %p96 = scmp.eq.s32.totalorder %s20, 0
    %p97 = por %p95, %p96
    %s98 = smul.u32 %s22, 4
    %s99 = sadd.s32 %s98, 4
    %p100 = scmp.lt.s32.totalorder %s99, 15
    %s101 = scalar_select %p100, %s99, 15
    %s102 = smul.u32 %s29, 4
    %s103 = sadd.s32 %s102, 4
    %p104 = scmp.lt.s32.totalorder %s103, 15
    %s105 = scalar_select %p104, %s103, 15
    %s106 = ssub.s32 %s21, %s33
    %s107 = ssub.s32 %s101, %s105
    %s108 = sor.u32 %s106, %s107
    %p109 = scmp.eq.s32.totalorder %s108, 0
    %s111 = sadd.s32 %s110, 1
    %s112 = scalar_select %p109, %s110, %s111
    %p115 = pneg %p109
    %p116 = scmp.eq.s32.totalorder %s14, 7
    %p117 = por %p115, %p116
    %p118 = scmp.ne.s32.totalorder %s110, %s113
    %p119 = scmp.eq.s32.totalorder %s14, 0
    %p120 = por %p118, %p119
    %p121 = scmp.ne.s32.totalorder %s110, %s113
    %p122 = scmp.eq.s32.totalorder %s19, 7
    %p123 = por %p121, %p122
    %p124 = scmp.ne.s32.totalorder %s113, %s114
    %p125 = scmp.eq.s32.totalorder %s19, 0
    %p126 = por %p124, %p125
    %p127 = scmp.ne.s32.totalorder %s113, %s114
    %p128 = scmp.eq.s32.totalorder %s20, 7
    %p129 = por %p127, %p128
    %p131 = scmp.ne.s32.totalorder %s114, %s130
    %p132 = scmp.eq.s32.totalorder %s20, 0
    %p133 = por %p131, %p132
    %s135 = sadd.s32 %s134, 1
    %p138 = scmp.eq.s32.totalorder %s14, 7
    %p139 = scmp.ne.s32.totalorder %s134, %s136
    %p140 = scmp.eq.s32.totalorder %s14, 0
    %p141 = por %p139, %p140
    %p142 = scmp.ne.s32.totalorder %s134, %s136
    %p143 = scmp.eq.s32.totalorder %s19, 7
    %p144 = por %p142, %p143
    %p145 = scmp.ne.s32.totalorder %s136, %s137
    %p146 = scmp.eq.s32.totalorder %s19, 0
    %p147 = por %p145, %p146
    %p148 = scmp.ne.s32.totalorder %s136, %s137
    %p149 = scmp.eq.s32.totalorder %s20, 7
    %p150 = por %p148, %p149
    %p152 = scmp.ne.s32.totalorder %s137, %s151
    %p153 = scmp.eq.s32.totalorder %s20, 0
    %p154 = por %p152, %p153
    %s156 = sadd.s32 %s155, 1
    %p159 = scmp.eq.s32.totalorder %s14, 7
    %p160 = scmp.ne.s32.totalorder %s155, %s157
    %p161 = scmp.eq.s32.totalorder %s14, 0
    %p162 = por %p160, %p161
    %p163 = scmp.ne.s32.totalorder %s155, %s157
    %p164 = scmp.eq.s32.totalorder %s19, 7
    %p165 = por %p163, %p164
    %p166 = scmp.ne.s32.totalorder %s157, %s158
    %p167 = scmp.eq.s32.totalorder %s19, 0
    %p168 = por %p166, %p167
    %p169 = scmp.ne.s32.totalorder %s157, %s158
    %p170 = scmp.eq.s32.totalorder %s20, 7
    %p171 = por %p169, %p170
    %p173 = scmp.ne.s32.totalorder %s158, %s172
    %p174 = scmp.eq.s32.totalorder %s20, 0
    %p175 = por %p173, %p174
    %s177 = sadd.s32 %s176, 1
    %p180 = scmp.eq.s32.totalorder %s14, 7
    %p181 = scmp.ne.s32.totalorder %s176, %s178
    %p182 = scmp.eq.s32.totalorder %s14, 0
    %p183 = por %p181, %p182
    %p184 = scmp.ne.s32.totalorder %s176, %s178
    %p185 = scmp.eq.s32.totalorder %s19, 7
    %p186 = por %p184, %p185
    %p187 = scmp.ne.s32.totalorder %s178, %s179
    %p188 = scmp.eq.s32.totalorder %s19, 0
    %p189 = por %p187, %p188
    %p190 = scmp.ne.s32.totalorder %s178, %s179
    %p191 = scmp.eq.s32.totalorder %s20, 7
    %p192 = por %p190, %p191
    %p194 = scmp.ne.s32.totalorder %s179, %s193
    %p195 = scmp.eq.s32.totalorder %s20, 0
    %p196 = por %p194, %p195
    %s197 = ssub.s32 %s21, %s33
    %s198 = ssub.s32 %s22, %s29
    %s199 = sor.u32 %s197, %s198
    %p200 = scmp.eq.s32.totalorder %s199, 0
    %s202 = sadd.s32 %s201, 1
    %s203 = scalar_select %p200, %s201, %s202
    %p206 = pneg %p200
    %p207 = scmp.eq.s32.totalorder %s14, 7
    %p208 = por %p206, %p207
    %p209 = scmp.ne.s32.totalorder %s201, %s204
    %p210 = scmp.eq.s32.totalorder %s14, 0
    %p211 = por %p209, %p210
    %p212 = scmp.ne.s32.totalorder %s201, %s204
    %p213 = scmp.eq.s32.totalorder %s19, 7
    %p214 = por %p212, %p213
    %p215 = scmp.ne.s32.totalorder %s204, %s205
    %p216 = scmp.eq.s32.totalorder %s19, 0
    %p217 = por %p215, %p216
    %p218 = scmp.ne.s32.totalorder %s204, %s205
    %p219 = scmp.eq.s32.totalorder %s20, 7
    %p220 = por %p218, %p219
    %p222 = scmp.ne.s32.totalorder %s205, %s221
    %p223 = scmp.eq.s32.totalorder %s20, 0
    %p224 = por %p222, %p223
    %s225 = ssub.s32 %s21, %s33
    %s226 = ssub.s32 %s22, %s29
    %s227 = sor.u32 %s225, %s226
    %p228 = scmp.eq.s32.totalorder %s227, 0
    %s230 = sadd.s32 %s229, 1
    %s231 = scalar_select %p228, %s229, %s230
    %p234 = pneg %p228
    %p235 = scmp.eq.s32.totalorder %s14, 7
    %p236 = por %p234, %p235
    %p237 = scmp.ne.s32.totalorder %s229, %s232
    %p238 = scmp.eq.s32.totalorder %s14, 0
    %p239 = por %p237, %p238
    %p240 = scmp.ne.s32.totalorder %s229, %s232
    %p241 = scmp.eq.s32.totalorder %s19, 7
    %p242 = por %p240, %p241
    %p243 = scmp.ne.s32.totalorder %s232, %s233
    %p244 = scmp.eq.s32.totalorder %s19, 0
    %p245 = por %p243, %p244
    %p246 = scmp.ne.s32.totalorder %s232, %s233
    %p247 = scmp.eq.s32.totalorder %s20, 7
    %p248 = por %p246, %p247
    %p250 = scmp.ne.s32.totalorder %s233, %s249
    %p251 = scmp.eq.s32.totalorder %s20, 0
    %p252 = por %p250, %p251
    %p253 = scmp.le.s32.totalorder 1, %s14
    %p254 = scmp.lt.s32.totalorder %s14, 9
    %p255 = pnand %p253, %p254
    %p256 = pneg %p255
    // Predicated region
    $region9: #{double_conv.4} parent=5 // pred_check
      _
    $region10: #{double_conv.4} parent=5 // pred_check_branch
      %258 = sbr.rel (%p255) target = $region12
    $region11: #{double_conv.4} parent=5 // pred_region
      %s259 = ssub.s32 %s14, 1
      // Predicated region
      $region13: #{double_conv.4} parent=11 // pred_check
        %p260 = pneg %p147
      $region14: #{double_conv.4} parent=11 // pred_check_branch
        %262 = sbr.rel (%p260) target = $region16
      $region15: #{double_conv.4} parent=11 // pred_region
        _
      $region16: #{double_conv.4} parent=11 // pred_fallthru
        _
      // Predicated region
      $region17: #{double_conv.4} parent=11 // pred_check
        %p263 = pneg %p168
      $region18: #{double_conv.4} parent=11 // pred_check_branch
        %265 = sbr.rel (%p263) target = $region20
      $region19: #{double_conv.4} parent=11 // pred_region
        _
      $region20: #{double_conv.4} parent=11 // pred_fallthru
        _
      // Predicated region
      $region21: #{double_conv.4} parent=11 // pred_check
        %p266 = pneg %p189
      $region22: #{double_conv.4} parent=11 // pred_check_branch
        %268 = sbr.rel (%p266) target = $region24
      $region23: #{double_conv.4} parent=11 // pred_region
        _
      $region24: #{double_conv.4} parent=11 // pred_fallthru
        _
    $region12: #{double_conv.4} parent=5 // pred_fallthru
      _
    %p269 = scmp.lt.s32.totalorder %s14, 8
    // Predicated region
    $region25: #{double_conv.4} parent=5 // pred_check
      %p270 = pneg %p269
    $region26: #{double_conv.4} parent=5 // pred_check_branch
      %272 = sbr.rel (%p270) target = $region28
    $region27: #{double_conv.4} parent=5 // pred_region
      // Predicated region
      $region29: #{double_conv.4} parent=27 // pred_check
        %p273 = pneg %p56
      $region30: #{double_conv.4} parent=27 // pred_check_branch
        %275 = sbr.rel (%p273) target = $region32
      $region31: #{double_conv.4} parent=27 // pred_region
        %s276 = smul.u32 %s22, 4
        %s277 = ssub.s32 %s276, 1
        %p278 = scmp.gt.s32.totalorder %s277, 0
        %s279 = scalar_select %p278, %s277, 0
        %p280 = scmp.lt.s32.totalorder %s21, 1
        %s281 = scalar_select %p280, %s21, 1
        %p282 = scmp.lt.s32.totalorder %s279, 15
        %s283 = scalar_select %p282, %s279, 15
        %s284 = smul.addr %s283, 2
        %s285 = smul.addr %s281, 32
        %s286 = sadd.s32 %s284, %s285
        %s287 = smul.addr %s286, 4
        %s288 = scalar_lea.vmem %s0, %s287
        %s289 = smul.u32 %s22, 4
        %s290 = ssub.s32 %s289, 1
        %p291 = scmp.gt.s32.totalorder %s290, 0
        %s292 = scalar_select %p291, %s290, 0
      $region32: #{double_conv.4} parent=27 // pred_fallthru
        _
      // Predicated region
      $region33: #{double_conv.4} parent=27 // pred_check
        %p293 = pneg %p84
      $region34: #{double_conv.4} parent=27 // pred_check_branch
        %295 = sbr.rel (%p293) target = $region36
      $region35: #{double_conv.4} parent=27 // pred_region
        %s296 = smul.u32 4, %s22
        %p297 = scmp.lt.s32.totalorder %s21, 1
        %s298 = scalar_select %p297, %s21, 1
        %p299 = scmp.lt.s32.totalorder %s296, 15
        %s300 = scalar_select %p299, %s296, 15
        %s301 = smul.addr %s300, 2
        %s302 = smul.addr %s298, 32
        %s303 = sadd.s32 %s301, %s302
        %s304 = smul.addr %s303, 4
        %s305 = scalar_lea.vmem %s1, %s304
        %s306 = smul.u32 4, %s22
      $region36: #{double_conv.4} parent=27 // pred_fallthru
        _
      // Predicated region
      $region37: #{double_conv.4} parent=27 // pred_check
        %p307 = pneg %p120
      $region38: #{double_conv.4} parent=27 // pred_check_branch
        %309 = sbr.rel (%p307) target = $region40
      $region39: #{double_conv.4} parent=27 // pred_region
        %s310 = smul.u32 %s22, 4
        %s311 = sadd.s32 %s310, 4
        %p312 = scmp.lt.s32.totalorder %s311, 15
        %s313 = scalar_select %p312, %s311, 15
        %p314 = scmp.lt.s32.totalorder %s21, 1
        %s315 = scalar_select %p314, %s21, 1
        %p316 = scmp.lt.s32.totalorder %s313, 15
        %s317 = scalar_select %p316, %s313, 15
        %s318 = smul.addr %s317, 2
        %s319 = smul.addr %s315, 32
        %s320 = sadd.s32 %s318, %s319
        %s321 = smul.addr %s320, 4
        %s322 = scalar_lea.vmem %s2, %s321
        %s323 = smul.u32 %s22, 4
        %s324 = sadd.s32 %s323, 4
        %p325 = scmp.lt.s32.totalorder %s324, 15
        %s326 = scalar_select %p325, %s324, 15
      $region40: #{double_conv.4} parent=27 // pred_fallthru
        _
    $region28: #{double_conv.4} parent=5 // pred_fallthru
      _
    %p327 = scmp.le.s32.totalorder 1, %s14
    %p328 = scmp.lt.s32.totalorder %s14, 9
    %p329 = pnand %p327, %p328
    %p330 = pneg %p329
    // Predicated region
    $region41: #{double_conv.4} parent=5 // pred_check
      _
    $region42: #{double_conv.4} parent=5 // pred_check_branch
      %332 = sbr.rel (%p329) target = $region44
    $region43: #{double_conv.4} parent=5 // pred_region
      %s333 = ssub.s32 %s14, 1
      %s334 = smul.u32 %s24, 4
      %s335 = ssub.s32 %s334, 1
      %p336 = scmp.gt.s32.totalorder %s335, 0
      %s337 = scalar_select %p336, %s335, 0
      %p338 = scmp.lt.s32.totalorder %s23, 1
      %s339 = scalar_select %p338, %s23, 1
      %p340 = scmp.lt.s32.totalorder %s337, 15
      %s341 = scalar_select %p340, %s337, 15
      %s342 = smul.addr %s341, 2
      %s343 = smul.addr %s339, 32
      %s344 = sadd.s32 %s342, %s343
      %s345 = smul.addr %s344, 4
      %s346 = scalar_lea.vmem %s0, %s345
      %p347 = pneg %p62
      %p348 = pneg %p59
      %s349 = smul.u32 4, %s24
      %p350 = scmp.lt.s32.totalorder %s23, 1
      %s351 = scalar_select %p350, %s23, 1
      %p352 = scmp.lt.s32.totalorder %s349, 15
      %s353 = scalar_select %p352, %s349, 15
      %s354 = smul.addr %s353, 2
      %s355 = smul.addr %s351, 32
      %s356 = sadd.s32 %s354, %s355
      %s357 = smul.addr %s356, 4
      %s358 = scalar_lea.vmem %s1, %s357
      %p359 = pneg %p90
      %p360 = pneg %p87
      %s361 = smul.u32 %s24, 4
      %s362 = sadd.s32 %s361, 4
      %p363 = scmp.lt.s32.totalorder %s362, 15
      %s364 = scalar_select %p363, %s362, 15
      %p365 = scmp.lt.s32.totalorder %s23, 1
      %s366 = scalar_select %p365, %s23, 1
      %p367 = scmp.lt.s32.totalorder %s364, 15
      %s368 = scalar_select %p367, %s364, 15
      %s369 = smul.addr %s368, 2
      %s370 = smul.addr %s366, 32
      %s371 = sadd.s32 %s369, %s370
      %s372 = smul.addr %s371, 4
      %s373 = scalar_lea.vmem %s2, %s372
      %p374 = pneg %p126
      %p375 = pneg %p123
      %p376 = pneg %p147
      %p377 = pneg %p144
      %p378 = pneg %p168
      %p379 = pneg %p165
      %p380 = pneg %p189
      %p381 = pneg %p186
      %p382 = pneg %p217
      %p383 = pneg %p214
      %s384 = smul.u32 4, %s24
      %p385 = scmp.lt.s32.totalorder %s23, 1
      %s386 = scalar_select %p385, %s23, 1
      %p387 = scmp.lt.s32.totalorder %s384, 15
      %s388 = scalar_select %p387, %s384, 15
      %s389 = smul.addr %s388, 2
      %s390 = smul.addr %s386, 32
      %s391 = sadd.s32 %s389, %s390
      %s392 = smul.addr %s391, 4
      %s393 = scalar_lea.vmem %s6, %s392
      %p394 = pneg %p245
      %p395 = pneg %p242
      %p396 = scmp.lt.s32.totalorder %s23, 1
      %s397 = scalar_select %p396, %s23, 1
      %p398 = scmp.lt.s32.totalorder %s24, 3
      %s399 = scalar_select %p398, %s24, 3
      %s400 = smul.addr %s397, 4
      %s401 = sadd.s32 %s399, %s400
      %s402 = smul.addr %s401, 2
      %s403 = scalar_lea.vmem %s7, %s402
      %s404 = smul.u32 %s24, 4
      %s405 = ssub.s32 %s404, 1
      %p406 = scmp.gt.s32.totalorder %s405, 0
      %s407 = scalar_select %p406, %s405, 0
      %p408 = scmp.lt.s32.totalorder %s23, 1
      %s409 = scalar_select %p408, %s23, 1
      %p410 = scmp.lt.s32.totalorder %s407, 15
      %s411 = scalar_select %p410, %s407, 15
      %s412 = smul.addr %s411, 2
      %s413 = smul.addr %s409, 32
      %s414 = sadd.s32 %s412, %s413
      %s415 = smul.addr %s414, 4
      %s416 = scalar_lea.vmem %s0, %s415
      %s417 = smul.u32 %s24, 4
      %s418 = ssub.s32 %s417, 1
      %p419 = scmp.gt.s32.totalorder %s418, 0
      %s420 = scalar_select %p419, %s418, 0
      %s421 = smul.u32 4, %s24
      %p422 = scmp.lt.s32.totalorder %s23, 1
      %s423 = scalar_select %p422, %s23, 1
      %p424 = scmp.lt.s32.totalorder %s421, 15
      %s425 = scalar_select %p424, %s421, 15
      %s426 = smul.addr %s425, 2
      %s427 = smul.addr %s423, 32
      %s428 = sadd.s32 %s426, %s427
      %s429 = smul.addr %s428, 4
      %s430 = scalar_lea.vmem %s1, %s429
      %s431 = smul.u32 4, %s24
      %s432 = smul.u32 %s24, 4
      %s433 = sadd.s32 %s432, 4
      %p434 = scmp.lt.s32.totalorder %s433, 15
      %s435 = scalar_select %p434, %s433, 15
      %p436 = scmp.lt.s32.totalorder %s23, 1
      %s437 = scalar_select %p436, %s23, 1
      %p438 = scmp.lt.s32.totalorder %s435, 15
      %s439 = scalar_select %p438, %s435, 15
      %s440 = smul.addr %s439, 2
      %s441 = smul.addr %s437, 32
      %s442 = sadd.s32 %s440, %s441
      %s443 = smul.addr %s442, 4
      %s444 = scalar_lea.vmem %s2, %s443
      %s445 = smul.u32 %s24, 4
      %s446 = sadd.s32 %s445, 4
      %p447 = scmp.lt.s32.totalorder %s446, 15
      %s448 = scalar_select %p447, %s446, 15
      %s449 = smul.u32 4, %s24
      %p450 = scmp.lt.s32.totalorder %s23, 1
      %s451 = scalar_select %p450, %s23, 1
      %p452 = scmp.lt.s32.totalorder %s449, 15
      %s453 = scalar_select %p452, %s449, 15
      %s454 = smul.addr %s453, 2
      %s455 = smul.addr %s451, 32
      %s456 = sadd.s32 %s454, %s455
      %s457 = smul.addr %s456, 4
      %s458 = scalar_lea.vmem %s6, %s457
      %s459 = smul.u32 4, %s24
      %p460 = scmp.lt.s32.totalorder %s23, 1
      %s461 = scalar_select %p460, %s23, 1
      %p462 = scmp.lt.s32.totalorder %s24, 3
      %s463 = scalar_select %p462, %s24, 3
      %s464 = smul.addr %s461, 4
      %s465 = sadd.s32 %s463, %s464
      %s466 = smul.addr %s465, 2
      %s467 = scalar_lea.vmem %s7, %s466
      %vm469 = vcmask 1040384
      %vm470 = vsmask.f32 256
      %vm471 = vmand %vm469, %vm470
      %v472 = vld [vmem:[#allocation2] sm:$0x1]
      %v473 = vsel %vm471, 0, %v472
      %474 = vst [vmem:[#allocation2] sm:$0x1] %v473
      %v475 = vld [vmem:[#allocation2 + $0xc] sm:$0x1]
      %v476 = vsel %vm471, 0, %v475
      %477 = vst [vmem:[#allocation2 + $0xc] sm:$0x1] %v476
      %v478 = vld [vmem:[#allocation2 + $0x18] sm:$0x1]
      %v479 = vsel %vm471, 0, %v478
      %480 = vst [vmem:[#allocation2 + $0x18] sm:$0x1] %v479
      %v481 = vld [vmem:[#allocation2 + $0x24] sm:$0x1]
      %v482 = vsel %vm471, 0, %v481
      %483 = vst [vmem:[#allocation2 + $0x24] sm:$0x1] %v482
      %v484 = vld [vmem:[#allocation2 + $0x30] sm:$0x1]
      %v485 = vsel %vm471, 0, %v484
      %486 = vst [vmem:[#allocation2 + $0x30] sm:$0x1] %v485
      %v487 = vld [vmem:[#allocation2 + $0x3c] sm:$0x1]
      %v488 = vsel %vm471, 0, %v487
      %489 = vst [vmem:[#allocation2 + $0x3c] sm:$0x1] %v488
      %vm490 = vsmask.f32 7938
      %vm491 = vmand %vm469, %vm490
      %v492 = vld [vmem:[#allocation2 + $0x8] sm:$0x1]
      %v493 = vsel %vm491, 0, %v492
      %494 = vst [vmem:[#allocation2 + $0x8] sm:$0x1] %v493
      %v495 = vld [vmem:[#allocation2 + $0x14] sm:$0x1]
      %v496 = vsel %vm491, 0, %v495
      %497 = vst [vmem:[#allocation2 + $0x14] sm:$0x1] %v496
      %v498 = vld [vmem:[#allocation2 + $0x20] sm:$0x1]
      %v499 = vsel %vm491, 0, %v498
      %500 = vst [vmem:[#allocation2 + $0x20] sm:$0x1] %v499
      %v501 = vld [vmem:[#allocation2 + $0x2c] sm:$0x1]
      %v502 = vsel %vm491, 0, %v501
      %503 = vst [vmem:[#allocation2 + $0x2c] sm:$0x1] %v502
      %v504 = vld [vmem:[#allocation2 + $0x38] sm:$0x1]
      %v505 = vsel %vm491, 0, %v504
      %506 = vst [vmem:[#allocation2 + $0x38] sm:$0x1] %v505
      %v507 = vld [vmem:[#allocation2 + $0x44] sm:$0x1]
      %v508 = vsel %vm491, 0, %v507
      %509 = vst [vmem:[#allocation2 + $0x44] sm:$0x1] %v508
      %v510 = vld [vmem:[%s416] sm:$0xf]
      %v511 = vld [vmem:[%s416 + $0x4] sm:$0xf]
      %v512 = vunpack.c.l.bf16 %v510
      %v513 = vunpack.c.l.bf16 %v511
      %v514 = vld [vmem:[%s4] sm:$0x1]
      %v516 = vlaneseq
      %v517 = vshrl.u32 %v516, 7
      %v518 = vsub.s32 0, %v517
      %v519 = vrot.slane %v514, %v518
      %v521 = vmul.f32 %v512, %v519
      %v522 = vmul.f32 %v513, %v519
      %v523 = vld [vmem:[%s5] sm:$0x1]
      %v525 = vlaneseq
      %v526 = vshrl.u32 %v525, 7
      %v527 = vsub.s32 0, %v526
      %v528 = vrot.slane %v523, %v527
      %v530 = vadd.f32 %v521, %v528
      %v531 = vadd.f32 %v522, %v528
      %v532 = vmax.f32 %v530, 0.0
      %v533 = vmax.f32 %v531, 0.0
      %v534 = vpack.c.bf16 %v533, %v532
      %p535 = scmp.eq.s32.totalorder %s24, 0
      %s536 = scalar_select %p535, 1, 0
      %v537 = vstv %s536
      %vm538 = vcmp.eq.s32.totalorder %v537, 1
      %v539 = vsel %vm538, 0, %v534
      %v541 = vunpack.c.l.b16 %v539
      %v542 = vunpack.c.h.b16 %v539
      %v543 = vpack.c.b16 %v541, %v541
      %v544 = vpack.c.b16 %v542, %v542
      %vm545 = vsmask.f32 4368
      %vm546 = vmor %vm470, %vm545
      %v548 = vshrl.u32 %v543, 16
      %v550 = vrot.slane %v548, 7
      %v551 = vshll.u32 %v543, 16
      %v553 = vor.u32 %v550, %v551
      %v554 = vrot.slane %v550, 4
      %v556 = vshrl.u32 %v544, 16
      %v558 = vrot.slane %v556, 7
      %v559 = vshll.u32 %v544, 16
      %v561 = vor.u32 %v558, %v559
      %v562 = vsel %vm546, %v554, %v561
      %v563 = vrot.slane %v558, 4
      %vm567 = vcmask 1043456
      %vm568 = vmand %vm567, %vm490
      %v569 = vld [vmem:[#allocation2] sm:$0xf]
      %v570 = vsel %vm568, %v553, %v569
      %571 = vst [vmem:[#allocation2] sm:$0xf] %v570
      %572 = vst [vmem:[#allocation2 + $0x4] sm:$0xf] %v562
      %v573 = vld [vmem:[#allocation2 + $0x8] sm:$0x1]
      %v574 = vsel %vm471, %v563, %v573
      %575 = vst [vmem:[#allocation2 + $0x8] sm:$0x1] %v574
      %v576 = vld [vmem:[%s444] sm:$0xf]
      %v577 = vld [vmem:[%s444 + $0x4] sm:$0xf]
      %v578 = vunpack.c.l.bf16 %v576
      %v579 = vunpack.c.l.bf16 %v577
      %v580 = vld [vmem:[%s4] sm:$0x1]
      %v582 = vlaneseq
      %v583 = vshrl.u32 %v582, 7
      %v584 = vsub.s32 0, %v583
      %v585 = vrot.slane %v580, %v584
      %v587 = vmul.f32 %v578, %v585
      %v588 = vmul.f32 %v579, %v585
      %v589 = vld [vmem:[%s5] sm:$0x1]
      %v591 = vlaneseq
      %v592 = vshrl.u32 %v591, 7
      %v593 = vsub.s32 0, %v592
      %v594 = vrot.slane %v589, %v593
      %v596 = vadd.f32 %v587, %v594
      %v597 = vadd.f32 %v588, %v594
      %v598 = vmax.f32 %v596, 0.0
      %v599 = vmax.f32 %v597, 0.0
      %v600 = vpack.c.bf16 %v599, %v598
      %p601 = scmp.eq.s32.totalorder %s24, 3
      %s602 = scalar_select %p601, 1, 0
      %v603 = vstv %s602
      %vm604 = vcmp.eq.s32.totalorder %v603, 1
      %v605 = vsel %vm604, 0, %v600
      %v607 = vunpack.c.l.b16 %v605
      %v608 = vunpack.c.h.b16 %v605
      %v609 = vpack.c.b16 %v607, %v607
      %v610 = vpack.c.b16 %v608, %v608
      %v612 = vshrl.u32 %v609, 16
      %v614 = vrot.slane %v612, 7
      %v615 = vshll.u32 %v609, 16
      %v617 = vor.u32 %v614, %v615
      %v618 = vrot.slane %v614, 4
      %v620 = vshrl.u32 %v610, 16
      %v622 = vrot.slane %v620, 7
      %v623 = vshll.u32 %v610, 16
      %v625 = vor.u32 %v622, %v623
      %v626 = vsel %vm546, %v618, %v625
      %v627 = vrot.slane %v622, 4
      %s631 = scalar_lea.vmem [#allocation2], 60
      %v632 = vld [vmem:[%s631] sm:$0xf]
      %v633 = vsel %vm568, %v617, %v632
      %634 = vst [vmem:[%s631] sm:$0xf] %v633
      %635 = vst [vmem:[%s631 + $0x4] sm:$0xf] %v626
      %v636 = vld [vmem:[%s631 + $0x8] sm:$0x1]
      %v637 = vsel %vm471, %v627, %v636
      %638 = vst [vmem:[%s631 + $0x8] sm:$0x1] %v637
      %v639 = vld [vmem:[%s430] sm:$0xf]
      %v640 = vld [vmem:[%s430 + $0x4] sm:$0xf]
      %v641 = vld [vmem:[%s430 + $0x8] sm:$0xf]
      %v642 = vld [vmem:[%s430 + $0xc] sm:$0xf]
      %v643 = vld [vmem:[%s430 + $0x10] sm:$0xf]
      %v644 = vld [vmem:[%s430 + $0x14] sm:$0xf]
      %v645 = vld [vmem:[%s430 + $0x18] sm:$0xf]
      %v646 = vld [vmem:[%s430 + $0x1c] sm:$0xf]
      %v647 = vunpack.c.l.bf16 %v639
      %v648 = vunpack.c.l.bf16 %v640
      %v649 = vunpack.c.l.bf16 %v641
      %v650 = vunpack.c.l.bf16 %v642
      %v651 = vunpack.c.l.bf16 %v643
      %v652 = vunpack.c.l.bf16 %v644
      %v653 = vunpack.c.l.bf16 %v645
      %v654 = vunpack.c.l.bf16 %v646
      %v655 = vld [vmem:[%s4] sm:$0x1]
      %v657 = vlaneseq
      %v658 = vshrl.u32 %v657, 7
      %v659 = vsub.s32 0, %v658
      %v660 = vrot.slane %v655, %v659
      %v662 = vmul.f32 %v647, %v660
      %v663 = vmul.f32 %v648, %v660
      %v664 = vmul.f32 %v649, %v660
      %v665 = vmul.f32 %v650, %v660
      %v666 = vmul.f32 %v651, %v660
      %v667 = vmul.f32 %v652, %v660
      %v668 = vmul.f32 %v653, %v660
      %v669 = vmul.f32 %v654, %v660
      %v670 = vld [vmem:[%s5] sm:$0x1]
      %v672 = vlaneseq
      %v673 = vshrl.u32 %v672, 7
      %v674 = vsub.s32 0, %v673
      %v675 = vrot.slane %v670, %v674
      %v677 = vadd.f32 %v662, %v675
      %v678 = vadd.f32 %v663, %v675
      %v679 = vadd.f32 %v664, %v675
      %v680 = vadd.f32 %v665, %v675
      %v681 = vadd.f32 %v666, %v675
      %v682 = vadd.f32 %v667, %v675
      %v683 = vadd.f32 %v668, %v675
      %v684 = vadd.f32 %v669, %v675
      %v685 = vmax.f32 %v677, 0.0
      %v686 = vmax.f32 %v678, 0.0
      %v687 = vmax.f32 %v679, 0.0
      %v688 = vmax.f32 %v680, 0.0
      %v689 = vmax.f32 %v681, 0.0
      %v690 = vmax.f32 %v682, 0.0
      %v691 = vmax.f32 %v683, 0.0
      %v692 = vmax.f32 %v684, 0.0
      %v693 = vpack.c.bf16 %v686, %v685
      %v694 = vpack.c.bf16 %v688, %v687
      %v695 = vpack.c.bf16 %v690, %v689
      %v696 = vpack.c.bf16 %v692, %v691
      %v701 = vunpack.c.l.b16 %v693
      %v702 = vunpack.c.h.b16 %v693
      %v703 = vunpack.c.l.b16 %v694
      %v704 = vunpack.c.h.b16 %v694
      %v705 = vunpack.c.l.b16 %v695
      %v706 = vunpack.c.h.b16 %v695
      %v707 = vunpack.c.l.b16 %v696
      %v708 = vunpack.c.h.b16 %v696
      %v709 = vpack.c.b16 %v701, %v701
      %v710 = vpack.c.b16 %v702, %v702
      %v711 = vpack.c.b16 %v703, %v703
      %v712 = vpack.c.b16 %v704, %v704
      %v713 = vpack.c.b16 %v705, %v705
      %v714 = vpack.c.b16 %v706, %v706
      %v715 = vpack.c.b16 %v707, %v707
      %v716 = vpack.c.b16 %v708, %v708
      %v718 = vshrl.u32 %v709, 16
      %v720 = vrot.slane %v718, 7
      %v721 = vshll.u32 %v709, 16
      %v723 = vor.u32 %v720, %v721
      %v724 = vrot.slane %v720, 4
      %v726 = vshrl.u32 %v710, 16
      %v728 = vrot.slane %v726, 7
      %v729 = vshll.u32 %v710, 16
      %v731 = vor.u32 %v728, %v729
      %v732 = vsel %vm546, %v724, %v731
      %v733 = vrot.slane %v728, 4
      %v735 = vshrl.u32 %v711, 16
      %v737 = vrot.slane %v735, 7
      %v738 = vshll.u32 %v711, 16
      %v740 = vor.u32 %v737, %v738
      %v741 = vrot.slane %v737, 4
      %v743 = vshrl.u32 %v712, 16
      %v745 = vrot.slane %v743, 7
      %v746 = vshll.u32 %v712, 16
      %v748 = vor.u32 %v745, %v746
      %v749 = vsel %vm546, %v741, %v748
      %v750 = vrot.slane %v745, 4
      %v752 = vshrl.u32 %v713, 16
      %v754 = vrot.slane %v752, 7
      %v755 = vshll.u32 %v713, 16
      %v757 = vor.u32 %v754, %v755
      %v758 = vrot.slane %v754, 4
      %v760 = vshrl.u32 %v714, 16
      %v762 = vrot.slane %v760, 7
      %v763 = vshll.u32 %v714, 16
      %v765 = vor.u32 %v762, %v763
      %v766 = vsel %vm546, %v758, %v765
      %v767 = vrot.slane %v762, 4
      %v769 = vshrl.u32 %v715, 16
      %v771 = vrot.slane %v769, 7
      %v772 = vshll.u32 %v715, 16
      %v774 = vor.u32 %v771, %v772
      %v775 = vrot.slane %v771, 4
      %v777 = vshrl.u32 %v716, 16
      %v779 = vrot.slane %v777, 7
      %v780 = vshll.u32 %v716, 16
      %v782 = vor.u32 %v779, %v780
      %v783 = vsel %vm546, %v775, %v782
      %v784 = vrot.slane %v779, 4
      %s797 = scalar_lea.vmem [#allocation2], 12
      %v798 = vld [vmem:[%s797] sm:$0xf]
      %v799 = vsel %vm568, %v723, %v798
      %800 = vst [vmem:[%s797] sm:$0xf] %v799
      %801 = vst [vmem:[%s797 + $0x4] sm:$0xf] %v732
      %v802 = vld [vmem:[%s797 + $0x8] sm:$0x1]
      %v803 = vsel %vm471, %v733, %v802
      %804 = vst [vmem:[%s797 + $0x8] sm:$0x1] %v803
      %v805 = vld [vmem:[%s797 + $0xc] sm:$0xf]
      %v806 = vsel %vm568, %v740, %v805
      %807 = vst [vmem:[%s797 + $0xc] sm:$0xf] %v806
      %808 = vst [vmem:[%s797 + $0x10] sm:$0xf] %v749
      %v809 = vld [vmem:[%s797 + $0x14] sm:$0x1]
      %v810 = vsel %vm471, %v750, %v809
      %811 = vst [vmem:[%s797 + $0x14] sm:$0x1] %v810
      %v812 = vld [vmem:[%s797 + $0x18] sm:$0xf]
      %v813 = vsel %vm568, %v757, %v812
      %814 = vst [vmem:[%s797 + $0x18] sm:$0xf] %v813
      %815 = vst [vmem:[%s797 + $0x1c] sm:$0xf] %v766
      %v816 = vld [vmem:[%s797 + $0x20] sm:$0x1]
      %v817 = vsel %vm471, %v767, %v816
      %818 = vst [vmem:[%s797 + $0x20] sm:$0x1] %v817
      %v819 = vld [vmem:[%s797 + $0x24] sm:$0xf]
      %v820 = vsel %vm568, %v774, %v819
      %821 = vst [vmem:[%s797 + $0x24] sm:$0xf] %v820
      %822 = vst [vmem:[%s797 + $0x28] sm:$0xf] %v783
      %v823 = vld [vmem:[%s797 + $0x2c] sm:$0x1]
      %v824 = vsel %vm471, %v784, %v823
      %825 = vst [vmem:[%s797 + $0x2c] sm:$0x1] %v824
      %v826 = vld [vmem:[#allocation2] sm:$0xf]
      %v827 = vld [vmem:[#allocation2 + $0x4] sm:$0xf]
      %v828 = vld [vmem:[#allocation2 + $0x8] sm:$0x1]
      %v829 = vld [vmem:[#allocation2 + $0xc] sm:$0xf]
      %v830 = vld [vmem:[#allocation2 + $0x10] sm:$0xf]
      %v831 = vld [vmem:[#allocation2 + $0x14] sm:$0x1]
      %v832 = vld [vmem:[#allocation2 + $0x18] sm:$0xf]
      %v833 = vld [vmem:[#allocation2 + $0x1c] sm:$0xf]
      %v834 = vld [vmem:[#allocation2 + $0x20] sm:$0x1]
      %v835 = vld [vmem:[#allocation2 + $0x24] sm:$0xf]
      %v836 = vld [vmem:[#allocation2 + $0x28] sm:$0xf]
      %v837 = vld [vmem:[#allocation2 + $0x2c] sm:$0x1]
      %v838 = vld [vmem:[#allocation2 + $0x30] sm:$0xf]
      %v839 = vld [vmem:[#allocation2 + $0x34] sm:$0xf]
      %v840 = vld [vmem:[#allocation2 + $0x38] sm:$0x1]
      %v841 = vld [vmem:[#allocation2 + $0x3c] sm:$0xf]
      %v842 = vld [vmem:[#allocation2 + $0x40] sm:$0xf]
      %v843 = vld [vmem:[#allocation2 + $0x44] sm:$0x1]
      %v852 = vunpack.c.l.b16 %v826
      %v853 = vunpack.c.l.b16 %v827
      %v854 = vunpack.c.l.b16 %v829
      %v855 = vunpack.c.l.b16 %v830
      %v856 = vunpack.c.l.b16 %v832
      %v857 = vunpack.c.l.b16 %v833
      %v858 = vunpack.c.l.b16 %v835
      %v859 = vunpack.c.l.b16 %v836
      %v860 = vpack.c.b16 %v853, %v852
      %v861 = vpack.c.b16 %v855, %v854
      %v862 = vpack.c.b16 %v857, %v856
      %v863 = vpack.c.b16 %v859, %v858
      %868 = vst [vmem:[#allocation3] sm:$0xff] %v860
      %869 = vst [vmem:[#allocation3 + $0x48] sm:$0xff] %v861
      %870 = vst [vmem:[#allocation3 + $0x90] sm:$0xff] %v862
      %871 = vst [vmem:[#allocation3 + $0xd8] sm:$0xff] %v863
      %vm872 = vsmask.f32 3328
      %vm873 = vsmask.f32 7440
      %vm874 = vmor %vm872, %vm873
      %v876 = vshrl.u32 %v826, 16
      %v878 = vrot.slane %v876, 4
      %v879 = vshll.u32 %v826, 16
      %v881 = vrot.slane %v879, 5
      %v882 = vor.u32 %v878, %v881
      %v883 = vrot.slane %v882, 4
      %v885 = vshll.u32 %v827, 16
      %v887 = vrot.slane %v885, 5
      %v888 = vsel %vm874, %v883, %v887
      %v889 = vshrl.u32 %v827, 16
      %v891 = vrot.slane %v889, 4
      %v892 = vor.u32 %v891, %v887
      %v893 = vrot.slane %v892, 4
      %v895 = vshll.u32 %v828, 16
      %v897 = vrot.slane %v895, 5
      %v898 = vsel %vm874, %v893, %v897
      %v900 = vshrl.u32 %v829, 16
      %v902 = vrot.slane %v900, 4
      %v903 = vshll.u32 %v829, 16
      %v905 = vrot.slane %v903, 5
      %v906 = vor.u32 %v902, %v905
      %v907 = vrot.slane %v906, 4
      %v909 = vshll.u32 %v830, 16
      %v911 = vrot.slane %v909, 5
      %v912 = vsel %vm874, %v907, %v911
      %v913 = vshrl.u32 %v830, 16
      %v915 = vrot.slane %v913, 4
      %v916 = vor.u32 %v915, %v911
      %v917 = vrot.slane %v916, 4
      %v919 = vshll.u32 %v831, 16
      %v921 = vrot.slane %v919, 5
      %v922 = vsel %vm874, %v917, %v921
      %v924 = vshrl.u32 %v832, 16
      %v926 = vrot.slane %v924, 4
      %v927 = vshll.u32 %v832, 16
      %v929 = vrot.slane %v927, 5
      %v930 = vor.u32 %v926, %v929
      %v931 = vrot.slane %v930, 4
      %v933 = vshll.u32 %v833, 16
      %v935 = vrot.slane %v933, 5
      %v936 = vsel %vm874, %v931, %v935
      %v937 = vshrl.u32 %v833, 16
      %v939 = vrot.slane %v937, 4
      %v940 = vor.u32 %v939, %v935
      %v941 = vrot.slane %v940, 4
      %v943 = vshll.u32 %v834, 16
      %v945 = vrot.slane %v943, 5
      %v946 = vsel %vm874, %v941, %v945
      %v948 = vshrl.u32 %v835, 16
      %v950 = vrot.slane %v948, 4
      %v951 = vshll.u32 %v835, 16
      %v953 = vrot.slane %v951, 5
      %v954 = vor.u32 %v950, %v953
      %v955 = vrot.slane %v954, 4
      %v957 = vshll.u32 %v836, 16
      %v959 = vrot.slane %v957, 5
      %v960 = vsel %vm874, %v955, %v959
      %v961 = vshrl.u32 %v836, 16
      %v963 = vrot.slane %v961, 4
      %v964 = vor.u32 %v963, %v959
      %v965 = vrot.slane %v964, 4
      %v967 = vshll.u32 %v837, 16
      %v969 = vrot.slane %v967, 5
      %v970 = vsel %vm874, %v965, %v969
      %v971 = vunpack.c.l.b16 %v888
      %v972 = vunpack.c.l.b16 %v898
      %v973 = vunpack.c.l.b16 %v912
      %v974 = vunpack.c.l.b16 %v922
      %v975 = vunpack.c.l.b16 %v936
      %v976 = vunpack.c.l.b16 %v946
      %v977 = vunpack.c.l.b16 %v960
      %v978 = vunpack.c.l.b16 %v970
      %v979 = vpack.c.b16 %v972, %v971
      %v980 = vpack.c.b16 %v974, %v973
      %v981 = vpack.c.b16 %v976, %v975
      %v982 = vpack.c.b16 %v978, %v977
      %987 = vst [vmem:[#allocation3 + $0x8] sm:$0xff] %v979
      %988 = vst [vmem:[#allocation3 + $0x50] sm:$0xff] %v980
      %989 = vst [vmem:[#allocation3 + $0x98] sm:$0xff] %v981
      %990 = vst [vmem:[#allocation3 + $0xe0] sm:$0xff] %v982
      %vm995 = vcmask 1042432
      %vm996 = vcmask 1046532
      %vm997 = vmor %vm995, %vm996
      %v998 = vrot.slane %v826, 5
      %v999 = vrot.slane %v998, 4
      %v1000 = vrot.slane %v827, 5
      %v1001 = vsel %vm997, %v999, %v1000
      %v1002 = vrot.slane %v1000, 4
      %v1003 = vrot.slane %v828, 5
      %v1004 = vsel %vm997, %v1002, %v1003
      %v1005 = vrot.slane %v829, 5
      %v1006 = vrot.slane %v1005, 4
      %v1007 = vrot.slane %v830, 5
      %v1008 = vsel %vm997, %v1006, %v1007
      %v1009 = vrot.slane %v1007, 4
      %v1010 = vrot.slane %v831, 5
      %v1011 = vsel %vm997, %v1009, %v1010
      %v1012 = vrot.slane %v832, 5
      %v1013 = vrot.slane %v1012, 4
      %v1014 = vrot.slane %v833, 5
      %v1015 = vsel %vm997, %v1013, %v1014
      %v1016 = vrot.slane %v1014, 4
      %v1017 = vrot.slane %v834, 5
      %v1018 = vsel %vm997, %v1016, %v1017
      %v1019 = vrot.slane %v835, 5
      %v1020 = vrot.slane %v1019, 4
      %v1021 = vrot.slane %v836, 5
      %v1022 = vsel %vm997, %v1020, %v1021
      %v1023 = vrot.slane %v1021, 4
      %v1024 = vrot.slane %v837, 5
      %v1025 = vsel %vm997, %v1023, %v1024
      %v1026 = vunpack.c.l.b16 %v1001
      %v1027 = vunpack.c.l.b16 %v1004
      %v1028 = vunpack.c.l.b16 %v1008
      %v1029 = vunpack.c.l.b16 %v1011
      %v1030 = vunpack.c.l.b16 %v1015
      %v1031 = vunpack.c.l.b16 %v1018
      %v1032 = vunpack.c.l.b16 %v1022
      %v1033 = vunpack.c.l.b16 %v1025
      %v1034 = vpack.c.b16 %v1027, %v1026
      %v1035 = vpack.c.b16 %v1029, %v1028
      %v1036 = vpack.c.b16 %v1031, %v1030
      %v1037 = vpack.c.b16 %v1033, %v1032
      %1042 = vst [vmem:[#allocation3 + $0x10] sm:$0xff] %v1034
      %1043 = vst [vmem:[#allocation3 + $0x58] sm:$0xff] %v1035
      %1044 = vst [vmem:[#allocation3 + $0xa0] sm:$0xff] %v1036
      %1045 = vst [vmem:[#allocation3 + $0xe8] sm:$0xff] %v1037
      %v1048 = vunpack.c.l.b16 %v838
      %v1049 = vunpack.c.l.b16 %v839
      %v1050 = vpack.c.b16 %v1049, %v1048
      %1052 = vst [vmem:[#allocation3 + $0x18] sm:$0xff] %v861
      %1053 = vst [vmem:[#allocation3 + $0x60] sm:$0xff] %v862
      %1054 = vst [vmem:[#allocation3 + $0xa8] sm:$0xff] %v863
      %1055 = vst [vmem:[#allocation3 + $0xf0] sm:$0xff] %v1050
      %v1057 = vshrl.u32 %v838, 16
      %v1059 = vrot.slane %v1057, 4
      %v1060 = vshll.u32 %v838, 16
      %v1062 = vrot.slane %v1060, 5
      %v1063 = vor.u32 %v1059, %v1062
      %v1064 = vrot.slane %v1063, 4
      %v1066 = vshll.u32 %v839, 16
      %v1068 = vrot.slane %v1066, 5
      %v1069 = vsel %vm874, %v1064, %v1068
      %v1070 = vshrl.u32 %v839, 16
      %v1072 = vrot.slane %v1070, 4
      %v1073 = vor.u32 %v1072, %v1068
      %v1074 = vrot.slane %v1073, 4
      %v1076 = vshll.u32 %v840, 16
      %v1078 = vrot.slane %v1076, 5
      %v1079 = vsel %vm874, %v1074, %v1078
      %v1080 = vunpack.c.l.b16 %v1069
      %v1081 = vunpack.c.l.b16 %v1079
      %v1082 = vpack.c.b16 %v1081, %v1080
      %1084 = vst [vmem:[#allocation3 + $0x20] sm:$0xff] %v980
      %1085 = vst [vmem:[#allocation3 + $0x68] sm:$0xff] %v981
      %1086 = vst [vmem:[#allocation3 + $0xb0] sm:$0xff] %v982
      %1087 = vst [vmem:[#allocation3 + $0xf8] sm:$0xff] %v1082
      %v1089 = vrot.slane %v838, 5
      %v1090 = vrot.slane %v1089, 4
      %v1091 = vrot.slane %v839, 5
      %v1092 = vsel %vm997, %v1090, %v1091
      %v1093 = vrot.slane %v1091, 4
      %v1094 = vrot.slane %v840, 5
      %v1095 = vsel %vm997, %v1093, %v1094
      %v1096 = vunpack.c.l.b16 %v1092
      %v1097 = vunpack.c.l.b16 %v1095
      %v1098 = vpack.c.b16 %v1097, %v1096
      %1100 = vst [vmem:[#allocation3 + $0x28] sm:$0xff] %v1035
      %1101 = vst [vmem:[#allocation3 + $0x70] sm:$0xff] %v1036
      %1102 = vst [vmem:[#allocation3 + $0xb8] sm:$0xff] %v1037
      %1103 = vst [vmem:[#allocation3 + $0x100] sm:$0xff] %v1098
      %v1106 = vunpack.c.l.b16 %v841
      %v1107 = vunpack.c.l.b16 %v842
      %v1108 = vpack.c.b16 %v1107, %v1106
      %1110 = vst [vmem:[#allocation3 + $0x30] sm:$0xff] %v862
      %1111 = vst [vmem:[#allocation3 + $0x78] sm:$0xff] %v863
      %1112 = vst [vmem:[#allocation3 + $0xc0] sm:$0xff] %v1050
      %1113 = vst [vmem:[#allocation3 + $0x108] sm:$0xff] %v1108
      %v1115 = vshrl.u32 %v841, 16
      %v1117 = vrot.slane %v1115, 4
      %v1118 = vshll.u32 %v841, 16
      %v1120 = vrot.slane %v1118, 5
      %v1121 = vor.u32 %v1117, %v1120
      %v1122 = vrot.slane %v1121, 4
      %v1124 = vshll.u32 %v842, 16
      %v1126 = vrot.slane %v1124, 5
      %v1127 = vsel %vm874, %v1122, %v1126
      %v1128 = vshrl.u32 %v842, 16
      %v1130 = vrot.slane %v1128, 4
      %v1131 = vor.u32 %v1130, %v1126
      %v1132 = vrot.slane %v1131, 4
      %v1134 = vshll.u32 %v843, 16
      %v1136 = vrot.slane %v1134, 5
      %v1137 = vsel %vm874, %v1132, %v1136
      %v1138 = vunpack.c.l.b16 %v1127
      %v1139 = vunpack.c.l.b16 %v1137
      %v1140 = vpack.c.b16 %v1139, %v1138
      %1142 = vst [vmem:[#allocation3 + $0x38] sm:$0xff] %v981
      %1143 = vst [vmem:[#allocation3 + $0x80] sm:$0xff] %v982
      %1144 = vst [vmem:[#allocation3 + $0xc8] sm:$0xff] %v1082
      %1145 = vst [vmem:[#allocation3 + $0x110] sm:$0xff] %v1140
      %v1147 = vrot.slane %v841, 5
      %v1148 = vrot.slane %v1147, 4
      %v1149 = vrot.slane %v842, 5
      %v1150 = vsel %vm997, %v1148, %v1149
      %v1151 = vrot.slane %v1149, 4
      %v1152 = vrot.slane %v843, 5
      %v1153 = vsel %vm997, %v1151, %v1152
      %v1154 = vunpack.c.l.b16 %v1150
      %v1155 = vunpack.c.l.b16 %v1153
      %v1156 = vpack.c.b16 %v1155, %v1154
      %1158 = vst [vmem:[#allocation3 + $0x40] sm:$0xff] %v1036
      %1159 = vst [vmem:[#allocation3 + $0x88] sm:$0xff] %v1037
      %1160 = vst [vmem:[#allocation3 + $0xd0] sm:$0xff] %v1098
      %1161 = vst [vmem:[#allocation3 + $0x118] sm:$0xff] %v1156
      %v1162 = vld [vmem:[#allocation3] sm:$0xff]
      %v1163 = vld [vmem:[#allocation3 + $0x8] sm:$0xff]
      %v1164 = vld [vmem:[#allocation3 + $0x10] sm:$0xff]
      %v1165 = vld [vmem:[#allocation3 + $0x18] sm:$0xff]
      %v1166 = vld [vmem:[#allocation3 + $0x20] sm:$0xff]
      %v1167 = vld [vmem:[#allocation3 + $0x28] sm:$0xff]
      %v1168 = vld [vmem:[#allocation3 + $0x30] sm:$0xff]
      %v1169 = vld [vmem:[#allocation3 + $0x38] sm:$0xff]
      %v1170 = vld [vmem:[#allocation3 + $0x40] sm:$0xff]
      %v1171 = vld [vmem:[#allocation3 + $0x48] sm:$0xff]
      %v1172 = vld [vmem:[#allocation3 + $0x50] sm:$0xff]
      %v1173 = vld [vmem:[#allocation3 + $0x58] sm:$0xff]
      %v1174 = vld [vmem:[#allocation3 + $0x60] sm:$0xff]
      %v1175 = vld [vmem:[#allocation3 + $0x68] sm:$0xff]
      %v1176 = vld [vmem:[#allocation3 + $0x70] sm:$0xff]
      %v1177 = vld [vmem:[#allocation3 + $0x78] sm:$0xff]
      %v1178 = vld [vmem:[#allocation3 + $0x80] sm:$0xff]
      %v1179 = vld [vmem:[#allocation3 + $0x88] sm:$0xff]
      %v1180 = vld [vmem:[#allocation3 + $0x90] sm:$0xff]
      %v1181 = vld [vmem:[#allocation3 + $0x98] sm:$0xff]
      %v1182 = vld [vmem:[#allocation3 + $0xa0] sm:$0xff]
      %v1183 = vld [vmem:[#allocation3 + $0xa8] sm:$0xff]
      %v1184 = vld [vmem:[#allocation3 + $0xb0] sm:$0xff]
      %v1185 = vld [vmem:[#allocation3 + $0xb8] sm:$0xff]
      %v1186 = vld [vmem:[#allocation3 + $0xc0] sm:$0xff]
      %v1187 = vld [vmem:[#allocation3 + $0xc8] sm:$0xff]
      %v1188 = vld [vmem:[#allocation3 + $0xd0] sm:$0xff]
      %v1189 = vld [vmem:[#allocation3 + $0xd8] sm:$0xff]
      %v1190 = vld [vmem:[#allocation3 + $0xe0] sm:$0xff]
      %v1191 = vld [vmem:[#allocation3 + $0xe8] sm:$0xff]
      %v1192 = vld [vmem:[#allocation3 + $0xf0] sm:$0xff]
      %v1193 = vld [vmem:[#allocation3 + $0xf8] sm:$0xff]
      %v1194 = vld [vmem:[#allocation3 + $0x100] sm:$0xff]
      %v1195 = vld [vmem:[#allocation3 + $0x108] sm:$0xff]
      %v1196 = vld [vmem:[#allocation3 + $0x110] sm:$0xff]
      %v1197 = vld [vmem:[#allocation3 + $0x118] sm:$0xff]
      %v1198 = vld [vmem:[%s3] sm:$0xf]
      %v1199 = vld [vmem:[%s3 + $0x4] sm:$0xf]
      %v1200 = vld [vmem:[%s3 + $0x8] sm:$0xf]
      %v1201 = vld [vmem:[%s3 + $0xc] sm:$0xf]
      %v1202 = vld [vmem:[%s3 + $0x10] sm:$0xf]
      %v1203 = vld [vmem:[%s3 + $0x14] sm:$0xf]
      %v1204 = vld [vmem:[%s3 + $0x18] sm:$0xf]
      %v1205 = vld [vmem:[%s3 + $0x1c] sm:$0xf]
      %v1206 = vld [vmem:[%s3 + $0x20] sm:$0xf]
      %v1207 = vld [vmem:[%s3 + $0x24] sm:$0xf]
      %v1208 = vld [vmem:[%s3 + $0x28] sm:$0xf]
      %v1209 = vld [vmem:[%s3 + $0x2c] sm:$0xf]
      %v1210 = vld [vmem:[%s3 + $0x30] sm:$0xf]
      %v1211 = vld [vmem:[%s3 + $0x34] sm:$0xf]
      %v1212 = vld [vmem:[%s3 + $0x38] sm:$0xf]
      %v1213 = vld [vmem:[%s3 + $0x3c] sm:$0xf]
      %v1214 = vld [vmem:[%s3 + $0x40] sm:$0xf]
      %v1215 = vld [vmem:[%s3 + $0x44] sm:$0xf]
      %v1216 = vld [vmem:[%s3 + $0x48] sm:$0xf]
      %v1217 = vld [vmem:[%s3 + $0x4c] sm:$0xf]
      %v1218 = vld [vmem:[%s3 + $0x50] sm:$0xf]
      %v1219 = vld [vmem:[%s3 + $0x54] sm:$0xf]
      %v1220 = vld [vmem:[%s3 + $0x58] sm:$0xf]
      %v1221 = vld [vmem:[%s3 + $0x5c] sm:$0xf]
      %v1222 = vld [vmem:[%s3 + $0x60] sm:$0xf]
      %v1223 = vld [vmem:[%s3 + $0x64] sm:$0xf]
      %v1224 = vld [vmem:[%s3 + $0x68] sm:$0xf]
      %v1225 = vld [vmem:[%s3 + $0x6c] sm:$0xf]
      %v1226 = vld [vmem:[%s3 + $0x70] sm:$0xf]
      %v1227 = vld [vmem:[%s3 + $0x74] sm:$0xf]
      %v1228 = vld [vmem:[%s3 + $0x78] sm:$0xf]
      %v1229 = vld [vmem:[%s3 + $0x7c] sm:$0xf]
      %v1230 = vld [vmem:[%s3 + $0x80] sm:$0xf]
      %v1231 = vld [vmem:[%s3 + $0x84] sm:$0xf]
      %v1232 = vld [vmem:[%s3 + $0x88] sm:$0xf]
      %v1233 = vld [vmem:[%s3 + $0x8c] sm:$0xf]
      %v1234 = vld [vmem:[%s3 + $0x90] sm:$0xf]
      %v1235 = vld [vmem:[%s3 + $0x94] sm:$0xf]
      %v1236 = vld [vmem:[%s3 + $0x98] sm:$0xf]
      %v1237 = vld [vmem:[%s3 + $0x9c] sm:$0xf]
      %v1238 = vld [vmem:[%s3 + $0xa0] sm:$0xf]
      %v1239 = vld [vmem:[%s3 + $0xa4] sm:$0xf]
      %v1240 = vld [vmem:[%s3 + $0xa8] sm:$0xf]
      %v1241 = vld [vmem:[%s3 + $0xac] sm:$0xf]
      %v1242 = vld [vmem:[%s3 + $0xb0] sm:$0xf]
      %v1243 = vld [vmem:[%s3 + $0xb4] sm:$0xf]
      %v1244 = vld [vmem:[%s3 + $0xb8] sm:$0xf]
      %v1245 = vld [vmem:[%s3 + $0xbc] sm:$0xf]
      %v1246 = vld [vmem:[%s3 + $0xc0] sm:$0xf]
      %v1247 = vld [vmem:[%s3 + $0xc4] sm:$0xf]
      %v1248 = vld [vmem:[%s3 + $0xc8] sm:$0xf]
      %v1249 = vld [vmem:[%s3 + $0xcc] sm:$0xf]
      %v1250 = vld [vmem:[%s3 + $0xd0] sm:$0xf]
      %v1251 = vld [vmem:[%s3 + $0xd4] sm:$0xf]
      %v1252 = vld [vmem:[%s3 + $0xd8] sm:$0xf]
      %v1253 = vld [vmem:[%s3 + $0xdc] sm:$0xf]
      %v1254 = vld [vmem:[%s3 + $0xe0] sm:$0xf]
      %v1255 = vld [vmem:[%s3 + $0xe4] sm:$0xf]
      %v1256 = vld [vmem:[%s3 + $0xe8] sm:$0xf]
      %v1257 = vld [vmem:[%s3 + $0xec] sm:$0xf]
      %v1258 = vld [vmem:[%s3 + $0xf0] sm:$0xf]
      %v1259 = vld [vmem:[%s3 + $0xf4] sm:$0xf]
      %v1260 = vld [vmem:[%s3 + $0xf8] sm:$0xf]
      %v1261 = vld [vmem:[%s3 + $0xfc] sm:$0xf]
      %v1262 = vld [vmem:[%s3 + $0x100] sm:$0xf]
      %v1263 = vld [vmem:[%s3 + $0x104] sm:$0xf]
      %v1264 = vld [vmem:[%s3 + $0x108] sm:$0xf]
      %v1265 = vld [vmem:[%s3 + $0x10c] sm:$0xf]
      %v1266 = vld [vmem:[%s3 + $0x110] sm:$0xf]
      %v1267 = vld [vmem:[%s3 + $0x114] sm:$0xf]
      %v1268 = vld [vmem:[%s3 + $0x118] sm:$0xf]
      %v1269 = vld [vmem:[%s3 + $0x11c] sm:$0xf]
      %v1270 = vld [vmem:[%s3 + $0x120] sm:$0xf]
      %v1271 = vld [vmem:[%s3 + $0x124] sm:$0xf]
      %v1272 = vld [vmem:[%s3 + $0x128] sm:$0xf]
      %v1273 = vld [vmem:[%s3 + $0x12c] sm:$0xf]
      %v1274 = vld [vmem:[%s3 + $0x130] sm:$0xf]
      %v1275 = vld [vmem:[%s3 + $0x134] sm:$0xf]
      %v1276 = vld [vmem:[%s3 + $0x138] sm:$0xf]
      %v1277 = vld [vmem:[%s3 + $0x13c] sm:$0xf]
      %v1278 = vld [vmem:[%s3 + $0x140] sm:$0xf]
      %v1279 = vld [vmem:[%s3 + $0x144] sm:$0xf]
      %v1280 = vld [vmem:[%s3 + $0x148] sm:$0xf]
      %v1281 = vld [vmem:[%s3 + $0x14c] sm:$0xf]
      %v1282 = vld [vmem:[%s3 + $0x150] sm:$0xf]
      %v1283 = vld [vmem:[%s3 + $0x154] sm:$0xf]
      %v1284 = vld [vmem:[%s3 + $0x158] sm:$0xf]
      %v1285 = vld [vmem:[%s3 + $0x15c] sm:$0xf]
      %v1286 = vld [vmem:[%s3 + $0x160] sm:$0xf]
      %v1287 = vld [vmem:[%s3 + $0x164] sm:$0xf]
      %v1288 = vld [vmem:[%s3 + $0x168] sm:$0xf]
      %v1289 = vld [vmem:[%s3 + $0x16c] sm:$0xf]
      %v1290 = vld [vmem:[%s3 + $0x170] sm:$0xf]
      %v1291 = vld [vmem:[%s3 + $0x174] sm:$0xf]
      %v1292 = vld [vmem:[%s3 + $0x178] sm:$0xf]
      %v1293 = vld [vmem:[%s3 + $0x17c] sm:$0xf]
      %v1294 = vld [vmem:[%s3 + $0x180] sm:$0xf]
      %v1295 = vld [vmem:[%s3 + $0x184] sm:$0xf]
      %v1296 = vld [vmem:[%s3 + $0x188] sm:$0xf]
      %v1297 = vld [vmem:[%s3 + $0x18c] sm:$0xf]
      %v1298 = vld [vmem:[%s3 + $0x190] sm:$0xf]
      %v1299 = vld [vmem:[%s3 + $0x194] sm:$0xf]
      %v1300 = vld [vmem:[%s3 + $0x198] sm:$0xf]
      %v1301 = vld [vmem:[%s3 + $0x19c] sm:$0xf]
      %v1302 = vld [vmem:[%s3 + $0x1a0] sm:$0xf]
      %v1303 = vld [vmem:[%s3 + $0x1a4] sm:$0xf]
      %v1304 = vld [vmem:[%s3 + $0x1a8] sm:$0xf]
      %v1305 = vld [vmem:[%s3 + $0x1ac] sm:$0xf]
      %v1306 = vld [vmem:[%s3 + $0x1b0] sm:$0xf]
      %v1307 = vld [vmem:[%s3 + $0x1b4] sm:$0xf]
      %v1308 = vld [vmem:[%s3 + $0x1b8] sm:$0xf]
      %v1309 = vld [vmem:[%s3 + $0x1bc] sm:$0xf]
      %v1310 = vld [vmem:[%s3 + $0x1c0] sm:$0xf]
      %v1311 = vld [vmem:[%s3 + $0x1c4] sm:$0xf]
      %v1312 = vld [vmem:[%s3 + $0x1c8] sm:$0xf]
      %v1313 = vld [vmem:[%s3 + $0x1cc] sm:$0xf]
      %v1314 = vld [vmem:[%s3 + $0x1d0] sm:$0xf]
      %v1315 = vld [vmem:[%s3 + $0x1d4] sm:$0xf]
      %v1316 = vld [vmem:[%s3 + $0x1d8] sm:$0xf]
      %v1317 = vld [vmem:[%s3 + $0x1dc] sm:$0xf]
      %v1318 = vld [vmem:[%s3 + $0x1e0] sm:$0xf]
      %v1319 = vld [vmem:[%s3 + $0x1e4] sm:$0xf]
      %v1320 = vld [vmem:[%s3 + $0x1e8] sm:$0xf]
      %v1321 = vld [vmem:[%s3 + $0x1ec] sm:$0xf]
      %v1322 = vld [vmem:[%s3 + $0x1f0] sm:$0xf]
      %v1323 = vld [vmem:[%s3 + $0x1f4] sm:$0xf]
      %v1324 = vld [vmem:[%s3 + $0x1f8] sm:$0xf]
      %v1325 = vld [vmem:[%s3 + $0x1fc] sm:$0xf]
      %v1326 = vld [vmem:[%s3 + $0x200] sm:$0xf]
      %v1327 = vld [vmem:[%s3 + $0x204] sm:$0xf]
      %v1328 = vld [vmem:[%s3 + $0x208] sm:$0xf]
      %v1329 = vld [vmem:[%s3 + $0x20c] sm:$0xf]
      %v1330 = vld [vmem:[%s3 + $0x210] sm:$0xf]
      %v1331 = vld [vmem:[%s3 + $0x214] sm:$0xf]
      %v1332 = vld [vmem:[%s3 + $0x218] sm:$0xf]
      %v1333 = vld [vmem:[%s3 + $0x21c] sm:$0xf]
      %v1334 = vld [vmem:[%s3 + $0x220] sm:$0xf]
      %v1335 = vld [vmem:[%s3 + $0x224] sm:$0xf]
      %v1336 = vld [vmem:[%s3 + $0x228] sm:$0xf]
      %v1337 = vld [vmem:[%s3 + $0x22c] sm:$0xf]
      %v1338 = vld [vmem:[%s3 + $0x230] sm:$0xf]
      %v1339 = vld [vmem:[%s3 + $0x234] sm:$0xf]
      %v1340 = vld [vmem:[%s3 + $0x238] sm:$0xf]
      %v1341 = vld [vmem:[%s3 + $0x23c] sm:$0xf]
      %v1486 = vunpack.c.l.b16 %v1198
      %v1487 = vunpack.c.l.b16 %v1199
      %v1488 = vunpack.c.l.b16 %v1200
      %v1489 = vunpack.c.l.b16 %v1201
      %v1490 = vunpack.c.l.b16 %v1202
      %v1491 = vunpack.c.l.b16 %v1203
      %v1492 = vunpack.c.l.b16 %v1204
      %v1493 = vunpack.c.l.b16 %v1205
      %v1494 = vunpack.c.l.b16 %v1206
      %v1495 = vunpack.c.l.b16 %v1207
      %v1496 = vunpack.c.l.b16 %v1208
      %v1497 = vunpack.c.l.b16 %v1209
      %v1498 = vunpack.c.l.b16 %v1210
      %v1499 = vunpack.c.l.b16 %v1211
      %v1500 = vunpack.c.l.b16 %v1212
      %v1501 = vunpack.c.l.b16 %v1213
      %v1502 = vunpack.c.l.b16 %v1214
      %v1503 = vunpack.c.l.b16 %v1215
      %v1504 = vunpack.c.l.b16 %v1216
      %v1505 = vunpack.c.l.b16 %v1217
      %v1506 = vunpack.c.l.b16 %v1218
      %v1507 = vunpack.c.l.b16 %v1219
      %v1508 = vunpack.c.l.b16 %v1220
      %v1509 = vunpack.c.l.b16 %v1221
      %v1510 = vunpack.c.l.b16 %v1222
      %v1511 = vunpack.c.l.b16 %v1223
      %v1512 = vunpack.c.l.b16 %v1224
      %v1513 = vunpack.c.l.b16 %v1225
      %v1514 = vunpack.c.l.b16 %v1226
      %v1515 = vunpack.c.l.b16 %v1227
      %v1516 = vunpack.c.l.b16 %v1228
      %v1517 = vunpack.c.l.b16 %v1229
      %v1518 = vunpack.c.l.b16 %v1230
      %v1519 = vunpack.c.l.b16 %v1231
      %v1520 = vunpack.c.l.b16 %v1232
      %v1521 = vunpack.c.l.b16 %v1233
      %v1522 = vunpack.c.l.b16 %v1234
      %v1523 = vunpack.c.l.b16 %v1235
      %v1524 = vunpack.c.l.b16 %v1236
      %v1525 = vunpack.c.l.b16 %v1237
      %v1526 = vunpack.c.l.b16 %v1238
      %v1527 = vunpack.c.l.b16 %v1239
      %v1528 = vunpack.c.l.b16 %v1240
      %v1529 = vunpack.c.l.b16 %v1241
      %v1530 = vunpack.c.l.b16 %v1242
      %v1531 = vunpack.c.l.b16 %v1243
      %v1532 = vunpack.c.l.b16 %v1244
      %v1533 = vunpack.c.l.b16 %v1245
      %v1534 = vunpack.c.l.b16 %v1246
      %v1535 = vunpack.c.l.b16 %v1247
      %v1536 = vunpack.c.l.b16 %v1248
      %v1537 = vunpack.c.l.b16 %v1249
      %v1538 = vunpack.c.l.b16 %v1250
      %v1539 = vunpack.c.l.b16 %v1251
      %v1540 = vunpack.c.l.b16 %v1252
      %v1541 = vunpack.c.l.b16 %v1253
      %v1542 = vunpack.c.l.b16 %v1254
      %v1543 = vunpack.c.l.b16 %v1255
      %v1544 = vunpack.c.l.b16 %v1256
      %v1545 = vunpack.c.l.b16 %v1257
      %v1546 = vunpack.c.l.b16 %v1258
      %v1547 = vunpack.c.l.b16 %v1259
      %v1548 = vunpack.c.l.b16 %v1260
      %v1549 = vunpack.c.l.b16 %v1261
      %v1550 = vunpack.c.l.b16 %v1262
      %v1551 = vunpack.c.l.b16 %v1263
      %v1552 = vunpack.c.l.b16 %v1264
      %v1553 = vunpack.c.l.b16 %v1265
      %v1554 = vunpack.c.l.b16 %v1266
      %v1555 = vunpack.c.l.b16 %v1267
      %v1556 = vunpack.c.l.b16 %v1268
      %v1557 = vunpack.c.l.b16 %v1269
      %v1558 = vunpack.c.l.b16 %v1270
      %v1559 = vunpack.c.l.b16 %v1271
      %v1560 = vunpack.c.l.b16 %v1272
      %v1561 = vunpack.c.l.b16 %v1273
      %v1562 = vunpack.c.l.b16 %v1274
      %v1563 = vunpack.c.l.b16 %v1275
      %v1564 = vunpack.c.l.b16 %v1276
      %v1565 = vunpack.c.l.b16 %v1277
      %v1566 = vunpack.c.l.b16 %v1278
      %v1567 = vunpack.c.l.b16 %v1279
      %v1568 = vunpack.c.l.b16 %v1280
      %v1569 = vunpack.c.l.b16 %v1281
      %v1570 = vunpack.c.l.b16 %v1282
      %v1571 = vunpack.c.l.b16 %v1283
      %v1572 = vunpack.c.l.b16 %v1284
      %v1573 = vunpack.c.l.b16 %v1285
      %v1574 = vunpack.c.l.b16 %v1286
      %v1575 = vunpack.c.l.b16 %v1287
      %v1576 = vunpack.c.l.b16 %v1288
      %v1577 = vunpack.c.l.b16 %v1289
      %v1578 = vunpack.c.l.b16 %v1290
      %v1579 = vunpack.c.l.b16 %v1291
      %v1580 = vunpack.c.l.b16 %v1292
      %v1581 = vunpack.c.l.b16 %v1293
      %v1582 = vunpack.c.l.b16 %v1294
      %v1583 = vunpack.c.l.b16 %v1295
      %v1584 = vunpack.c.l.b16 %v1296
      %v1585 = vunpack.c.l.b16 %v1297
      %v1586 = vunpack.c.l.b16 %v1298
      %v1587 = vunpack.c.l.b16 %v1299
      %v1588 = vunpack.c.l.b16 %v1300
      %v1589 = vunpack.c.l.b16 %v1301
      %v1590 = vunpack.c.l.b16 %v1302
      %v1591 = vunpack.c.l.b16 %v1303
      %v1592 = vunpack.c.l.b16 %v1304
      %v1593 = vunpack.c.l.b16 %v1305
      %v1594 = vunpack.c.l.b16 %v1306
      %v1595 = vunpack.c.l.b16 %v1307
      %v1596 = vunpack.c.l.b16 %v1308
      %v1597 = vunpack.c.l.b16 %v1309
      %v1598 = vunpack.c.l.b16 %v1310
      %v1599 = vunpack.c.l.b16 %v1311
      %v1600 = vunpack.c.l.b16 %v1312
      %v1601 = vunpack.c.l.b16 %v1313
      %v1602 = vunpack.c.l.b16 %v1314
      %v1603 = vunpack.c.l.b16 %v1315
      %v1604 = vunpack.c.l.b16 %v1316
      %v1605 = vunpack.c.l.b16 %v1317
      %v1606 = vunpack.c.l.b16 %v1318
      %v1607 = vunpack.c.l.b16 %v1319
      %v1608 = vunpack.c.l.b16 %v1320
      %v1609 = vunpack.c.l.b16 %v1321
      %v1610 = vunpack.c.l.b16 %v1322
      %v1611 = vunpack.c.l.b16 %v1323
      %v1612 = vunpack.c.l.b16 %v1324
      %v1613 = vunpack.c.l.b16 %v1325
      %v1614 = vunpack.c.l.b16 %v1326
      %v1615 = vunpack.c.l.b16 %v1327
      %v1616 = vunpack.c.l.b16 %v1328
      %v1617 = vunpack.c.l.b16 %v1329
      %v1618 = vunpack.c.l.b16 %v1330
      %v1619 = vunpack.c.l.b16 %v1331
      %v1620 = vunpack.c.l.b16 %v1332
      %v1621 = vunpack.c.l.b16 %v1333
      %v1622 = vunpack.c.l.b16 %v1334
      %v1623 = vunpack.c.l.b16 %v1335
      %v1624 = vunpack.c.l.b16 %v1336
      %v1625 = vunpack.c.l.b16 %v1337
      %v1626 = vunpack.c.l.b16 %v1338
      %v1627 = vunpack.c.l.b16 %v1339
      %v1628 = vunpack.c.l.b16 %v1340
      %v1629 = vunpack.c.l.b16 %v1341
      %v1630 = vpack.c.b16 %v1487, %v1486
      %v1631 = vpack.c.b16 %v1489, %v1488
      %v1632 = vpack.c.b16 %v1491, %v1490
      %v1633 = vpack.c.b16 %v1493, %v1492
      %v1634 = vpack.c.b16 %v1495, %v1494
      %v1635 = vpack.c.b16 %v1497, %v1496
      %v1636 = vpack.c.b16 %v1499, %v1498
      %v1637 = vpack.c.b16 %v1501, %v1500
      %v1638 = vpack.c.b16 %v1503, %v1502
      %v1639 = vpack.c.b16 %v1505, %v1504
      %v1640 = vpack.c.b16 %v1507, %v1506
      %v1641 = vpack.c.b16 %v1509, %v1508
      %v1642 = vpack.c.b16 %v1511, %v1510
      %v1643 = vpack.c.b16 %v1513, %v1512
      %v1644 = vpack.c.b16 %v1515, %v1514
      %v1645 = vpack.c.b16 %v1517, %v1516
      %v1646 = vpack.c.b16 %v1519, %v1518
      %v1647 = vpack.c.b16 %v1521, %v1520
      %v1648 = vpack.c.b16 %v1523, %v1522
      %v1649 = vpack.c.b16 %v1525, %v1524
      %v1650 = vpack.c.b16 %v1527, %v1526
      %v1651 = vpack.c.b16 %v1529, %v1528
      %v1652 = vpack.c.b16 %v1531, %v1530
      %v1653 = vpack.c.b16 %v1533, %v1532
      %v1654 = vpack.c.b16 %v1535, %v1534
      %v1655 = vpack.c.b16 %v1537, %v1536
      %v1656 = vpack.c.b16 %v1539, %v1538
      %v1657 = vpack.c.b16 %v1541, %v1540
      %v1658 = vpack.c.b16 %v1543, %v1542
      %v1659 = vpack.c.b16 %v1545, %v1544
      %v1660 = vpack.c.b16 %v1547, %v1546
      %v1661 = vpack.c.b16 %v1549, %v1548
      %v1662 = vpack.c.b16 %v1551, %v1550
      %v1663 = vpack.c.b16 %v1553, %v1552
      %v1664 = vpack.c.b16 %v1555, %v1554
      %v1665 = vpack.c.b16 %v1557, %v1556
      %v1666 = vpack.c.b16 %v1559, %v1558
      %v1667 = vpack.c.b16 %v1561, %v1560
      %v1668 = vpack.c.b16 %v1563, %v1562
      %v1669 = vpack.c.b16 %v1565, %v1564
      %v1670 = vpack.c.b16 %v1567, %v1566
      %v1671 = vpack.c.b16 %v1569, %v1568
      %v1672 = vpack.c.b16 %v1571, %v1570
      %v1673 = vpack.c.b16 %v1573, %v1572
      %v1674 = vpack.c.b16 %v1575, %v1574
      %v1675 = vpack.c.b16 %v1577, %v1576
      %v1676 = vpack.c.b16 %v1579, %v1578
      %v1677 = vpack.c.b16 %v1581, %v1580
      %v1678 = vpack.c.b16 %v1583, %v1582
      %v1679 = vpack.c.b16 %v1585, %v1584
      %v1680 = vpack.c.b16 %v1587, %v1586
      %v1681 = vpack.c.b16 %v1589, %v1588
      %v1682 = vpack.c.b16 %v1591, %v1590
      %v1683 = vpack.c.b16 %v1593, %v1592
      %v1684 = vpack.c.b16 %v1595, %v1594
      %v1685 = vpack.c.b16 %v1597, %v1596
      %v1686 = vpack.c.b16 %v1599, %v1598
      %v1687 = vpack.c.b16 %v1601, %v1600
      %v1688 = vpack.c.b16 %v1603, %v1602
      %v1689 = vpack.c.b16 %v1605, %v1604
      %v1690 = vpack.c.b16 %v1607, %v1606
      %v1691 = vpack.c.b16 %v1609, %v1608
      %v1692 = vpack.c.b16 %v1611, %v1610
      %v1693 = vpack.c.b16 %v1613, %v1612
      %v1694 = vpack.c.b16 %v1615, %v1614
      %v1695 = vpack.c.b16 %v1617, %v1616
      %v1696 = vpack.c.b16 %v1619, %v1618
      %v1697 = vpack.c.b16 %v1621, %v1620
      %v1698 = vpack.c.b16 %v1623, %v1622
      %v1699 = vpack.c.b16 %v1625, %v1624
      %v1700 = vpack.c.b16 %v1627, %v1626
      %v1701 = vpack.c.b16 %v1629, %v1628
      %1774 = vmatprep.subr.bf16.mxu0 0
      %1775 = vmatpush1.bf16.msra.mxu0 %v1630
      %1776 = vmatprep.subr.bf16.mxu0 0
      %1777 = vmatpush1.bf16.msra.mxu0 %v1631
      %1778 = vmatprep.subr.bf16.mxu0 0
      %1779 = vmatpush1.bf16.msra.mxu0 %v1632
      %1780 = vmatprep.subr.bf16.mxu0 0
      %1781 = vmatpush1.bf16.msra.mxu0 %v1633
      %1782 = vmatprep.subr.bf16.mxu0 0
      %1783 = vmatpush1.bf16.msra.mxu0 %v1634
      %1784 = vmatprep.subr.bf16.mxu0 0
      %1785 = vmatpush1.bf16.msra.mxu0 %v1635
      %1786 = vmatprep.subr.bf16.mxu0 0
      %1787 = vmatpush1.bf16.msra.mxu0 %v1636
      %1788 = vmatprep.subr.bf16.mxu0 0
      %1789 = vmatpush1.bf16.msra.mxu0 %v1637
      %1790 = vmatprep.subr.bf16.mxu0 0
      %1791 = vmatpush1.bf16.msra.mxu0 %v1638
      %1792 = vmatprep.subr.bf16.mxu0 0
      %1793 = vmatpush1.bf16.msra.mxu0 %v1639
      %1794 = vmatprep.subr.bf16.mxu0 0
      %1795 = vmatpush1.bf16.msra.mxu0 %v1640
      %1796 = vmatprep.subr.bf16.mxu0 0
      %1797 = vmatpush1.bf16.msra.mxu0 %v1641
      %1798 = vmatprep.subr.bf16.mxu0 0
      %1799 = vmatpush1.bf16.msra.mxu0 %v1642
      %1800 = vmatprep.subr.bf16.mxu0 0
      %1801 = vmatpush1.bf16.msra.mxu0 %v1643
      %1802 = vmatprep.subr.bf16.mxu0 0
      %1803 = vmatpush1.bf16.msra.mxu0 %v1644
      %1804 = vmatprep.subr.bf16.mxu0 0
      %1805 = vmatpush1.bf16.msra.mxu0 %v1645
      %1806 = vmatprep.mubr.bf16.mxu0 %v1163
      %1807 = vmatmul.mubr.bf16.gmra.mrb[0].mxu0 %v1162
      %v1808 = vpop.f32.mrb[0].mxu0
      %v1809 = vadd.f32 0.0, %v1808
      %v1810 = vpop.f32.mrb[0].mxu0
      %v1811 = vpop.f32.mrb[0].mxu0
      %v1812 = vadd.f32 0.0, %v1811
      %v1813 = vpop.f32.mrb[0].mxu0
      %1814 = vmatprep.mubr.bf16.mxu0 %v1172
      %1815 = vmatmul.mubr.bf16.gmra.mrb[0].mxu0 %v1171
      %v1816 = vpop.f32.mrb[0].mxu0
      %v1817 = vadd.f32 0.0, %v1816
      %v1818 = vpop.f32.mrb[0].mxu0
      %v1819 = vpop.f32.mrb[0].mxu0
      %v1820 = vadd.f32 0.0, %v1819
      %v1821 = vpop.f32.mrb[0].mxu0
      %1822 = vmatprep.mubr.bf16.mxu0 %v1181
      %1823 = vmatmul.mubr.bf16.gmra.mrb[0].mxu0 %v1180
      %v1824 = vpop.f32.mrb[0].mxu0
      %v1825 = vadd.f32 0.0, %v1824
      %v1826 = vpop.f32.mrb[0].mxu0
      %v1827 = vpop.f32.mrb[0].mxu0
      %v1828 = vadd.f32 0.0, %v1827
      %v1829 = vpop.f32.mrb[0].mxu0
      %1830 = vmatprep.mubr.bf16.mxu0 %v1190
      %1831 = vmatmul.mubr.bf16.gmra.mrb[0].mxu0 %v1189
      %v1832 = vpop.f32.mrb[0].mxu0
      %v1833 = vadd.f32 0.0, %v1832
      %v1834 = vpop.f32.mrb[0].mxu0
      %v1835 = vpop.f32.mrb[0].mxu0
      %v1836 = vadd.f32 0.0, %v1835
      %v1837 = vpop.f32.mrb[0].mxu0
      %1838 = vdwg.mxu0
      %1839 = vmatprep.subr.bf16.mxu0 0
      %1840 = vmatpush1.bf16.msra.mxu0 %v1646
      %1841 = vmatprep.subr.bf16.mxu0 0
      %1842 = vmatpush1.bf16.msra.mxu0 %v1647
      %1843 = vmatprep.subr.bf16.mxu0 0
      %1844 = vmatpush1.bf16.msra.mxu0 %v1648
      %1845 = vmatprep.subr.bf16.mxu0 0
      %1846 = vmatpush1.bf16.msra.mxu0 %v1649
      %1847 = vmatprep.subr.bf16.mxu0 0
      %1848 = vmatpush1.bf16.msra.mxu0 %v1650
      %1849 = vmatprep.subr.bf16.mxu0 0
      %1850 = vmatpush1.bf16.msra.mxu0 %v1651
      %1851 = vmatprep.subr.bf16.mxu0 0
      %1852 = vmatpush1.bf16.msra.mxu0 %v1652
      %1853 = vmatprep.subr.bf16.mxu0 0
      %1854 = vmatpush1.bf16.msra.mxu0 %v1653
      %1855 = vmatprep.subr.bf16.mxu0 0
      %1856 = vmatpush1.bf16.msra.mxu0 %v1654
      %1857 = vmatprep.subr.bf16.mxu0 0
      %1858 = vmatpush1.bf16.msra.mxu0 %v1655
      %1859 = vmatprep.subr.bf16.mxu0 0
      %1860 = vmatpush1.bf16.msra.mxu0 %v1656
      %1861 = vmatprep.subr.bf16.mxu0 0
      %1862 = vmatpush1.bf16.msra.mxu0 %v1657
      %1863 = vmatprep.subr.bf16.mxu0 0
      %1864 = vmatpush1.bf16.msra.mxu0 %v1658
      %1865 = vmatprep.subr.bf16.mxu0 0
      %1866 = vmatpush1.bf16.msra.mxu0 %v1659
      %1867 = vmatprep.subr.bf16.mxu0 0
      %1868 = vmatpush1.bf16.msra.mxu0 %v1660
      %1869 = vmatprep.subr.bf16.mxu0 0
      %1870 = vmatpush1.bf16.msra.mxu0 %v1661
      %1871 = vmatprep.mubr.bf16.mxu0 %v1165
      %1872 = vmatmul.mubr.bf16.gmra.mrb[0].mxu0 %v1164
      %v1873 = vpop.f32.mrb[0].mxu0
      %v1874 = vadd.f32 %v1809, %v1873
      %v1875 = vpop.f32.mrb[0].mxu0
      %v1876 = vpop.f32.mrb[0].mxu0
      %v1877 = vadd.f32 %v1812, %v1876
      %v1878 = vpop.f32.mrb[0].mxu0
      %1879 = vmatprep.mubr.bf16.mxu0 %v1174
      %1880 = vmatmul.mubr.bf16.gmra.mrb[0].mxu0 %v1173
      %v1881 = vpop.f32.mrb[0].mxu0
      %v1882 = vadd.f32 %v1817, %v1881
      %v1883 = vpop.f32.mrb[0].mxu0
      %v1884 = vpop.f32.mrb[0].mxu0
      %v1885 = vadd.f32 %v1820, %v1884
      %v1886 = vpop.f32.mrb[0].mxu0
      %1887 = vmatprep.mubr.bf16.mxu0 %v1183
      %1888 = vmatmul.mubr.bf16.gmra.mrb[0].mxu0 %v1182
      %v1889 = vpop.f32.mrb[0].mxu0
      %v1890 = vadd.f32 %v1825, %v1889
      %v1891 = vpop.f32.mrb[0].mxu0
      %v1892 = vpop.f32.mrb[0].mxu0
      %v1893 = vadd.f32 %v1828, %v1892
      %v1894 = vpop.f32.mrb[0].mxu0
      %1895 = vmatprep.mubr.bf16.mxu0 %v1192
      %1896 = vmatmul.mubr.bf16.gmra.mrb[0].mxu0 %v1191
      %v1897 = vpop.f32.mrb[0].mxu0
      %v1898 = vadd.f32 %v1833, %v1897
      %v1899 = vpop.f32.mrb[0].mxu0
      %v1900 = vpop.f32.mrb[0].mxu0
      %v1901 = vadd.f32 %v1836, %v1900
      %v1902 = vpop.f32.mrb[0].mxu0
      %1903 = vdwg.mxu0
      %1904 = vmatprep.subr.bf16.mxu0 0
      %1905 = vmatpush1.bf16.msra.mxu0 %v1662
      %1906 = vmatprep.subr.bf16.mxu0 0
      %1907 = vmatpush1.bf16.msra.mxu0 %v1663
      %1908 = vmatprep.subr.bf16.mxu0 0
      %1909 = vmatpush1.bf16.msra.mxu0 %v1664
      %1910 = vmatprep.subr.bf16.mxu0 0
      %1911 = vmatpush1.bf16.msra.mxu0 %v1665
      %1912 = vmatprep.subr.bf16.mxu0 0
      %1913 = vmatpush1.bf16.msra.mxu0 %v1666
      %1914 = vmatprep.subr.bf16.mxu0 0
      %1915 = vmatpush1.bf16.msra.mxu0 %v1667
      %1916 = vmatprep.subr.bf16.mxu0 0
      %1917 = vmatpush1.bf16.msra.mxu0 %v1668
      %1918 = vmatprep.subr.bf16.mxu0 0
      %1919 = vmatpush1.bf16.msra.mxu0 %v1669
      %1920 = vmatprep.subr.bf16.mxu0 0
      %1921 = vmatpush1.bf16.msra.mxu0 %v1670
      %1922 = vmatprep.subr.bf16.mxu0 0
      %1923 = vmatpush1.bf16.msra.mxu0 %v1671
      %1924 = vmatprep.subr.bf16.mxu0 0
      %1925 = vmatpush1.bf16.msra.mxu0 %v1672
      %1926 = vmatprep.subr.bf16.mxu0 0
      %1927 = vmatpush1.bf16.msra.mxu0 %v1673
      %1928 = vmatprep.subr.bf16.mxu0 0
      %1929 = vmatpush1.bf16.msra.mxu0 %v1674
      %1930 = vmatprep.subr.bf16.mxu0 0
      %1931 = vmatpush1.bf16.msra.mxu0 %v1675
      %1932 = vmatprep.subr.bf16.mxu0 0
      %1933 = vmatpush1.bf16.msra.mxu0 %v1676
      %1934 = vmatprep.subr.bf16.mxu0 0
      %1935 = vmatpush1.bf16.msra.mxu0 %v1677
      %1936 = vmatprep.mubr.bf16.mxu0 %v1167
      %1937 = vmatmul.mubr.bf16.gmra.mrb[0].mxu0 %v1166
      %v1938 = vpop.f32.mrb[0].mxu0
      %v1939 = vadd.f32 %v1874, %v1938
      %v1940 = vpop.f32.mrb[0].mxu0
      %v1941 = vpop.f32.mrb[0].mxu0
      %v1942 = vadd.f32 %v1877, %v1941
      %v1943 = vpop.f32.mrb[0].mxu0
      %1944 = vmatprep.mubr.bf16.mxu0 %v1176
      %1945 = vmatmul.mubr.bf16.gmra.mrb[0].mxu0 %v1175
      %v1946 = vpop.f32.mrb[0].mxu0
      %v1947 = vadd.f32 %v1882, %v1946
      %v1948 = vpop.f32.mrb[0].mxu0
      %v1949 = vpop.f32.mrb[0].mxu0
      %v1950 = vadd.f32 %v1885, %v1949
      %v1951 = vpop.f32.mrb[0].mxu0
      %1952 = vmatprep.mubr.bf16.mxu0 %v1185
      %1953 = vmatmul.mubr.bf16.gmra.mrb[0].mxu0 %v1184
      %v1954 = vpop.f32.mrb[0].mxu0
      %v1955 = vadd.f32 %v1890, %v1954
      %v1956 = vpop.f32.mrb[0].mxu0
      %v1957 = vpop.f32.mrb[0].mxu0
      %v1958 = vadd.f32 %v1893, %v1957
      %v1959 = vpop.f32.mrb[0].mxu0
      %1960 = vmatprep.mubr.bf16.mxu0 %v1194
      %1961 = vmatmul.mubr.bf16.gmra.mrb[0].mxu0 %v1193
      %v1962 = vpop.f32.mrb[0].mxu0
      %v1963 = vadd.f32 %v1898, %v1962
      %v1964 = vpop.f32.mrb[0].mxu0
      %v1965 = vpop.f32.mrb[0].mxu0
      %v1966 = vadd.f32 %v1901, %v1965
      %v1967 = vpop.f32.mrb[0].mxu0
      %1968 = vdwg.mxu0
      %1969 = vmatprep.subr.bf16.mxu0 0
      %1970 = vmatpush1.bf16.msra.mxu0 %v1678
      %1971 = vmatprep.subr.bf16.mxu0 0
      %1972 = vmatpush1.bf16.msra.mxu0 %v1679
      %1973 = vmatprep.subr.bf16.mxu0 0
      %1974 = vmatpush1.bf16.msra.mxu0 %v1680
      %1975 = vmatprep.subr.bf16.mxu0 0
      %1976 = vmatpush1.bf16.msra.mxu0 %v1681
      %1977 = vmatprep.subr.bf16.mxu0 0
      %1978 = vmatpush1.bf16.msra.mxu0 %v1682
      %1979 = vmatprep.subr.bf16.mxu0 0
      %1980 = vmatpush1.bf16.msra.mxu0 %v1683
      %1981 = vmatprep.subr.bf16.mxu0 0
      %1982 = vmatpush1.bf16.msra.mxu0 %v1684
      %1983 = vmatprep.subr.bf16.mxu0 0
      %1984 = vmatpush1.bf16.msra.mxu0 %v1685
      %1985 = vmatprep.subr.bf16.mxu0 0
      %1986 = vmatpush1.bf16.msra.mxu0 %v1686
      %1987 = vmatprep.subr.bf16.mxu0 0
      %1988 = vmatpush1.bf16.msra.mxu0 %v1687
      %1989 = vmatprep.subr.bf16.mxu0 0
      %1990 = vmatpush1.bf16.msra.mxu0 %v1688
      %1991 = vmatprep.subr.bf16.mxu0 0
      %1992 = vmatpush1.bf16.msra.mxu0 %v1689
      %1993 = vmatprep.subr.bf16.mxu0 0
      %1994 = vmatpush1.bf16.msra.mxu0 %v1690
      %1995 = vmatprep.subr.bf16.mxu0 0
      %1996 = vmatpush1.bf16.msra.mxu0 %v1691
      %1997 = vmatprep.subr.bf16.mxu0 0
      %1998 = vmatpush1.bf16.msra.mxu0 %v1692
      %1999 = vmatprep.subr.bf16.mxu0 0
      %2000 = vmatpush1.bf16.msra.mxu0 %v1693
      %2001 = vmatprep.mubr.bf16.mxu0 %v1169
      %2002 = vmatmul.mubr.bf16.gmra.mrb[0].mxu0 %v1168
      %v2003 = vpop.f32.mrb[0].mxu0
      %v2004 = vadd.f32 %v1939, %v2003
      %v2005 = vpop.f32.mrb[0].mxu0
      %v2006 = vpop.f32.mrb[0].mxu0
      %v2007 = vadd.f32 %v1942, %v2006
      %v2008 = vpop.f32.mrb[0].mxu0
      %2009 = vmatprep.mubr.bf16.mxu0 %v1178
      %2010 = vmatmul.mubr.bf16.gmra.mrb[0].mxu0 %v1177
      %v2011 = vpop.f32.mrb[0].mxu0
      %v2012 = vadd.f32 %v1947, %v2011
      %v2013 = vpop.f32.mrb[0].mxu0
      %v2014 = vpop.f32.mrb[0].mxu0
      %v2015 = vadd.f32 %v1950, %v2014
      %v2016 = vpop.f32.mrb[0].mxu0
      %2017 = vmatprep.mubr.bf16.mxu0 %v1187
      %2018 = vmatmul.mubr.bf16.gmra.mrb[0].mxu0 %v1186
      %v2019 = vpop.f32.mrb[0].mxu0
      %v2020 = vadd.f32 %v1955, %v2019
      %v2021 = vpop.f32.mrb[0].mxu0
      %v2022 = vpop.f32.mrb[0].mxu0
      %v2023 = vadd.f32 %v1958, %v2022
      %v2024 = vpop.f32.mrb[0].mxu0
      %2025 = vmatprep.mubr.bf16.mxu0 %v1196
      %2026 = vmatmul.mubr.bf16.gmra.mrb[0].mxu0 %v1195
      %v2027 = vpop.f32.mrb[0].mxu0
      %v2028 = vadd.f32 %v1963, %v2027
      %v2029 = vpop.f32.mrb[0].mxu0
      %v2030 = vpop.f32.mrb[0].mxu0
      %v2031 = vadd.f32 %v1966, %v2030
      %v2032 = vpop.f32.mrb[0].mxu0
      %2033 = vdwg.mxu0
      %2034 = vmatprep.subr.bf16.mxu0 0
      %2035 = vmatpush1.bf16.msra.mxu0 %v1694
      %2036 = vmatprep.subr.bf16.mxu0 0
      %2037 = vmatpush1.bf16.msra.mxu0 %v1695
      %2038 = vmatprep.subr.bf16.mxu0 0
      %2039 = vmatpush1.bf16.msra.mxu0 %v1696
      %2040 = vmatprep.subr.bf16.mxu0 0
      %2041 = vmatpush1.bf16.msra.mxu0 %v1697
      %2042 = vmatprep.subr.bf16.mxu0 0
      %2043 = vmatpush1.bf16.msra.mxu0 %v1698
      %2044 = vmatprep.subr.bf16.mxu0 0
      %2045 = vmatpush1.bf16.msra.mxu0 %v1699
      %2046 = vmatprep.subr.bf16.mxu0 0
      %2047 = vmatpush1.bf16.msra.mxu0 %v1700
      %2048 = vmatprep.subr.bf16.mxu0 0
      %2049 = vmatpush1.bf16.msra.mxu0 %v1701
      %2050 = vmatprep.subr.bf16.mxu0 0
      %2051 = vmatpush1.bf16.msra.mxu0 0
      %2052 = vmatprep.subr.bf16.mxu0 0
      %2053 = vmatpush1.bf16.msra.mxu0 0
      %2054 = vmatprep.subr.bf16.mxu0 0
      %2055 = vmatpush1.bf16.msra.mxu0 0
      %2056 = vmatprep.subr.bf16.mxu0 0
      %2057 = vmatpush1.bf16.msra.mxu0 0
      %2058 = vmatprep.subr.bf16.mxu0 0
      %2059 = vmatpush1.bf16.msra.mxu0 0
      %2060 = vmatprep.subr.bf16.mxu0 0
      %2061 = vmatpush1.bf16.msra.mxu0 0
      %2062 = vmatprep.subr.bf16.mxu0 0
      %2063 = vmatpush1.bf16.msra.mxu0 0
      %2064 = vmatprep.subr.bf16.mxu0 0
      %2065 = vmatpush1.bf16.msra.mxu0 0
      %2066 = vmatprep.mubr.bf16.mxu0 0
      %2067 = vmatmul.mubr.bf16.gmra.mrb[0].mxu0 %v1170
      %v2068 = vpop.f32.mrb[0].mxu0
      %v2069 = vadd.f32 %v2004, %v2068
      %v2070 = vpop.f32.mrb[0].mxu0
      %v2071 = vpop.f32.mrb[0].mxu0
      %v2072 = vadd.f32 %v2007, %v2071
      %v2073 = vpop.f32.mrb[0].mxu0
      %2074 = vmatprep.mubr.bf16.mxu0 0
      %2075 = vmatmul.mubr.bf16.gmra.mrb[0].mxu0 %v1179
      %v2076 = vpop.f32.mrb[0].mxu0
      %v2077 = vadd.f32 %v2012, %v2076
      %v2078 = vpop.f32.mrb[0].mxu0
      %v2079 = vpop.f32.mrb[0].mxu0
      %v2080 = vadd.f32 %v2015, %v2079
      %v2081 = vpop.f32.mrb[0].mxu0
      %2082 = vmatprep.mubr.bf16.mxu0 0
      %2083 = vmatmul.mubr.bf16.gmra.mrb[0].mxu0 %v1188
      %v2084 = vpop.f32.mrb[0].mxu0
      %v2085 = vadd.f32 %v2020, %v2084
      %v2086 = vpop.f32.mrb[0].mxu0
      %v2087 = vpop.f32.mrb[0].mxu0
      %v2088 = vadd.f32 %v2023, %v2087
      %v2089 = vpop.f32.mrb[0].mxu0
      %2090 = vmatprep.mubr.bf16.mxu0 0
      %2091 = vmatmul.mubr.bf16.gmra.mrb[0].mxu0 %v1197
      %v2092 = vpop.f32.mrb[0].mxu0
      %v2093 = vadd.f32 %v2028, %v2092
      %v2094 = vpop.f32.mrb[0].mxu0
      %v2095 = vpop.f32.mrb[0].mxu0
      %v2096 = vadd.f32 %v2031, %v2095
      %v2097 = vpop.f32.mrb[0].mxu0
      %2098 = vdwg.mxu0
      %v2099 = vadd.f32 %v2069, %v2072
      %v2100 = vadd.f32 %v2099, %v2077
      %v2101 = vadd.f32 %v2100, %v2080
      %v2102 = vadd.f32 %v2101, %v2085
      %v2103 = vadd.f32 %v2102, %v2088
      %v2104 = vadd.f32 %v2103, %v2093
      %v2105 = vadd.f32 %v2104, %v2096
      %v2106 = vrot.slane %v2105, 4
      %v2107 = vadd.f32 %v2105, %v2106
      %v2108 = vrot.slane %v2107, 2
      %v2109 = vadd.f32 %v2107, %v2108
      %v2110 = vrot.slane %v2109, 1
      %v2111 = vadd.f32 %v2109, %v2110
      %2112 = vst [vmem:[%s467] sm:$0x1] %v2111
      %v2113 = vmul.f32 %v2069, %v2069
      %v2114 = vmul.f32 %v2072, %v2072
      %v2115 = vmul.f32 %v2077, %v2077
      %v2116 = vmul.f32 %v2080, %v2080
      %v2117 = vmul.f32 %v2085, %v2085
      %v2118 = vmul.f32 %v2088, %v2088
      %v2119 = vmul.f32 %v2093, %v2093
      %v2120 = vmul.f32 %v2096, %v2096
      %v2121 = vadd.f32 %v2113, %v2114
      %v2122 = vadd.f32 %v2121, %v2115
      %v2123 = vadd.f32 %v2122, %v2116
      %v2124 = vadd.f32 %v2123, %v2117
      %v2125 = vadd.f32 %v2124, %v2118
      %v2126 = vadd.f32 %v2125, %v2119
      %v2127 = vadd.f32 %v2126, %v2120
      %v2128 = vrot.slane %v2127, 4
      %v2129 = vadd.f32 %v2127, %v2128
      %v2130 = vrot.slane %v2129, 2
      %v2131 = vadd.f32 %v2129, %v2130
      %v2132 = vrot.slane %v2131, 1
      %v2133 = vadd.f32 %v2131, %v2132
      %2134 = vst [vmem:[%s467 + $0x1] sm:$0x1] %v2133
      %v2135 = vpack.c.bf16 %v2072, %v2069
      %v2136 = vpack.c.bf16 %v2080, %v2077
      %v2137 = vpack.c.bf16 %v2088, %v2085
      %v2138 = vpack.c.bf16 %v2096, %v2093
      %v2143 = vunpack.c.l.b16 %v2135
      %v2144 = vunpack.c.h.b16 %v2135
      %v2145 = vunpack.c.l.b16 %v2136
      %v2146 = vunpack.c.h.b16 %v2136
      %v2147 = vunpack.c.l.b16 %v2137
      %v2148 = vunpack.c.h.b16 %v2137
      %v2149 = vunpack.c.l.b16 %v2138
      %v2150 = vunpack.c.h.b16 %v2138
      %v2151 = vpack.c.b16 %v2143, %v2143
      %v2152 = vpack.c.b16 %v2144, %v2144
      %v2153 = vpack.c.b16 %v2145, %v2145
      %v2154 = vpack.c.b16 %v2146, %v2146
      %v2155 = vpack.c.b16 %v2147, %v2147
      %v2156 = vpack.c.b16 %v2148, %v2148
      %v2157 = vpack.c.b16 %v2149, %v2149
      %v2158 = vpack.c.b16 %v2150, %v2150
      %2167 = vst [vmem:[%s458] sm:$0xf] %v2151
      %2168 = vst [vmem:[%s458 + $0x4] sm:$0xf] %v2152
      %2169 = vst [vmem:[%s458 + $0x8] sm:$0xf] %v2153
      %2170 = vst [vmem:[%s458 + $0xc] sm:$0xf] %v2154
      %2171 = vst [vmem:[%s458 + $0x10] sm:$0xf] %v2155
      %2172 = vst [vmem:[%s458 + $0x14] sm:$0xf] %v2156
      %2173 = vst [vmem:[%s458 + $0x18] sm:$0xf] %v2157
      %2174 = vst [vmem:[%s458 + $0x1c] sm:$0xf] %v2158
      %s2175 = smul.u32 4, %s24
      %p2176 = scmp.lt.s32.totalorder %s23, 1
      %s2177 = scalar_select %p2176, %s23, 1
      %p2178 = scmp.lt.s32.totalorder %s2175, 15
      %s2179 = scalar_select %p2178, %s2175, 15
      %s2180 = smul.addr %s2179, 2
      %s2181 = smul.addr %s2177, 32
      %s2182 = sadd.s32 %s2180, %s2181
      %s2183 = smul.addr %s2182, 4
      %s2184 = scalar_lea.vmem %s6, %s2183
      %p2185 = scmp.lt.s32.totalorder %s23, 1
      %s2186 = scalar_select %p2185, %s23, 1
      %p2187 = scmp.lt.s32.totalorder %s24, 3
      %s2188 = scalar_select %p2187, %s24, 3
      %s2189 = smul.addr %s2186, 4
      %s2190 = sadd.s32 %s2188, %s2189
      %s2191 = smul.addr %s2190, 2
      %s2192 = scalar_lea.vmem %s7, %s2191
      // Predicated region
      $region45: #{double_conv.4} parent=43 // pred_check
        %p2193 = pneg %p214
      $region46: #{double_conv.4} parent=43 // pred_check_branch
        %2195 = sbr.rel (%p2193) target = $region48
      $region47: #{double_conv.4} parent=43 // pred_region
        %s2196 = smul.u32 4, %s24
      $region48: #{double_conv.4} parent=43 // pred_fallthru
        _
      // Predicated region
      $region49: #{double_conv.4} parent=43 // pred_check
        %p2197 = pneg %p242
      $region50: #{double_conv.4} parent=43 // pred_check_branch
        %2199 = sbr.rel (%p2197) target = $region52
      $region51: #{double_conv.4} parent=43 // pred_region
        _
      $region52: #{double_conv.4} parent=43 // pred_fallthru
        _
    $region44: #{double_conv.4} parent=5 // pred_fallthru
      _
    %p2200 = scmp.le.s32.totalorder 2, %s14
    // Predicated region
    $region53: #{double_conv.4} parent=5 // pred_check
      %p2201 = pneg %p2200
    $region54: #{double_conv.4} parent=5 // pred_check_branch
      %2203 = sbr.rel (%p2201) target = $region56
    $region55: #{double_conv.4} parent=5 // pred_region
      %s2204 = ssub.s32 %s14, 2
      // Predicated region
      $region57: #{double_conv.4} parent=55 // pred_check
        %p2205 = pneg %p220
      $region58: #{double_conv.4} parent=55 // pred_check_branch
        %2207 = sbr.rel (%p2205) target = $region60
      $region59: #{double_conv.4} parent=55 // pred_region
        %s2208 = smul.u32 4, %s26
        %p2209 = scmp.lt.s32.totalorder %s25, 1
        %s2210 = scalar_select %p2209, %s25, 1
        %p2211 = scmp.lt.s32.totalorder %s2208, 15
        %s2212 = scalar_select %p2211, %s2208, 15
        %s2213 = smul.addr %s2212, 2
        %s2214 = smul.addr %s2210, 32
        %s2215 = sadd.s32 %s2213, %s2214
        %s2216 = smul.addr %s2215, 4
        %s2217 = scalar_lea.vmem %s6, %s2216
      $region60: #{double_conv.4} parent=55 // pred_fallthru
        _
      // Predicated region
      $region61: #{double_conv.4} parent=55 // pred_check
        %p2218 = pneg %p248
      $region62: #{double_conv.4} parent=55 // pred_check_branch
        %2220 = sbr.rel (%p2218) target = $region64
      $region63: #{double_conv.4} parent=55 // pred_region
        %p2221 = scmp.lt.s32.totalorder %s25, 1
        %s2222 = scalar_select %p2221, %s25, 1
        %p2223 = scmp.lt.s32.totalorder %s26, 3
        %s2224 = scalar_select %p2223, %s26, 3
        %s2225 = smul.addr %s2222, 4
        %s2226 = sadd.s32 %s2224, %s2225
        %s2227 = smul.addr %s2226, 2
        %s2228 = scalar_lea.vmem %s7, %s2227
      $region64: #{double_conv.4} parent=55 // pred_fallthru
        _
    $region56: #{double_conv.4} parent=5 // pred_fallthru
      _
  $region6: #{double_conv.4} parent=0 // loop_footer
    %s18 = sadd.s32 1, %s14
  $region7: #{double_conv.4} parent=0 // loop_footer_branch
    %13 = sbr.rel target = $region3
  $region8: #{double_conv.4} parent=0 // loop_exit
    _

</llo_original>
